<compile_context>
chip_gen: v7x
topology: tpu7x:2x2x1
jax: 0.10.0
libtpu: 0.0.40
codegen_flags: <defaults>
</compile_context>

<pallas_src>
import functools

import jax
import jax.numpy as jnp
from jax.experimental import pallas as pl
from jax.experimental.pallas import tpu as pltpu


def mhsa_kernel(x_ref, wq_ref, wk_ref, wv_ref, bq_ref, bk_ref, bv_ref,
                wp_ref, bp_ref, o_ref, *, heads, scale):
    """Fused MHSA for one batch element, channel-major layout, heads batched.

    x_ref  : [1, C, N]        channels x tokens for this batch element
    wq/k/v : [heads, dh, C]   per-head QKV weight rows (native conv row order)
    bq/k/v : [heads, dh, 1]   per-head QKV biases
    wp_ref : [heads, dh, C]   per-head slice of the output-projection weight
    bp_ref : [C, 1]           output-projection bias
    o_ref  : [1, C, N]        output channels x tokens
    """
    x = x_ref[0]                                       # [C, N]
    C, N = x.shape

    # One broadcast of x, consumed by three head-batched projections.
    xb = jnp.broadcast_to(x, (heads, C, N))            # [heads, C, N]

    # Head-batched QKV projections; natural (h, d, n) output order.
    q = (jnp.einsum('hdc,hcn->hdn', wq_ref[...], xb,
                    preferred_element_type=jnp.float32) + bq_ref[...]) * scale
    k = jnp.einsum('hdc,hcn->hdn', wk_ref[...], xb,
                   preferred_element_type=jnp.float32) + bk_ref[...]
    v = jnp.einsum('hdc,hcn->hdn', wv_ref[...], xb,
                   preferred_element_type=jnp.float32) + bv_ref[...]

    # Scores: contract dh directly; natural (h, n, m) output order.
    s = jnp.einsum('hdn,hdm->hnm', q, k,
                   preferred_element_type=jnp.float32)          # [heads, N, N]

    # Softmax with deferred normalization.
    m = jnp.max(s, axis=-1, keepdims=True)                      # [heads, N, 1]
    p = jnp.exp(s - m)                                          # [heads, N, N]
    l = jnp.sum(p, axis=-1, keepdims=True)                      # [heads, N, 1]

    o = jnp.einsum('hnm,hdm->hnd', p, v,
                   preferred_element_type=jnp.float32)          # [heads, N, dh]
    o = o * pl.reciprocal(l, approx=True)   # normalize [N,dh] instead of [N,N]

    # Output projection per head (batched dots) + head sum; lands in [C, N]
    # directly, so the wrapper's reshape back to NCHW is free.
    proj = jnp.einsum('hdc,hnd->hcn', wp_ref[...], o,
                      preferred_element_type=jnp.float32)       # [heads, C, N]
    out = jnp.sum(proj, axis=0) + bp_ref[...]                   # [C, N]

    o_ref[0] = out.astype(o_ref.dtype)


def multi_head_self_attention(x_nchw, wqkv, bqkv, wproj, bproj, heads):
    """x_nchw: [B, C, H, W]; wqkv: [3C, C]; bqkv: [3C]; wproj: [C, C]; bproj: [C]."""
    B, C, H, W = x_nchw.shape
    assert C % heads == 0, "channels must be divisible by heads"
    N = H * W
    dh = C // heads
    scale = dh ** (-0.5)

    # NCHW -> channel-major tokens [B, C, N]: a free reshape, no transpose op.
    x_cn = x_nchw.reshape(B, C, N)

    # --- Head-major weight prep (tiny, done once in XLA outside the kernel) ---
    # QKV conv output channels are ordered (3, heads, dh), matching the
    # PyTorch reshape(B, 3, heads, C//heads, H, W).  Native row order is kept.
    w3 = wqkv.reshape(3, heads, dh, C)                 # [3, heads, dh, C]
    wq, wk, wv = w3[0], w3[1], w3[2]                   # [heads, dh, C]
    b3 = bqkv.reshape(3, heads, dh, 1)                 # [3, heads, dh, 1]
    bq, bk, bv = b3[0], b3[1], b3[2]                   # [heads, dh, 1]
    # Projection input channels are ordered (heads, dh).
    wp = jnp.transpose(wproj.reshape(C, heads, dh), (1, 2, 0))   # [heads, dh, C]
    bp = bproj.reshape(C, 1)

    kernel = functools.partial(mhsa_kernel, heads=heads, scale=scale)

    # Note: every block's last two dims equal the full array extents, which
    # satisfies the (8,128) BlockSpec rule.
    out_cn = pl.pallas_call(
        kernel,
        out_shape=jax.ShapeDtypeStruct((B, C, N), x_cn.dtype),
        grid_spec=pltpu.PrefetchScalarGridSpec(
            num_scalar_prefetch=0,
            grid=(B,),
            in_specs=[
                pl.BlockSpec((1, C, N), lambda b: (b, 0, 0)),
                pl.BlockSpec((heads, dh, C), lambda b: (0, 0, 0)),
                pl.BlockSpec((heads, dh, C), lambda b: (0, 0, 0)),
                pl.BlockSpec((heads, dh, C), lambda b: (0, 0, 0)),
                pl.BlockSpec((heads, dh, 1), lambda b: (0, 0, 0)),
                pl.BlockSpec((heads, dh, 1), lambda b: (0, 0, 0)),
                pl.BlockSpec((heads, dh, 1), lambda b: (0, 0, 0)),
                pl.BlockSpec((heads, dh, C), lambda b: (0, 0, 0)),
                pl.BlockSpec((C, 1), lambda b: (0, 0)),
            ],
            out_specs=pl.BlockSpec((1, C, N), lambda b: (b, 0, 0)),
        ),
        compiler_params=pltpu.CompilerParams(
            dimension_semantics=("parallel",),   # shards batches across TCs on v7x
        ),
    )(x_cn, wq, wk, wv, bq, bk, bv, wp, bp)

    # [B, C, N] -> NCHW: free reshape, no transpose op.
    return out_cn.reshape(B, C, H, W)


def _reference(x_nchw, wqkv, bqkv, wproj, bproj, heads):
    """Pure-JAX mirror of the PyTorch forward (dropout = identity)."""
    B, C, H, W = x_nchw.shape
    N = H * W
    dh = C // heads
    scale = dh ** (-0.5)

    x = jnp.transpose(x_nchw.reshape(B, C, N), (0, 2, 1))         # [B, N, C]
    qkv = jnp.einsum("bnc,oc->bno", x, wqkv) + bqkv               # [B, N, 3C]
    qkv = qkv.reshape(B, N, 3, heads, dh)
    q = jnp.transpose(qkv[:, :, 0], (0, 2, 1, 3))                 # [B, h, N, dh]
    k = jnp.transpose(qkv[:, :, 1], (0, 2, 1, 3))
    v = jnp.transpose(qkv[:, :, 2], (0, 2, 1, 3))
    attn = jnp.einsum("bhnd,bhmd->bhnm", q, k) * scale
    attn = jax.nn.softmax(attn, axis=-1)
    o = jnp.einsum("bhnm,bhmd->bhnd", attn, v)                    # [B, h, N, dh]
    o = jnp.transpose(o, (0, 2, 1, 3)).reshape(B, N, C)           # [B, N, C]
    o = jnp.einsum("bnc,oc->bno", o, wproj) + bproj
    return jnp.transpose(o, (0, 2, 1)).reshape(B, C, H, W)


if __name__ == "__main__":
    # Small shapes consistent with the module: dim=32, heads=8, spatial 8x8.
    B, C, H, W = 2, 32, 8, 8
    HEADS = 8

    key = jax.random.PRNGKey(0)
    k_x, k_wqkv, k_bqkv, k_wp, k_bp = jax.random.split(key, 5)

    x = jax.random.normal(k_x, (B, C, H, W), dtype=jnp.float32)
    # Conv2d(dim, 3*dim, 1) weight [3C, C, 1, 1] -> squeeze to [3C, C]
    wqkv = jax.random.normal(k_wqkv, (3 * C, C), dtype=jnp.float32) * 0.1
    bqkv = jax.random.normal(k_bqkv, (3 * C,), dtype=jnp.float32) * 0.1
    # Conv2d(dim, dim, 1) weight [C, C, 1, 1] -> [C, C]
    wproj = jax.random.normal(k_wp, (C, C), dtype=jnp.float32) * 0.1
    bproj = jax.random.normal(k_bp, (C,), dtype=jnp.float32) * 0.1

    out = multi_head_self_attention(x, wqkv, bqkv, wproj, bproj, HEADS)
    out = jax.block_until_ready(out)

    ref = jax.block_until_ready(_reference(x, wqkv, bqkv, wproj, bproj, HEADS))
    assert out.shape == (B, C, H, W)
    # Tolerance accounts for the approximate (EUP) reciprocal used in the
    # deferred softmax normalization; structural bugs would be orders of
    # magnitude larger.
    assert jnp.allclose(out, ref, atol=5e-3, rtol=5e-3), "mismatch vs reference"

    print("KERNEL_OK")
</pallas_src>

<mosaic_0001>
module attributes {stable_mosaic.version = 11 : i64} {
  func.func @mhsa_kernel(%arg0: i32, %arg1: memref<1x32x64xf32, #tpu.memory_space<vmem>>, %arg2: memref<8x4x32xf32, #tpu.memory_space<vmem>>, %arg3: memref<8x4x32xf32, #tpu.memory_space<vmem>>, %arg4: memref<8x4x32xf32, #tpu.memory_space<vmem>>, %arg5: memref<8x4x1xf32, #tpu.memory_space<vmem>>, %arg6: memref<8x4x1xf32, #tpu.memory_space<vmem>>, %arg7: memref<8x4x1xf32, #tpu.memory_space<vmem>>, %arg8: memref<8x4x32xf32, #tpu.memory_space<vmem>>, %arg9: memref<32x1xf32, #tpu.memory_space<vmem>>, %arg10: memref<1x32x64xf32, #tpu.memory_space<vmem>>) attributes {dimension_semantics = [#tpu.dimension_semantics<parallel>], iteration_bounds = array<i64: 2>, scalar_prefetch = 0 : i64, scratch_operands = 0 : i64, tpu.core_type = #tpu.core_type<tc>, window_params = [{transform_indices = @transform_0, window_bounds = array<i64: 1, 32, 64>}, {pipeline_mode = #tpu.pipeline_mode<synchronous>, transform_indices = @transform_1, window_bounds = array<i64: 8, 4, 32>}, {pipeline_mode = #tpu.pipeline_mode<synchronous>, transform_indices = @transform_2, window_bounds = array<i64: 8, 4, 32>}, {pipeline_mode = #tpu.pipeline_mode<synchronous>, transform_indices = @transform_3, window_bounds = array<i64: 8, 4, 32>}, {pipeline_mode = #tpu.pipeline_mode<synchronous>, transform_indices = @transform_4, window_bounds = array<i64: 8, 4, 1>}, {pipeline_mode = #tpu.pipeline_mode<synchronous>, transform_indices = @transform_5, window_bounds = array<i64: 8, 4, 1>}, {pipeline_mode = #tpu.pipeline_mode<synchronous>, transform_indices = @transform_6, window_bounds = array<i64: 8, 4, 1>}, {pipeline_mode = #tpu.pipeline_mode<synchronous>, transform_indices = @transform_7, window_bounds = array<i64: 8, 4, 32>}, {pipeline_mode = #tpu.pipeline_mode<synchronous>, transform_indices = @transform_8, window_bounds = array<i64: 32, 1>}, {transform_indices = @transform_9, window_bounds = array<i64: 1, 32, 64>}]} {
    %c0 = arith.constant 0 : index
    %c0_0 = arith.constant 0 : index
    %c0_1 = arith.constant 0 : index
    %0 = vector.load %arg1[%c0, %c0_0, %c0_1] : memref<1x32x64xf32, #tpu.memory_space<vmem>>, vector<1x32x64xf32>
    %1 = vector.shape_cast %0 : vector<1x32x64xf32> to vector<32x64xf32>
    %2 = vector.shape_cast %1 : vector<32x64xf32> to vector<1x32x64xf32>
    %3 = vector.broadcast %2 : vector<1x32x64xf32> to vector<8x32x64xf32>
    %c0_2 = arith.constant 0 : index
    %c0_3 = arith.constant 0 : index
    %c0_4 = arith.constant 0 : index
    %4 = vector.load %arg2[%c0_2, %c0_3, %c0_4] : memref<8x4x32xf32, #tpu.memory_space<vmem>>, vector<8x4x32xf32>
    "tpu.trace_start"() <{level = 10 : i32, message = "hdc,hcn->hdn"}> : () -> ()
    %cst = arith.constant dense<0.000000e+00> : vector<8x4x64xf32>
    %5 = tpu.matmul %4, %3, %cst {dimension_numbers = #tpu.dot_dimension_numbers<[2], [1], [1], [2], [0, 0, 0, 1, 1, 2], [0], [0]>} : vector<8x4x32xf32>, vector<8x32x64xf32>, vector<8x4x64xf32> -> vector<8x4x64xf32>
    "tpu.trace_stop"() : () -> ()
    %c0_5 = arith.constant 0 : index
    %c0_6 = arith.constant 0 : index
    %c0_7 = arith.constant 0 : index
    %6 = vector.load %arg5[%c0_5, %c0_6, %c0_7] : memref<8x4x1xf32, #tpu.memory_space<vmem>>, vector<8x4x1xf32>
    %7 = vector.broadcast %6 : vector<8x4x1xf32> to vector<8x4x64xf32>
    %8 = arith.addf %5, %7 : vector<8x4x64xf32>
    %cst_8 = arith.constant 5.000000e-01 : f32
    %9 = vector.broadcast %cst_8 : f32 to vector<8x4x64xf32>
    %10 = arith.mulf %8, %9 : vector<8x4x64xf32>
    %c0_9 = arith.constant 0 : index
    %c0_10 = arith.constant 0 : index
    %c0_11 = arith.constant 0 : index
    %11 = vector.load %arg3[%c0_9, %c0_10, %c0_11] : memref<8x4x32xf32, #tpu.memory_space<vmem>>, vector<8x4x32xf32>
    "tpu.trace_start"() <{level = 10 : i32, message = "hdc,hcn->hdn"}> : () -> ()
    %cst_12 = arith.constant dense<0.000000e+00> : vector<8x4x64xf32>
    %12 = tpu.matmul %11, %3, %cst_12 {dimension_numbers = #tpu.dot_dimension_numbers<[2], [1], [1], [2], [0, 0, 0, 1, 1, 2], [0], [0]>} : vector<8x4x32xf32>, vector<8x32x64xf32>, vector<8x4x64xf32> -> vector<8x4x64xf32>
    "tpu.trace_stop"() : () -> ()
    %c0_13 = arith.constant 0 : index
    %c0_14 = arith.constant 0 : index
    %c0_15 = arith.constant 0 : index
    %13 = vector.load %arg6[%c0_13, %c0_14, %c0_15] : memref<8x4x1xf32, #tpu.memory_space<vmem>>, vector<8x4x1xf32>
    %14 = vector.broadcast %13 : vector<8x4x1xf32> to vector<8x4x64xf32>
    %15 = arith.addf %12, %14 : vector<8x4x64xf32>
    %c0_16 = arith.constant 0 : index
    %c0_17 = arith.constant 0 : index
    %c0_18 = arith.constant 0 : index
    %16 = vector.load %arg4[%c0_16, %c0_17, %c0_18] : memref<8x4x32xf32, #tpu.memory_space<vmem>>, vector<8x4x32xf32>
    "tpu.trace_start"() <{level = 10 : i32, message = "hdc,hcn->hdn"}> : () -> ()
    %cst_19 = arith.constant dense<0.000000e+00> : vector<8x4x64xf32>
    %17 = tpu.matmul %16, %3, %cst_19 {dimension_numbers = #tpu.dot_dimension_numbers<[2], [1], [1], [2], [0, 0, 0, 1, 1, 2], [0], [0]>} : vector<8x4x32xf32>, vector<8x32x64xf32>, vector<8x4x64xf32> -> vector<8x4x64xf32>
    "tpu.trace_stop"() : () -> ()
    %c0_20 = arith.constant 0 : index
    %c0_21 = arith.constant 0 : index
    %c0_22 = arith.constant 0 : index
    %18 = vector.load %arg7[%c0_20, %c0_21, %c0_22] : memref<8x4x1xf32, #tpu.memory_space<vmem>>, vector<8x4x1xf32>
    %19 = vector.broadcast %18 : vector<8x4x1xf32> to vector<8x4x64xf32>
    %20 = arith.addf %17, %19 : vector<8x4x64xf32>
    "tpu.trace_start"() <{level = 10 : i32, message = "hdn,hdm->hnm"}> : () -> ()
    %cst_23 = arith.constant dense<0.000000e+00> : vector<8x64x64xf32>
    %21 = tpu.matmul %10, %15, %cst_23 {dimension_numbers = #tpu.dot_dimension_numbers<[1], [1], [2], [2], [0, 0, 0, 2, 1, 2], [0], [0]>} : vector<8x4x64xf32>, vector<8x4x64xf32>, vector<8x64x64xf32> -> vector<8x64x64xf32>
    "tpu.trace_stop"() : () -> ()
    %cst_24 = arith.constant dense<0xFF800000> : vector<8x64xf32>
    %22 = vector.multi_reduction <maximumf>, %21, %cst_24 [2] : vector<8x64x64xf32> to vector<8x64xf32>
    %23 = vector.shape_cast %22 : vector<8x64xf32> to vector<8x64x1xf32>
    %24 = vector.broadcast %23 : vector<8x64x1xf32> to vector<8x64x64xf32>
    %25 = arith.subf %21, %24 : vector<8x64x64xf32>
    %26 = math.exp %25 : vector<8x64x64xf32>
    %cst_25 = arith.constant dense<0.000000e+00> : vector<8x64xf32>
    %27 = vector.multi_reduction <add>, %26, %cst_25 [2] : vector<8x64x64xf32> to vector<8x64xf32>
    %28 = vector.shape_cast %27 : vector<8x64xf32> to vector<8x64x1xf32>
    "tpu.trace_start"() <{level = 10 : i32, message = "hnm,hdm->hnd"}> : () -> ()
    %cst_26 = arith.constant dense<0.000000e+00> : vector<8x64x4xf32>
    %29 = tpu.matmul %26, %20, %cst_26 {dimension_numbers = #tpu.dot_dimension_numbers<[2], [2], [1], [1], [0, 0, 0, 1, 1, 1], [0], [0]>} : vector<8x64x64xf32>, vector<8x4x64xf32>, vector<8x64x4xf32> -> vector<8x64x4xf32>
    "tpu.trace_stop"() : () -> ()
    %30 = tpu.reciprocal %28 {approx = true} : vector<8x64x1xf32> -> vector<8x64x1xf32>
    %31 = vector.broadcast %30 : vector<8x64x1xf32> to vector<8x64x4xf32>
    %32 = arith.mulf %29, %31 : vector<8x64x4xf32>
    %c0_27 = arith.constant 0 : index
    %c0_28 = arith.constant 0 : index
    %c0_29 = arith.constant 0 : index
    %33 = vector.load %arg8[%c0_27, %c0_28, %c0_29] : memref<8x4x32xf32, #tpu.memory_space<vmem>>, vector<8x4x32xf32>
    "tpu.trace_start"() <{level = 10 : i32, message = "hdc,hnd->hcn"}> : () -> ()
    %cst_30 = arith.constant dense<0.000000e+00> : vector<8x32x64xf32>
    %34 = tpu.matmul %33, %32, %cst_30 {dimension_numbers = #tpu.dot_dimension_numbers<[1], [2], [2], [1], [0, 0, 0, 2, 1, 1], [0], [0]>} : vector<8x4x32xf32>, vector<8x64x4xf32>, vector<8x32x64xf32> -> vector<8x32x64xf32>
    "tpu.trace_stop"() : () -> ()
    %cst_31 = arith.constant dense<0.000000e+00> : vector<32x64xf32>
    %35 = vector.multi_reduction <add>, %34, %cst_31 [0] : vector<8x32x64xf32> to vector<32x64xf32>
    %c0_32 = arith.constant 0 : index
    %c0_33 = arith.constant 0 : index
    %36 = vector.load %arg9[%c0_32, %c0_33] : memref<32x1xf32, #tpu.memory_space<vmem>>, vector<32x1xf32>
    %37 = vector.broadcast %36 : vector<32x1xf32> to vector<32x64xf32>
    %38 = arith.addf %35, %37 : vector<32x64xf32>
    %c0_34 = arith.constant 0 : index
    %c0_35 = arith.constant 0 : index
    %c0_36 = arith.constant 0 : index
    %39 = vector.load %arg10[%c0_34, %c0_35, %c0_36] : memref<1x32x64xf32, #tpu.memory_space<vmem>>, vector<1x32x64xf32>
    %40 = vector.shape_cast %39 : vector<1x32x64xf32> to vector<32x64xf32>
    %41 = vector.shape_cast %38 : vector<32x64xf32> to vector<1x32x64xf32>
    tpu.vector_store %arg10[%c0_34, %c0_35, %c0_36], %41 {strides = array<i32>} : memref<1x32x64xf32, #tpu.memory_space<vmem>>, vector<1x32x64xf32>,
    return
  }
  func.func @transform_0(%arg0: i32) -> (i32, i32, i32) {
    %c0_i32 = arith.constant 0 : i32
    %c0_i32_0 = arith.constant 0 : i32
    %c0_i32_1 = arith.constant 0 : i32
    return %arg0, %c0_i32, %c0_i32_0 : i32, i32, i32
  }
  func.func @transform_1(%arg0: i32) -> (i32, i32, i32) {
    %c0_i32 = arith.constant 0 : i32
    %c0_i32_0 = arith.constant 0 : i32
    %c0_i32_1 = arith.constant 0 : i32
    %c0_i32_2 = arith.constant 0 : i32
    return %c0_i32, %c0_i32_0, %c0_i32_1 : i32, i32, i32
  }
  func.func @transform_2(%arg0: i32) -> (i32, i32, i32) {
    %c0_i32 = arith.constant 0 : i32
    %c0_i32_0 = arith.constant 0 : i32
    %c0_i32_1 = arith.constant 0 : i32
    %c0_i32_2 = arith.constant 0 : i32
    return %c0_i32, %c0_i32_0, %c0_i32_1 : i32, i32, i32
  }
  func.func @transform_3(%arg0: i32) -> (i32, i32, i32) {
    %c0_i32 = arith.constant 0 : i32
    %c0_i32_0 = arith.constant 0 : i32
    %c0_i32_1 = arith.constant 0 : i32
    %c0_i32_2 = arith.constant 0 : i32
    return %c0_i32, %c0_i32_0, %c0_i32_1 : i32, i32, i32
  }
  func.func @transform_4(%arg0: i32) -> (i32, i32, i32) {
    %c0_i32 = arith.constant 0 : i32
    %c0_i32_0 = arith.constant 0 : i32
    %c0_i32_1 = arith.constant 0 : i32
    %c0_i32_2 = arith.constant 0 : i32
    return %c0_i32, %c0_i32_0, %c0_i32_1 : i32, i32, i32
  }
  func.func @transform_5(%arg0: i32) -> (i32, i32, i32) {
    %c0_i32 = arith.constant 0 : i32
    %c0_i32_0 = arith.constant 0 : i32
    %c0_i32_1 = arith.constant 0 : i32
    %c0_i32_2 = arith.constant 0 : i32
    return %c0_i32, %c0_i32_0, %c0_i32_1 : i32, i32, i32
  }
  func.func @transform_6(%arg0: i32) -> (i32, i32, i32) {
    %c0_i32 = arith.constant 0 : i32
    %c0_i32_0 = arith.constant 0 : i32
    %c0_i32_1 = arith.constant 0 : i32
    %c0_i32_2 = arith.constant 0 : i32
    return %c0_i32, %c0_i32_0, %c0_i32_1 : i32, i32, i32
  }
  func.func @transform_7(%arg0: i32) -> (i32, i32, i32) {
    %c0_i32 = arith.constant 0 : i32
    %c0_i32_0 = arith.constant 0 : i32
    %c0_i32_1 = arith.constant 0 : i32
    %c0_i32_2 = arith.constant 0 : i32
    return %c0_i32, %c0_i32_0, %c0_i32_1 : i32, i32, i32
  }
  func.func @transform_8(%arg0: i32) -> (i32, i32) {
    %c0_i32 = arith.constant 0 : i32
    %c0_i32_0 = arith.constant 0 : i32
    %c0_i32_1 = arith.constant 0 : i32
    return %c0_i32, %c0_i32_0 : i32, i32
  }
  func.func @transform_9(%arg0: i32) -> (i32, i32, i32) {
    %c0_i32 = arith.constant 0 : i32
    %c0_i32_0 = arith.constant 0 : i32
    %c0_i32_1 = arith.constant 0 : i32
    return %arg0, %c0_i32, %c0_i32_0 : i32, i32, i32
  }
}

</mosaic_0001>

<llo_original>
// kernel: tpu_custom_call.1
$region0: #{tpu_custom_call.1}
  #allocation0 [shape = 'u32[]', space=smem, size = 0x4, offset = 0x4, fixed_abs, tag = 'smem constant byte address 0x4 - core index']
  #allocation1 [shape = 'u32[144,128]{1,0:T(1,128)}', space=vmem, size = 0x12000, scoped, tag = 'internal scratch']
  %s0 = inlined_call_operand.vmem [shape: f32[2,32,64], index: 0, kind: input, shape index: {}]
  %s1 = inlined_call_operand.vmem [shape: f32[8,4,32], index: 1, kind: input, shape index: {}]
  %s2 = inlined_call_operand.vmem [shape: f32[8,4,32], index: 2, kind: input, shape index: {}]
  %s3 = inlined_call_operand.hbm [shape: f32[8,4,32], index: 3, kind: input, shape index: {}]
  %s4 = inlined_call_operand.vmem [shape: f32[8,4,1], index: 4, kind: input, shape index: {}]
  %s5 = inlined_call_operand.vmem [shape: f32[8,4,1], index: 5, kind: input, shape index: {}]
  %s6 = inlined_call_operand.vmem [shape: f32[8,4,1], index: 6, kind: input, shape index: {}]
  %s7 = inlined_call_operand.vmem [shape: f32[8,4,32], index: 7, kind: input, shape index: {}]
  %s8 = inlined_call_operand.vmem [shape: f32[32,1], index: 8, kind: input, shape index: {}]
  %s9 = inlined_call_operand.hbm [shape: f32[2,32,64], index: 9, kind: output, shape index: {}]
  %s10 = sld [smem:[#allocation0]]
  $region73: #{tpu_custom_call.1} parent=0
    _
  %s12 = ssub.s32 1, %s10
  %s13 = scalar_select 0, %s12, %s10
  $region1: #{tpu_custom_call.1} parent=0
    #allocation2 [shape = 'u8[16384]{0}', space=vmem, size = 0x4000, scoped, tag = 'input window, operand 3, single buffered']
    #allocation3 [shape = 's32[2]{0}', space=sflag, size = 0x8, scoped, tag = 'scoped memory for tpu_custom_call.1']
    #allocation4 [shape = 's32[2]{0}', space=sflag, size = 0x8, scoped, tag = 'scoped memory for tpu_custom_call.1']
    #allocation5 [shape = 'u8[32768]{0}', space=vmem, size = 0x8000, scoped, tag = 'output window, operand 0']
    %14 = vsyncpa [#allocation3], 0
    %15 = vsyncpa [#allocation4], 0
    %s16 = scalar_lea.sflag [#allocation4], 1
    %17 = vsyncpa %s16, 0
    loop: start=0, step=1, limit=4
    $region2: #{tpu_custom_call.1} parent=1 // loop_pre_header
      _
    $region3: #{tpu_custom_call.1} parent=1 // loop_header
      %s19 = sphi 0, %s23
      %p20 = scmp.ge.s32.totalorder %s19, 4
      %s29 = sphi 0, %s31
      %s32 = sphi 0, %s29
      %s33 = sphi 0, %s32
      %s49 = sphi 0, %s33
      %s53 = sphi 0, %s53
      %s55 = sphi 0, %s53
      %s56 = sphi 0, %s55
      %s70 = sphi 0, %s56
      %s74 = sphi 0, %s74
      %s76 = sphi 0, %s74
      %s77 = sphi 0, %s76
      %s91 = sphi 0, %s77
      %s95 = sphi 0, %s95
      %s97 = sphi 0, %s95
      %s98 = sphi 0, %s97
      %s112 = sphi 0, %s98
      %s116 = sphi 0, %s116
      %s118 = sphi 0, %s116
      %s119 = sphi 0, %s118
      %s133 = sphi 0, %s119
      %s137 = sphi 0, %s137
      %s139 = sphi 0, %s137
      %s140 = sphi 0, %s139
      %s154 = sphi 0, %s140
      %s158 = sphi 0, %s158
      %s160 = sphi 0, %s158
      %s161 = sphi 0, %s160
      %s175 = sphi 0, %s161
      %s179 = sphi 0, %s179
      %s181 = sphi 0, %s179
      %s182 = sphi 0, %s181
      %s196 = sphi 0, %s182
      %s200 = sphi 0, %s200
      %s202 = sphi 0, %s200
      %s203 = sphi 0, %s202
      %s217 = sphi 0, %s203
      %s223 = sphi 0, %s225
      %s226 = sphi 0, %s223
      %s227 = sphi 0, %s226
      %s243 = sphi 0, %s227
    $region4: #{tpu_custom_call.1} parent=1 // loop_header_branch
      %22 = sbr.rel (%p20) target = $region8
    $region5: #{tpu_custom_call.1} parent=1 // loop_body
      %s24 = ssub.s32 %s19, 1
      %s25 = ssub.s32 %s19, 2
      %s26 = sadd.s32 %s19, 1
      %s27 = ssub.s32 %s19, %s26
      %p28 = scmp.eq.s32.totalorder %s27, 0
      %s30 = sadd.s32 %s29, 1
      %s31 = scalar_select %p28, %s29, %s30
      %p34 = pneg %p28
      %p35 = scmp.eq.s32.totalorder %s19, 1
      %p36 = por %p34, %p35
      %p37 = scmp.ne.s32.totalorder %s29, %s32
      %p38 = scmp.eq.s32.totalorder %s19, 0
      %p39 = por %p37, %p38
      %p40 = scmp.ne.s32.totalorder %s29, %s32
      %p41 = scmp.eq.s32.totalorder %s24, 1
      %p42 = por %p40, %p41
      %p43 = scmp.ne.s32.totalorder %s32, %s33
      %p44 = scmp.eq.s32.totalorder %s24, 0
      %p45 = por %p43, %p44
      %p46 = scmp.ne.s32.totalorder %s32, %s33
      %p47 = scmp.eq.s32.totalorder %s25, 1
      %p48 = por %p46, %p47
      %p50 = scmp.ne.s32.totalorder %s33, %s49
      %p51 = scmp.eq.s32.totalorder %s25, 0
      %p52 = por %p50, %p51
      %s54 = sadd.s32 %s53, 1
      %p57 = scmp.eq.s32.totalorder %s19, 1
      %p58 = scmp.ne.s32.totalorder %s53, %s55
      %p59 = scmp.eq.s32.totalorder %s19, 0
      %p60 = por %p58, %p59
      %p61 = scmp.ne.s32.totalorder %s53, %s55
      %p62 = scmp.eq.s32.totalorder %s24, 1
      %p63 = por %p61, %p62
      %p64 = scmp.ne.s32.totalorder %s55, %s56
      %p65 = scmp.eq.s32.totalorder %s24, 0
      %p66 = por %p64, %p65
      %p67 = scmp.ne.s32.totalorder %s55, %s56
      %p68 = scmp.eq.s32.totalorder %s25, 1
      %p69 = por %p67, %p68
      %p71 = scmp.ne.s32.totalorder %s56, %s70
      %p72 = scmp.eq.s32.totalorder %s25, 0
      %p73 = por %p71, %p72
      %s75 = sadd.s32 %s74, 1
      %p78 = scmp.eq.s32.totalorder %s19, 1
      %p79 = scmp.ne.s32.totalorder %s74, %s76
      %p80 = scmp.eq.s32.totalorder %s19, 0
      %p81 = por %p79, %p80
      %p82 = scmp.ne.s32.totalorder %s74, %s76
      %p83 = scmp.eq.s32.totalorder %s24, 1
      %p84 = por %p82, %p83
      %p85 = scmp.ne.s32.totalorder %s76, %s77
      %p86 = scmp.eq.s32.totalorder %s24, 0
      %p87 = por %p85, %p86
      %p88 = scmp.ne.s32.totalorder %s76, %s77
      %p89 = scmp.eq.s32.totalorder %s25, 1
      %p90 = por %p88, %p89
      %p92 = scmp.ne.s32.totalorder %s77, %s91
      %p93 = scmp.eq.s32.totalorder %s25, 0
      %p94 = por %p92, %p93
      %s96 = sadd.s32 %s95, 1
      %p99 = scmp.eq.s32.totalorder %s19, 1
      %p100 = scmp.ne.s32.totalorder %s95, %s97
      %p101 = scmp.eq.s32.totalorder %s19, 0
      %p102 = por %p100, %p101
      %p103 = scmp.ne.s32.totalorder %s95, %s97
      %p104 = scmp.eq.s32.totalorder %s24, 1
      %p105 = por %p103, %p104
      %p106 = scmp.ne.s32.totalorder %s97, %s98
      %p107 = scmp.eq.s32.totalorder %s24, 0
      %p108 = por %p106, %p107
      %p109 = scmp.ne.s32.totalorder %s97, %s98
      %p110 = scmp.eq.s32.totalorder %s25, 1
      %p111 = por %p109, %p110
      %p113 = scmp.ne.s32.totalorder %s98, %s112
      %p114 = scmp.eq.s32.totalorder %s25, 0
      %p115 = por %p113, %p114
      %s117 = sadd.s32 %s116, 1
      %p120 = scmp.eq.s32.totalorder %s19, 1
      %p121 = scmp.ne.s32.totalorder %s116, %s118
      %p122 = scmp.eq.s32.totalorder %s19, 0
      %p123 = por %p121, %p122
      %p124 = scmp.ne.s32.totalorder %s116, %s118
      %p125 = scmp.eq.s32.totalorder %s24, 1
      %p126 = por %p124, %p125
      %p127 = scmp.ne.s32.totalorder %s118, %s119
      %p128 = scmp.eq.s32.totalorder %s24, 0
      %p129 = por %p127, %p128
      %p130 = scmp.ne.s32.totalorder %s118, %s119
      %p131 = scmp.eq.s32.totalorder %s25, 1
      %p132 = por %p130, %p131
      %p134 = scmp.ne.s32.totalorder %s119, %s133
      %p135 = scmp.eq.s32.totalorder %s25, 0
      %p136 = por %p134, %p135
      %s138 = sadd.s32 %s137, 1
      %p141 = scmp.eq.s32.totalorder %s19, 1
      %p142 = scmp.ne.s32.totalorder %s137, %s139
      %p143 = scmp.eq.s32.totalorder %s19, 0
      %p144 = por %p142, %p143
      %p145 = scmp.ne.s32.totalorder %s137, %s139
      %p146 = scmp.eq.s32.totalorder %s24, 1
      %p147 = por %p145, %p146
      %p148 = scmp.ne.s32.totalorder %s139, %s140
      %p149 = scmp.eq.s32.totalorder %s24, 0
      %p150 = por %p148, %p149
      %p151 = scmp.ne.s32.totalorder %s139, %s140
      %p152 = scmp.eq.s32.totalorder %s25, 1
      %p153 = por %p151, %p152
      %p155 = scmp.ne.s32.totalorder %s140, %s154
      %p156 = scmp.eq.s32.totalorder %s25, 0
      %p157 = por %p155, %p156
      %s159 = sadd.s32 %s158, 1
      %p162 = scmp.eq.s32.totalorder %s19, 1
      %p163 = scmp.ne.s32.totalorder %s158, %s160
      %p164 = scmp.eq.s32.totalorder %s19, 0
      %p165 = por %p163, %p164
      %p166 = scmp.ne.s32.totalorder %s158, %s160
      %p167 = scmp.eq.s32.totalorder %s24, 1
      %p168 = por %p166, %p167
      %p169 = scmp.ne.s32.totalorder %s160, %s161
      %p170 = scmp.eq.s32.totalorder %s24, 0
      %p171 = por %p169, %p170
      %p172 = scmp.ne.s32.totalorder %s160, %s161
      %p173 = scmp.eq.s32.totalorder %s25, 1
      %p174 = por %p172, %p173
      %p176 = scmp.ne.s32.totalorder %s161, %s175
      %p177 = scmp.eq.s32.totalorder %s25, 0
      %p178 = por %p176, %p177
      %s180 = sadd.s32 %s179, 1
      %p183 = scmp.eq.s32.totalorder %s19, 1
      %p184 = scmp.ne.s32.totalorder %s179, %s181
      %p185 = scmp.eq.s32.totalorder %s19, 0
      %p186 = por %p184, %p185
      %p187 = scmp.ne.s32.totalorder %s179, %s181
      %p188 = scmp.eq.s32.totalorder %s24, 1
      %p189 = por %p187, %p188
      %p190 = scmp.ne.s32.totalorder %s181, %s182
      %p191 = scmp.eq.s32.totalorder %s24, 0
      %p192 = por %p190, %p191
      %p193 = scmp.ne.s32.totalorder %s181, %s182
      %p194 = scmp.eq.s32.totalorder %s25, 1
      %p195 = por %p193, %p194
      %p197 = scmp.ne.s32.totalorder %s182, %s196
      %p198 = scmp.eq.s32.totalorder %s25, 0
      %p199 = por %p197, %p198
      %s201 = sadd.s32 %s200, 1
      %p204 = scmp.eq.s32.totalorder %s19, 1
      %p205 = scmp.ne.s32.totalorder %s200, %s202
      %p206 = scmp.eq.s32.totalorder %s19, 0
      %p207 = por %p205, %p206
      %p208 = scmp.ne.s32.totalorder %s200, %s202
      %p209 = scmp.eq.s32.totalorder %s24, 1
      %p210 = por %p208, %p209
      %p211 = scmp.ne.s32.totalorder %s202, %s203
      %p212 = scmp.eq.s32.totalorder %s24, 0
      %p213 = por %p211, %p212
      %p214 = scmp.ne.s32.totalorder %s202, %s203
      %p215 = scmp.eq.s32.totalorder %s25, 1
      %p216 = por %p214, %p215
      %p218 = scmp.ne.s32.totalorder %s203, %s217
      %p219 = scmp.eq.s32.totalorder %s25, 0
      %p220 = por %p218, %p219
      %s221 = ssub.s32 %s19, %s26
      %p222 = scmp.eq.s32.totalorder %s221, 0
      %s224 = sadd.s32 %s223, 1
      %s225 = scalar_select %p222, %s223, %s224
      %p228 = pneg %p222
      %p229 = scmp.eq.s32.totalorder %s19, 1
      %p230 = por %p228, %p229
      %p231 = scmp.ne.s32.totalorder %s223, %s226
      %p232 = scmp.eq.s32.totalorder %s19, 0
      %p233 = por %p231, %p232
      %p234 = scmp.ne.s32.totalorder %s223, %s226
      %p235 = scmp.eq.s32.totalorder %s24, 1
      %p236 = por %p234, %p235
      %p237 = scmp.ne.s32.totalorder %s226, %s227
      %p238 = scmp.eq.s32.totalorder %s24, 0
      %p239 = por %p237, %p238
      %p240 = scmp.ne.s32.totalorder %s226, %s227
      %p241 = scmp.eq.s32.totalorder %s25, 1
      %p242 = por %p240, %p241
      %p244 = scmp.ne.s32.totalorder %s227, %s243
      %p245 = scmp.eq.s32.totalorder %s25, 0
      %p246 = por %p244, %p245
      %p247 = scmp.le.s32.totalorder 1, %s19
      %p248 = scmp.lt.s32.totalorder %s19, 3
      %p249 = pnand %p247, %p248
      %p250 = pneg %p249
      // Predicated region
      $region9: #{tpu_custom_call.1} parent=5 // pred_check
        _
      $region10: #{tpu_custom_call.1} parent=5 // pred_check_branch
        %252 = sbr.rel (%p249) target = $region12
      $region11: #{tpu_custom_call.1} parent=5 // pred_region
        %s253 = ssub.s32 %s19, 1
        // Predicated region
        $region13: #{tpu_custom_call.1} parent=11 // pred_check
          %p254 = pneg %p66
        $region14: #{tpu_custom_call.1} parent=11 // pred_check_branch
          %256 = sbr.rel (%p254) target = $region16
        $region15: #{tpu_custom_call.1} parent=11 // pred_region
          _
        $region16: #{tpu_custom_call.1} parent=11 // pred_fallthru
          _
        // Predicated region
        $region17: #{tpu_custom_call.1} parent=11 // pred_check
          %p257 = pneg %p87
        $region18: #{tpu_custom_call.1} parent=11 // pred_check_branch
          %259 = sbr.rel (%p257) target = $region20
        $region19: #{tpu_custom_call.1} parent=11 // pred_region
          _
        $region20: #{tpu_custom_call.1} parent=11 // pred_fallthru
          _
        // Predicated region
        $region21: #{tpu_custom_call.1} parent=11 // pred_check
          %p260 = pneg %p108
        $region22: #{tpu_custom_call.1} parent=11 // pred_check_branch
          %262 = sbr.rel (%p260) target = $region24
        $region23: #{tpu_custom_call.1} parent=11 // pred_region
          %s264 = ssub.s32 512, 512
          %265 = vsyncadd [#allocation3], %s264
          %s266 = sshll.u32 [#allocation2], 4
          %s267 = int_to_ptr.vmem [resolvable:$true] %s266
          %272 = dma.hbm_to_vmem [thread:$0]  %s3, 512, %s267, [#allocation3], 64, 64, 4
        $region24: #{tpu_custom_call.1} parent=11 // pred_fallthru
          _
        // Predicated region
        $region25: #{tpu_custom_call.1} parent=11 // pred_check
          %p273 = pneg %p129
        $region26: #{tpu_custom_call.1} parent=11 // pred_check_branch
          %275 = sbr.rel (%p273) target = $region28
        $region27: #{tpu_custom_call.1} parent=11 // pred_region
          _
        $region28: #{tpu_custom_call.1} parent=11 // pred_fallthru
          _
        // Predicated region
        $region29: #{tpu_custom_call.1} parent=11 // pred_check
          %p276 = pneg %p150
        $region30: #{tpu_custom_call.1} parent=11 // pred_check_branch
          %278 = sbr.rel (%p276) target = $region32
        $region31: #{tpu_custom_call.1} parent=11 // pred_region
          _
        $region32: #{tpu_custom_call.1} parent=11 // pred_fallthru
          _
        // Predicated region
        $region33: #{tpu_custom_call.1} parent=11 // pred_check
          %p279 = pneg %p171
        $region34: #{tpu_custom_call.1} parent=11 // pred_check_branch
          %281 = sbr.rel (%p279) target = $region36
        $region35: #{tpu_custom_call.1} parent=11 // pred_region
          _
        $region36: #{tpu_custom_call.1} parent=11 // pred_fallthru
          _
        // Predicated region
        $region37: #{tpu_custom_call.1} parent=11 // pred_check
          %p282 = pneg %p192
        $region38: #{tpu_custom_call.1} parent=11 // pred_check_branch
          %284 = sbr.rel (%p282) target = $region40
        $region39: #{tpu_custom_call.1} parent=11 // pred_region
          _
        $region40: #{tpu_custom_call.1} parent=11 // pred_fallthru
          _
        // Predicated region
        $region41: #{tpu_custom_call.1} parent=11 // pred_check
          %p285 = pneg %p213
        $region42: #{tpu_custom_call.1} parent=11 // pred_check_branch
          %287 = sbr.rel (%p285) target = $region44
        $region43: #{tpu_custom_call.1} parent=11 // pred_region
          _
        $region44: #{tpu_custom_call.1} parent=11 // pred_fallthru
          _
      $region12: #{tpu_custom_call.1} parent=5 // pred_fallthru
        _
      %p288 = scmp.lt.s32.totalorder %s19, 2
      // Predicated region
      $region45: #{tpu_custom_call.1} parent=5 // pred_check
        %p289 = pneg %p288
      $region46: #{tpu_custom_call.1} parent=5 // pred_check_branch
        %291 = sbr.rel (%p289) target = $region48
      $region47: #{tpu_custom_call.1} parent=5 // pred_region
        // Predicated region
        $region49: #{tpu_custom_call.1} parent=47 // pred_check
          %p292 = pneg %p39
        $region50: #{tpu_custom_call.1} parent=47 // pred_check_branch
          %294 = sbr.rel (%p292) target = $region52
        $region51: #{tpu_custom_call.1} parent=47 // pred_region
          %p295 = scmp.lt.s32.totalorder %s19, 1
          %s296 = scalar_select %p295, %s19, 1
          %s297 = smul.addr %s296, 4
          %s298 = smul.addr %s297, 8
          %s299 = scalar_lea.vmem %s0, %s298
        $region52: #{tpu_custom_call.1} parent=47 // pred_fallthru
          _
      $region48: #{tpu_custom_call.1} parent=5 // pred_fallthru
        _
      %p300 = scmp.le.s32.totalorder 1, %s19
      %p301 = scmp.lt.s32.totalorder %s19, 3
      %p302 = pnand %p300, %p301
      %p303 = pneg %p302
      // Predicated region
      $region53: #{tpu_custom_call.1} parent=5 // pred_check
        _
      $region54: #{tpu_custom_call.1} parent=5 // pred_check_branch
        %305 = sbr.rel (%p302) target = $region56
      $region55: #{tpu_custom_call.1} parent=5 // pred_region
        %s306 = ssub.s32 %s19, 1
        // Predicated region
        $region57: #{tpu_custom_call.1} parent=55 // pred_check
          %p307 = pneg %p108
        $region58: #{tpu_custom_call.1} parent=55 // pred_check_branch
          %309 = sbr.rel (%p307) target = $region60
        $region59: #{tpu_custom_call.1} parent=55 // pred_region
          %310 = dma.done [#allocation3], 512
        $region60: #{tpu_custom_call.1} parent=55 // pred_fallthru
          _
        %p311 = scmp.lt.s32.totalorder %s24, 1
        %s312 = scalar_select %p311, %s24, 1
        %s313 = smul.addr %s312, 4
        %s314 = smul.addr %s313, 8
        %s315 = scalar_lea.vmem %s0, %s314
        %p316 = pneg %p45
        %p317 = pneg %p42
        %p318 = pneg %p66
        %p319 = pneg %p63
        %p320 = pneg %p87
        %p321 = pneg %p84
        %p322 = pneg %p108
        %p323 = pneg %p105
        %p324 = pneg %p129
        %p325 = pneg %p126
        %p326 = pneg %p150
        %p327 = pneg %p147
        %p328 = pneg %p171
        %p329 = pneg %p168
        %p330 = pneg %p192
        %p331 = pneg %p189
        %p332 = pneg %p213
        %p333 = pneg %p210
        %p334 = pneg %p239
        %p335 = pneg %p236
        %s336 = sand.u32 %s226, 1
        %s337 = scalar_lea.sflag [#allocation4], %s336
        %s338 = sand.u32 %s226, 1
        %s339 = smul.addr %s338, 32
        %s340 = scalar_lea.vmem [#allocation5], %s339
        %p341 = scmp.lt.s32.totalorder %s24, 1
        %s342 = scalar_select %p341, %s24, 1
        %s343 = smul.addr %s342, 4
        %s344 = smul.addr %s343, 8
        %s345 = scalar_lea.vmem %s0, %s344
        %v346 = vld [vmem:[%s345] sm:$0xff]
        %v347 = vld [vmem:[%s345 + $0x8] sm:$0xff]
        %v348 = vld [vmem:[%s345 + $0x10] sm:$0xff]
        %v349 = vld [vmem:[%s345 + $0x18] sm:$0xff]
        %v350 = vld [vmem:[%s1] sm:$0xf]
        %v351 = vld [vmem:[%s1 + $0x4] sm:$0xf]
        %v352 = vld [vmem:[%s1 + $0x8] sm:$0xf]
        %v353 = vld [vmem:[%s1 + $0xc] sm:$0xf]
        %v354 = vld [vmem:[%s1 + $0x10] sm:$0xf]
        %v355 = vld [vmem:[%s1 + $0x14] sm:$0xf]
        %v356 = vld [vmem:[%s1 + $0x18] sm:$0xf]
        %v357 = vld [vmem:[%s1 + $0x1c] sm:$0xf]
        %v358 = vld [vmem:[%s4] sm:$0xf]
        %v359 = vld [vmem:[%s4 + $0x4] sm:$0xf]
        %v360 = vld [vmem:[%s4 + $0x8] sm:$0xf]
        %v361 = vld [vmem:[%s4 + $0xc] sm:$0xf]
        %v362 = vld [vmem:[%s4 + $0x10] sm:$0xf]
        %v363 = vld [vmem:[%s4 + $0x14] sm:$0xf]
        %v364 = vld [vmem:[%s4 + $0x18] sm:$0xf]
        %v365 = vld [vmem:[%s4 + $0x1c] sm:$0xf]
        %367 = vset.pattern.permute.xlu0 0
        %368 = vperm.xlu0 %367, %v358
        %v369 = vpop.permute.xlu0 %368
        %372 = vset.pattern.permute.xlu0 0
        %373 = vperm.xlu0 %372, %v359
        %v374 = vpop.permute.xlu0 %373
        %377 = vset.pattern.permute.xlu0 0
        %378 = vperm.xlu0 %377, %v360
        %v379 = vpop.permute.xlu0 %378
        %382 = vset.pattern.permute.xlu0 0
        %383 = vperm.xlu0 %382, %v361
        %v384 = vpop.permute.xlu0 %383
        %387 = vset.pattern.permute.xlu0 0
        %388 = vperm.xlu0 %387, %v362
        %v389 = vpop.permute.xlu0 %388
        %392 = vset.pattern.permute.xlu0 0
        %393 = vperm.xlu0 %392, %v363
        %v394 = vpop.permute.xlu0 %393
        %397 = vset.pattern.permute.xlu0 0
        %398 = vperm.xlu0 %397, %v364
        %v399 = vpop.permute.xlu0 %398
        %402 = vset.pattern.permute.xlu0 0
        %403 = vperm.xlu0 %402, %v365
        %v404 = vpop.permute.xlu0 %403
        %vm406 = vcmask 261120
        %v408 = vsel %vm406, %v350, 0
        %410 = vmatprep.subr.mxu0 0.0
        %411 = vmatpush1.msra.mxu0 %v346
        %412 = vmatprep.subr.mxu0 0.0
        %413 = vmatpush1.msra.mxu0 %v347
        %414 = vmatprep.subr.mxu0 0.0
        %415 = vmatpush1.msra.mxu0 %v348
        %416 = vmatprep.subr.mxu0 0.0
        %417 = vmatpush1.msra.mxu0 %v349
        %418 = vmatprep.subr.mxu0 0.0
        %419 = vmatpush1.msra.mxu0 0.0
        %420 = vmatprep.subr.mxu0 0.0
        %421 = vmatpush1.msra.mxu0 0.0
        %422 = vmatprep.subr.mxu0 0.0
        %423 = vmatpush1.msra.mxu0 0.0
        %424 = vmatprep.subr.mxu0 0.0
        %425 = vmatpush1.msra.mxu0 0.0
        %426 = vmatprep.subr.mxu0 0.0
        %427 = vmatpush1.msra.mxu0 0.0
        %428 = vmatprep.subr.mxu0 0.0
        %429 = vmatpush1.msra.mxu0 0.0
        %430 = vmatprep.subr.mxu0 0.0
        %431 = vmatpush1.msra.mxu0 0.0
        %432 = vmatprep.subr.mxu0 0.0
        %433 = vmatpush1.msra.mxu0 0.0
        %434 = vmatprep.subr.mxu0 0.0
        %435 = vmatpush1.msra.mxu0 0.0
        %436 = vmatprep.subr.mxu0 0.0
        %437 = vmatpush1.msra.mxu0 0.0
        %438 = vmatprep.subr.mxu0 0.0
        %439 = vmatpush1.msra.mxu0 0.0
        %440 = vmatprep.subr.mxu0 0.0
        %441 = vmatpush1.msra.mxu0 0.0
        %442 = vmatprep.subr.mxu0 0.0
        %443 = vmatpush1.msra.mxu0 0.0
        %444 = vmatprep.subr.mxu0 0.0
        %445 = vmatpush1.msra.mxu0 0.0
        %446 = vmatprep.subr.mxu0 0.0
        %447 = vmatpush1.msra.mxu0 0.0
        %448 = vmatprep.subr.mxu0 0.0
        %449 = vmatpush1.msra.mxu0 0.0
        %450 = vmatprep.subr.mxu0 0.0
        %451 = vmatpush1.msra.mxu0 0.0
        %452 = vmatprep.subr.mxu0 0.0
        %453 = vmatpush1.msra.mxu0 0.0
        %454 = vmatprep.subr.mxu0 0.0
        %455 = vmatpush1.msra.mxu0 0.0
        %456 = vmatprep.subr.mxu0 0.0
        %457 = vmatpush1.msra.mxu0 0.0
        %458 = vmatprep.subr.mxu0 0.0
        %459 = vmatpush1.msra.mxu0 0.0
        %460 = vmatprep.subr.mxu0 0.0
        %461 = vmatpush1.msra.mxu0 0.0
        %462 = vmatprep.subr.mxu0 0.0
        %463 = vmatpush1.msra.mxu0 0.0
        %464 = vmatprep.subr.mxu0 0.0
        %465 = vmatpush1.msra.mxu0 0.0
        %466 = vmatprep.subr.mxu0 0.0
        %467 = vmatpush1.msra.mxu0 0.0
        %468 = vmatprep.subr.mxu0 0.0
        %469 = vmatpush1.msra.mxu0 0.0
        %470 = vmatprep.subr.mxu0 0.0
        %471 = vmatpush1.msra.mxu0 0.0
        %472 = vmatprep.subr.mxu0 0.0
        %473 = vmatpush1.msra.mxu0 0.0
        %474 = vmatprep.mubr.f32.mxu0 0.0
        %475 = vmatmul.mubr.f32.gmra.mrb[0].mxu0 %v408
        %v476 = vpop.f32.mrb[0].mxu0
        %v477 = vadd.f32 %v369, %v476
        %v478 = vpop.f32.mrb[0].mxu0
        %479 = vdwg.mxu0
        %v481 = vsel %vm406, %v351, 0
        %483 = vmatprep.subr.mxu0 0.0
        %484 = vmatpush1.msra.mxu0 %v346
        %485 = vmatprep.subr.mxu0 0.0
        %486 = vmatpush1.msra.mxu0 %v347
        %487 = vmatprep.subr.mxu0 0.0
        %488 = vmatpush1.msra.mxu0 %v348
        %489 = vmatprep.subr.mxu0 0.0
        %490 = vmatpush1.msra.mxu0 %v349
        %491 = vmatprep.subr.mxu0 0.0
        %492 = vmatpush1.msra.mxu0 0.0
        %493 = vmatprep.subr.mxu0 0.0
        %494 = vmatpush1.msra.mxu0 0.0
        %495 = vmatprep.subr.mxu0 0.0
        %496 = vmatpush1.msra.mxu0 0.0
        %497 = vmatprep.subr.mxu0 0.0
        %498 = vmatpush1.msra.mxu0 0.0
        %499 = vmatprep.subr.mxu0 0.0
        %500 = vmatpush1.msra.mxu0 0.0
        %501 = vmatprep.subr.mxu0 0.0
        %502 = vmatpush1.msra.mxu0 0.0
        %503 = vmatprep.subr.mxu0 0.0
        %504 = vmatpush1.msra.mxu0 0.0
        %505 = vmatprep.subr.mxu0 0.0
        %506 = vmatpush1.msra.mxu0 0.0
        %507 = vmatprep.subr.mxu0 0.0
        %508 = vmatpush1.msra.mxu0 0.0
        %509 = vmatprep.subr.mxu0 0.0
        %510 = vmatpush1.msra.mxu0 0.0
        %511 = vmatprep.subr.mxu0 0.0
        %512 = vmatpush1.msra.mxu0 0.0
        %513 = vmatprep.subr.mxu0 0.0
        %514 = vmatpush1.msra.mxu0 0.0
        %515 = vmatprep.subr.mxu0 0.0
        %516 = vmatpush1.msra.mxu0 0.0
        %517 = vmatprep.subr.mxu0 0.0
        %518 = vmatpush1.msra.mxu0 0.0
        %519 = vmatprep.subr.mxu0 0.0
        %520 = vmatpush1.msra.mxu0 0.0
        %521 = vmatprep.subr.mxu0 0.0
        %522 = vmatpush1.msra.mxu0 0.0
        %523 = vmatprep.subr.mxu0 0.0
        %524 = vmatpush1.msra.mxu0 0.0
        %525 = vmatprep.subr.mxu0 0.0
        %526 = vmatpush1.msra.mxu0 0.0
        %527 = vmatprep.subr.mxu0 0.0
        %528 = vmatpush1.msra.mxu0 0.0
        %529 = vmatprep.subr.mxu0 0.0
        %530 = vmatpush1.msra.mxu0 0.0
        %531 = vmatprep.subr.mxu0 0.0
        %532 = vmatpush1.msra.mxu0 0.0
        %533 = vmatprep.subr.mxu0 0.0
        %534 = vmatpush1.msra.mxu0 0.0
        %535 = vmatprep.subr.mxu0 0.0
        %536 = vmatpush1.msra.mxu0 0.0
        %537 = vmatprep.subr.mxu0 0.0
        %538 = vmatpush1.msra.mxu0 0.0
        %539 = vmatprep.subr.mxu0 0.0
        %540 = vmatpush1.msra.mxu0 0.0
        %541 = vmatprep.subr.mxu0 0.0
        %542 = vmatpush1.msra.mxu0 0.0
        %543 = vmatprep.subr.mxu0 0.0
        %544 = vmatpush1.msra.mxu0 0.0
        %545 = vmatprep.subr.mxu0 0.0
        %546 = vmatpush1.msra.mxu0 0.0
        %547 = vmatprep.mubr.f32.mxu0 0.0
        %548 = vmatmul.mubr.f32.gmra.mrb[0].mxu0 %v481
        %v549 = vpop.f32.mrb[0].mxu0
        %v550 = vadd.f32 %v374, %v549
        %v551 = vpop.f32.mrb[0].mxu0
        %552 = vdwg.mxu0
        %v554 = vsel %vm406, %v352, 0
        %556 = vmatprep.subr.mxu0 0.0
        %557 = vmatpush1.msra.mxu0 %v346
        %558 = vmatprep.subr.mxu0 0.0
        %559 = vmatpush1.msra.mxu0 %v347
        %560 = vmatprep.subr.mxu0 0.0
        %561 = vmatpush1.msra.mxu0 %v348
        %562 = vmatprep.subr.mxu0 0.0
        %563 = vmatpush1.msra.mxu0 %v349
        %564 = vmatprep.subr.mxu0 0.0
        %565 = vmatpush1.msra.mxu0 0.0
        %566 = vmatprep.subr.mxu0 0.0
        %567 = vmatpush1.msra.mxu0 0.0
        %568 = vmatprep.subr.mxu0 0.0
        %569 = vmatpush1.msra.mxu0 0.0
        %570 = vmatprep.subr.mxu0 0.0
        %571 = vmatpush1.msra.mxu0 0.0
        %572 = vmatprep.subr.mxu0 0.0
        %573 = vmatpush1.msra.mxu0 0.0
        %574 = vmatprep.subr.mxu0 0.0
        %575 = vmatpush1.msra.mxu0 0.0
        %576 = vmatprep.subr.mxu0 0.0
        %577 = vmatpush1.msra.mxu0 0.0
        %578 = vmatprep.subr.mxu0 0.0
        %579 = vmatpush1.msra.mxu0 0.0
        %580 = vmatprep.subr.mxu0 0.0
        %581 = vmatpush1.msra.mxu0 0.0
        %582 = vmatprep.subr.mxu0 0.0
        %583 = vmatpush1.msra.mxu0 0.0
        %584 = vmatprep.subr.mxu0 0.0
        %585 = vmatpush1.msra.mxu0 0.0
        %586 = vmatprep.subr.mxu0 0.0
        %587 = vmatpush1.msra.mxu0 0.0
        %588 = vmatprep.subr.mxu0 0.0
        %589 = vmatpush1.msra.mxu0 0.0
        %590 = vmatprep.subr.mxu0 0.0
        %591 = vmatpush1.msra.mxu0 0.0
        %592 = vmatprep.subr.mxu0 0.0
        %593 = vmatpush1.msra.mxu0 0.0
        %594 = vmatprep.subr.mxu0 0.0
        %595 = vmatpush1.msra.mxu0 0.0
        %596 = vmatprep.subr.mxu0 0.0
        %597 = vmatpush1.msra.mxu0 0.0
        %598 = vmatprep.subr.mxu0 0.0
        %599 = vmatpush1.msra.mxu0 0.0
        %600 = vmatprep.subr.mxu0 0.0
        %601 = vmatpush1.msra.mxu0 0.0
        %602 = vmatprep.subr.mxu0 0.0
        %603 = vmatpush1.msra.mxu0 0.0
        %604 = vmatprep.subr.mxu0 0.0
        %605 = vmatpush1.msra.mxu0 0.0
        %606 = vmatprep.subr.mxu0 0.0
        %607 = vmatpush1.msra.mxu0 0.0
        %608 = vmatprep.subr.mxu0 0.0
        %609 = vmatpush1.msra.mxu0 0.0
        %610 = vmatprep.subr.mxu0 0.0
        %611 = vmatpush1.msra.mxu0 0.0
        %612 = vmatprep.subr.mxu0 0.0
        %613 = vmatpush1.msra.mxu0 0.0
        %614 = vmatprep.subr.mxu0 0.0
        %615 = vmatpush1.msra.mxu0 0.0
        %616 = vmatprep.subr.mxu0 0.0
        %617 = vmatpush1.msra.mxu0 0.0
        %618 = vmatprep.subr.mxu0 0.0
        %619 = vmatpush1.msra.mxu0 0.0
        %620 = vmatprep.mubr.f32.mxu0 0.0
        %621 = vmatmul.mubr.f32.gmra.mrb[0].mxu0 %v554
        %v622 = vpop.f32.mrb[0].mxu0
        %v623 = vadd.f32 %v379, %v622
        %v624 = vpop.f32.mrb[0].mxu0
        %625 = vdwg.mxu0
        %v627 = vsel %vm406, %v353, 0
        %629 = vmatprep.subr.mxu0 0.0
        %630 = vmatpush1.msra.mxu0 %v346
        %631 = vmatprep.subr.mxu0 0.0
        %632 = vmatpush1.msra.mxu0 %v347
        %633 = vmatprep.subr.mxu0 0.0
        %634 = vmatpush1.msra.mxu0 %v348
        %635 = vmatprep.subr.mxu0 0.0
        %636 = vmatpush1.msra.mxu0 %v349
        %637 = vmatprep.subr.mxu0 0.0
        %638 = vmatpush1.msra.mxu0 0.0
        %639 = vmatprep.subr.mxu0 0.0
        %640 = vmatpush1.msra.mxu0 0.0
        %641 = vmatprep.subr.mxu0 0.0
        %642 = vmatpush1.msra.mxu0 0.0
        %643 = vmatprep.subr.mxu0 0.0
        %644 = vmatpush1.msra.mxu0 0.0
        %645 = vmatprep.subr.mxu0 0.0
        %646 = vmatpush1.msra.mxu0 0.0
        %647 = vmatprep.subr.mxu0 0.0
        %648 = vmatpush1.msra.mxu0 0.0
        %649 = vmatprep.subr.mxu0 0.0
        %650 = vmatpush1.msra.mxu0 0.0
        %651 = vmatprep.subr.mxu0 0.0
        %652 = vmatpush1.msra.mxu0 0.0
        %653 = vmatprep.subr.mxu0 0.0
        %654 = vmatpush1.msra.mxu0 0.0
        %655 = vmatprep.subr.mxu0 0.0
        %656 = vmatpush1.msra.mxu0 0.0
        %657 = vmatprep.subr.mxu0 0.0
        %658 = vmatpush1.msra.mxu0 0.0
        %659 = vmatprep.subr.mxu0 0.0
        %660 = vmatpush1.msra.mxu0 0.0
        %661 = vmatprep.subr.mxu0 0.0
        %662 = vmatpush1.msra.mxu0 0.0
        %663 = vmatprep.subr.mxu0 0.0
        %664 = vmatpush1.msra.mxu0 0.0
        %665 = vmatprep.subr.mxu0 0.0
        %666 = vmatpush1.msra.mxu0 0.0
        %667 = vmatprep.subr.mxu0 0.0
        %668 = vmatpush1.msra.mxu0 0.0
        %669 = vmatprep.subr.mxu0 0.0
        %670 = vmatpush1.msra.mxu0 0.0
        %671 = vmatprep.subr.mxu0 0.0
        %672 = vmatpush1.msra.mxu0 0.0
        %673 = vmatprep.subr.mxu0 0.0
        %674 = vmatpush1.msra.mxu0 0.0
        %675 = vmatprep.subr.mxu0 0.0
        %676 = vmatpush1.msra.mxu0 0.0
        %677 = vmatprep.subr.mxu0 0.0
        %678 = vmatpush1.msra.mxu0 0.0
        %679 = vmatprep.subr.mxu0 0.0
        %680 = vmatpush1.msra.mxu0 0.0
        %681 = vmatprep.subr.mxu0 0.0
        %682 = vmatpush1.msra.mxu0 0.0
        %683 = vmatprep.subr.mxu0 0.0
        %684 = vmatpush1.msra.mxu0 0.0
        %685 = vmatprep.subr.mxu0 0.0
        %686 = vmatpush1.msra.mxu0 0.0
        %687 = vmatprep.subr.mxu0 0.0
        %688 = vmatpush1.msra.mxu0 0.0
        %689 = vmatprep.subr.mxu0 0.0
        %690 = vmatpush1.msra.mxu0 0.0
        %691 = vmatprep.subr.mxu0 0.0
        %692 = vmatpush1.msra.mxu0 0.0
        %693 = vmatprep.mubr.f32.mxu0 0.0
        %694 = vmatmul.mubr.f32.gmra.mrb[0].mxu0 %v627
        %v695 = vpop.f32.mrb[0].mxu0
        %v696 = vadd.f32 %v384, %v695
        %v697 = vpop.f32.mrb[0].mxu0
        %698 = vdwg.mxu0
        %v700 = vsel %vm406, %v354, 0
        %702 = vmatprep.subr.mxu0 0.0
        %703 = vmatpush1.msra.mxu0 %v346
        %704 = vmatprep.subr.mxu0 0.0
        %705 = vmatpush1.msra.mxu0 %v347
        %706 = vmatprep.subr.mxu0 0.0
        %707 = vmatpush1.msra.mxu0 %v348
        %708 = vmatprep.subr.mxu0 0.0
        %709 = vmatpush1.msra.mxu0 %v349
        %710 = vmatprep.subr.mxu0 0.0
        %711 = vmatpush1.msra.mxu0 0.0
        %712 = vmatprep.subr.mxu0 0.0
        %713 = vmatpush1.msra.mxu0 0.0
        %714 = vmatprep.subr.mxu0 0.0
        %715 = vmatpush1.msra.mxu0 0.0
        %716 = vmatprep.subr.mxu0 0.0
        %717 = vmatpush1.msra.mxu0 0.0
        %718 = vmatprep.subr.mxu0 0.0
        %719 = vmatpush1.msra.mxu0 0.0
        %720 = vmatprep.subr.mxu0 0.0
        %721 = vmatpush1.msra.mxu0 0.0
        %722 = vmatprep.subr.mxu0 0.0
        %723 = vmatpush1.msra.mxu0 0.0
        %724 = vmatprep.subr.mxu0 0.0
        %725 = vmatpush1.msra.mxu0 0.0
        %726 = vmatprep.subr.mxu0 0.0
        %727 = vmatpush1.msra.mxu0 0.0
        %728 = vmatprep.subr.mxu0 0.0
        %729 = vmatpush1.msra.mxu0 0.0
        %730 = vmatprep.subr.mxu0 0.0
        %731 = vmatpush1.msra.mxu0 0.0
        %732 = vmatprep.subr.mxu0 0.0
        %733 = vmatpush1.msra.mxu0 0.0
        %734 = vmatprep.subr.mxu0 0.0
        %735 = vmatpush1.msra.mxu0 0.0
        %736 = vmatprep.subr.mxu0 0.0
        %737 = vmatpush1.msra.mxu0 0.0
        %738 = vmatprep.subr.mxu0 0.0
        %739 = vmatpush1.msra.mxu0 0.0
        %740 = vmatprep.subr.mxu0 0.0
        %741 = vmatpush1.msra.mxu0 0.0
        %742 = vmatprep.subr.mxu0 0.0
        %743 = vmatpush1.msra.mxu0 0.0
        %744 = vmatprep.subr.mxu0 0.0
        %745 = vmatpush1.msra.mxu0 0.0
        %746 = vmatprep.subr.mxu0 0.0
        %747 = vmatpush1.msra.mxu0 0.0
        %748 = vmatprep.subr.mxu0 0.0
        %749 = vmatpush1.msra.mxu0 0.0
        %750 = vmatprep.subr.mxu0 0.0
        %751 = vmatpush1.msra.mxu0 0.0
        %752 = vmatprep.subr.mxu0 0.0
        %753 = vmatpush1.msra.mxu0 0.0
        %754 = vmatprep.subr.mxu0 0.0
        %755 = vmatpush1.msra.mxu0 0.0
        %756 = vmatprep.subr.mxu0 0.0
        %757 = vmatpush1.msra.mxu0 0.0
        %758 = vmatprep.subr.mxu0 0.0
        %759 = vmatpush1.msra.mxu0 0.0
        %760 = vmatprep.subr.mxu0 0.0
        %761 = vmatpush1.msra.mxu0 0.0
        %762 = vmatprep.subr.mxu0 0.0
        %763 = vmatpush1.msra.mxu0 0.0
        %764 = vmatprep.subr.mxu0 0.0
        %765 = vmatpush1.msra.mxu0 0.0
        %766 = vmatprep.mubr.f32.mxu0 0.0
        %767 = vmatmul.mubr.f32.gmra.mrb[0].mxu0 %v700
        %v768 = vpop.f32.mrb[0].mxu0
        %v769 = vadd.f32 %v389, %v768
        %v770 = vpop.f32.mrb[0].mxu0
        %771 = vdwg.mxu0
        %v773 = vsel %vm406, %v355, 0
        %775 = vmatprep.subr.mxu0 0.0
        %776 = vmatpush1.msra.mxu0 %v346
        %777 = vmatprep.subr.mxu0 0.0
        %778 = vmatpush1.msra.mxu0 %v347
        %779 = vmatprep.subr.mxu0 0.0
        %780 = vmatpush1.msra.mxu0 %v348
        %781 = vmatprep.subr.mxu0 0.0
        %782 = vmatpush1.msra.mxu0 %v349
        %783 = vmatprep.subr.mxu0 0.0
        %784 = vmatpush1.msra.mxu0 0.0
        %785 = vmatprep.subr.mxu0 0.0
        %786 = vmatpush1.msra.mxu0 0.0
        %787 = vmatprep.subr.mxu0 0.0
        %788 = vmatpush1.msra.mxu0 0.0
        %789 = vmatprep.subr.mxu0 0.0
        %790 = vmatpush1.msra.mxu0 0.0
        %791 = vmatprep.subr.mxu0 0.0
        %792 = vmatpush1.msra.mxu0 0.0
        %793 = vmatprep.subr.mxu0 0.0
        %794 = vmatpush1.msra.mxu0 0.0
        %795 = vmatprep.subr.mxu0 0.0
        %796 = vmatpush1.msra.mxu0 0.0
        %797 = vmatprep.subr.mxu0 0.0
        %798 = vmatpush1.msra.mxu0 0.0
        %799 = vmatprep.subr.mxu0 0.0
        %800 = vmatpush1.msra.mxu0 0.0
        %801 = vmatprep.subr.mxu0 0.0
        %802 = vmatpush1.msra.mxu0 0.0
        %803 = vmatprep.subr.mxu0 0.0
        %804 = vmatpush1.msra.mxu0 0.0
        %805 = vmatprep.subr.mxu0 0.0
        %806 = vmatpush1.msra.mxu0 0.0
        %807 = vmatprep.subr.mxu0 0.0
        %808 = vmatpush1.msra.mxu0 0.0
        %809 = vmatprep.subr.mxu0 0.0
        %810 = vmatpush1.msra.mxu0 0.0
        %811 = vmatprep.subr.mxu0 0.0
        %812 = vmatpush1.msra.mxu0 0.0
        %813 = vmatprep.subr.mxu0 0.0
        %814 = vmatpush1.msra.mxu0 0.0
        %815 = vmatprep.subr.mxu0 0.0
        %816 = vmatpush1.msra.mxu0 0.0
        %817 = vmatprep.subr.mxu0 0.0
        %818 = vmatpush1.msra.mxu0 0.0
        %819 = vmatprep.subr.mxu0 0.0
        %820 = vmatpush1.msra.mxu0 0.0
        %821 = vmatprep.subr.mxu0 0.0
        %822 = vmatpush1.msra.mxu0 0.0
        %823 = vmatprep.subr.mxu0 0.0
        %824 = vmatpush1.msra.mxu0 0.0
        %825 = vmatprep.subr.mxu0 0.0
        %826 = vmatpush1.msra.mxu0 0.0
        %827 = vmatprep.subr.mxu0 0.0
        %828 = vmatpush1.msra.mxu0 0.0
        %829 = vmatprep.subr.mxu0 0.0
        %830 = vmatpush1.msra.mxu0 0.0
        %831 = vmatprep.subr.mxu0 0.0
        %832 = vmatpush1.msra.mxu0 0.0
        %833 = vmatprep.subr.mxu0 0.0
        %834 = vmatpush1.msra.mxu0 0.0
        %835 = vmatprep.subr.mxu0 0.0
        %836 = vmatpush1.msra.mxu0 0.0
        %837 = vmatprep.subr.mxu0 0.0
        %838 = vmatpush1.msra.mxu0 0.0
        %839 = vmatprep.mubr.f32.mxu0 0.0
        %840 = vmatmul.mubr.f32.gmra.mrb[0].mxu0 %v773
        %v841 = vpop.f32.mrb[0].mxu0
        %v842 = vadd.f32 %v394, %v841
        %v843 = vpop.f32.mrb[0].mxu0
        %844 = vdwg.mxu0
        %v846 = vsel %vm406, %v356, 0
        %848 = vmatprep.subr.mxu0 0.0
        %849 = vmatpush1.msra.mxu0 %v346
        %850 = vmatprep.subr.mxu0 0.0
        %851 = vmatpush1.msra.mxu0 %v347
        %852 = vmatprep.subr.mxu0 0.0
        %853 = vmatpush1.msra.mxu0 %v348
        %854 = vmatprep.subr.mxu0 0.0
        %855 = vmatpush1.msra.mxu0 %v349
        %856 = vmatprep.subr.mxu0 0.0
        %857 = vmatpush1.msra.mxu0 0.0
        %858 = vmatprep.subr.mxu0 0.0
        %859 = vmatpush1.msra.mxu0 0.0
        %860 = vmatprep.subr.mxu0 0.0
        %861 = vmatpush1.msra.mxu0 0.0
        %862 = vmatprep.subr.mxu0 0.0
        %863 = vmatpush1.msra.mxu0 0.0
        %864 = vmatprep.subr.mxu0 0.0
        %865 = vmatpush1.msra.mxu0 0.0
        %866 = vmatprep.subr.mxu0 0.0
        %867 = vmatpush1.msra.mxu0 0.0
        %868 = vmatprep.subr.mxu0 0.0
        %869 = vmatpush1.msra.mxu0 0.0
        %870 = vmatprep.subr.mxu0 0.0
        %871 = vmatpush1.msra.mxu0 0.0
        %872 = vmatprep.subr.mxu0 0.0
        %873 = vmatpush1.msra.mxu0 0.0
        %874 = vmatprep.subr.mxu0 0.0
        %875 = vmatpush1.msra.mxu0 0.0
        %876 = vmatprep.subr.mxu0 0.0
        %877 = vmatpush1.msra.mxu0 0.0
        %878 = vmatprep.subr.mxu0 0.0
        %879 = vmatpush1.msra.mxu0 0.0
        %880 = vmatprep.subr.mxu0 0.0
        %881 = vmatpush1.msra.mxu0 0.0
        %882 = vmatprep.subr.mxu0 0.0
        %883 = vmatpush1.msra.mxu0 0.0
        %884 = vmatprep.subr.mxu0 0.0
        %885 = vmatpush1.msra.mxu0 0.0
        %886 = vmatprep.subr.mxu0 0.0
        %887 = vmatpush1.msra.mxu0 0.0
        %888 = vmatprep.subr.mxu0 0.0
        %889 = vmatpush1.msra.mxu0 0.0
        %890 = vmatprep.subr.mxu0 0.0
        %891 = vmatpush1.msra.mxu0 0.0
        %892 = vmatprep.subr.mxu0 0.0
        %893 = vmatpush1.msra.mxu0 0.0
        %894 = vmatprep.subr.mxu0 0.0
        %895 = vmatpush1.msra.mxu0 0.0
        %896 = vmatprep.subr.mxu0 0.0
        %897 = vmatpush1.msra.mxu0 0.0
        %898 = vmatprep.subr.mxu0 0.0
        %899 = vmatpush1.msra.mxu0 0.0
        %900 = vmatprep.subr.mxu0 0.0
        %901 = vmatpush1.msra.mxu0 0.0
        %902 = vmatprep.subr.mxu0 0.0
        %903 = vmatpush1.msra.mxu0 0.0
        %904 = vmatprep.subr.mxu0 0.0
        %905 = vmatpush1.msra.mxu0 0.0
        %906 = vmatprep.subr.mxu0 0.0
        %907 = vmatpush1.msra.mxu0 0.0
        %908 = vmatprep.subr.mxu0 0.0
        %909 = vmatpush1.msra.mxu0 0.0
        %910 = vmatprep.subr.mxu0 0.0
        %911 = vmatpush1.msra.mxu0 0.0
        %912 = vmatprep.mubr.f32.mxu0 0.0
        %913 = vmatmul.mubr.f32.gmra.mrb[0].mxu0 %v846
        %v914 = vpop.f32.mrb[0].mxu0
        %v915 = vadd.f32 %v399, %v914
        %v916 = vpop.f32.mrb[0].mxu0
        %917 = vdwg.mxu0
        %v919 = vsel %vm406, %v357, 0
        %921 = vmatprep.subr.mxu0 0.0
        %922 = vmatpush1.msra.mxu0 %v346
        %923 = vmatprep.subr.mxu0 0.0
        %924 = vmatpush1.msra.mxu0 %v347
        %925 = vmatprep.subr.mxu0 0.0
        %926 = vmatpush1.msra.mxu0 %v348
        %927 = vmatprep.subr.mxu0 0.0
        %928 = vmatpush1.msra.mxu0 %v349
        %929 = vmatprep.subr.mxu0 0.0
        %930 = vmatpush1.msra.mxu0 0.0
        %931 = vmatprep.subr.mxu0 0.0
        %932 = vmatpush1.msra.mxu0 0.0
        %933 = vmatprep.subr.mxu0 0.0
        %934 = vmatpush1.msra.mxu0 0.0
        %935 = vmatprep.subr.mxu0 0.0
        %936 = vmatpush1.msra.mxu0 0.0
        %937 = vmatprep.subr.mxu0 0.0
        %938 = vmatpush1.msra.mxu0 0.0
        %939 = vmatprep.subr.mxu0 0.0
        %940 = vmatpush1.msra.mxu0 0.0
        %941 = vmatprep.subr.mxu0 0.0
        %942 = vmatpush1.msra.mxu0 0.0
        %943 = vmatprep.subr.mxu0 0.0
        %944 = vmatpush1.msra.mxu0 0.0
        %945 = vmatprep.subr.mxu0 0.0
        %946 = vmatpush1.msra.mxu0 0.0
        %947 = vmatprep.subr.mxu0 0.0
        %948 = vmatpush1.msra.mxu0 0.0
        %949 = vmatprep.subr.mxu0 0.0
        %950 = vmatpush1.msra.mxu0 0.0
        %951 = vmatprep.subr.mxu0 0.0
        %952 = vmatpush1.msra.mxu0 0.0
        %953 = vmatprep.subr.mxu0 0.0
        %954 = vmatpush1.msra.mxu0 0.0
        %955 = vmatprep.subr.mxu0 0.0
        %956 = vmatpush1.msra.mxu0 0.0
        %957 = vmatprep.subr.mxu0 0.0
        %958 = vmatpush1.msra.mxu0 0.0
        %959 = vmatprep.subr.mxu0 0.0
        %960 = vmatpush1.msra.mxu0 0.0
        %961 = vmatprep.subr.mxu0 0.0
        %962 = vmatpush1.msra.mxu0 0.0
        %963 = vmatprep.subr.mxu0 0.0
        %964 = vmatpush1.msra.mxu0 0.0
        %965 = vmatprep.subr.mxu0 0.0
        %966 = vmatpush1.msra.mxu0 0.0
        %967 = vmatprep.subr.mxu0 0.0
        %968 = vmatpush1.msra.mxu0 0.0
        %969 = vmatprep.subr.mxu0 0.0
        %970 = vmatpush1.msra.mxu0 0.0
        %971 = vmatprep.subr.mxu0 0.0
        %972 = vmatpush1.msra.mxu0 0.0
        %973 = vmatprep.subr.mxu0 0.0
        %974 = vmatpush1.msra.mxu0 0.0
        %975 = vmatprep.subr.mxu0 0.0
        %976 = vmatpush1.msra.mxu0 0.0
        %977 = vmatprep.subr.mxu0 0.0
        %978 = vmatpush1.msra.mxu0 0.0
        %979 = vmatprep.subr.mxu0 0.0
        %980 = vmatpush1.msra.mxu0 0.0
        %981 = vmatprep.subr.mxu0 0.0
        %982 = vmatpush1.msra.mxu0 0.0
        %983 = vmatprep.subr.mxu0 0.0
        %984 = vmatpush1.msra.mxu0 0.0
        %985 = vmatprep.mubr.f32.mxu0 0.0
        %986 = vmatmul.mubr.f32.gmra.mrb[0].mxu0 %v919
        %v987 = vpop.f32.mrb[0].mxu0
        %v988 = vadd.f32 %v404, %v987
        %v989 = vpop.f32.mrb[0].mxu0
        %990 = vdwg.mxu0
        %v991 = vmul.f32 %v477, 0.5
        %v992 = vmul.f32 %v550, 0.5
        %v993 = vmul.f32 %v623, 0.5
        %v994 = vmul.f32 %v696, 0.5
        %v995 = vmul.f32 %v769, 0.5
        %v996 = vmul.f32 %v842, 0.5
        %v997 = vmul.f32 %v915, 0.5
        %v998 = vmul.f32 %v988, 0.5
        %v999 = vld [vmem:[%s2] sm:$0xf]
        %v1000 = vld [vmem:[%s2 + $0x4] sm:$0xf]
        %v1001 = vld [vmem:[%s2 + $0x8] sm:$0xf]
        %v1002 = vld [vmem:[%s2 + $0xc] sm:$0xf]
        %v1003 = vld [vmem:[%s2 + $0x10] sm:$0xf]
        %v1004 = vld [vmem:[%s2 + $0x14] sm:$0xf]
        %v1005 = vld [vmem:[%s2 + $0x18] sm:$0xf]
        %v1006 = vld [vmem:[%s2 + $0x1c] sm:$0xf]
        %v1007 = vld [vmem:[%s5] sm:$0xf]
        %v1008 = vld [vmem:[%s5 + $0x4] sm:$0xf]
        %v1009 = vld [vmem:[%s5 + $0x8] sm:$0xf]
        %v1010 = vld [vmem:[%s5 + $0xc] sm:$0xf]
        %v1011 = vld [vmem:[%s5 + $0x10] sm:$0xf]
        %v1012 = vld [vmem:[%s5 + $0x14] sm:$0xf]
        %v1013 = vld [vmem:[%s5 + $0x18] sm:$0xf]
        %v1014 = vld [vmem:[%s5 + $0x1c] sm:$0xf]
        %1016 = vset.pattern.permute.xlu0 0
        %1017 = vperm.xlu0 %1016, %v1007
        %v1018 = vpop.permute.xlu0 %1017
        %1021 = vset.pattern.permute.xlu0 0
        %1022 = vperm.xlu0 %1021, %v1008
        %v1023 = vpop.permute.xlu0 %1022
        %1026 = vset.pattern.permute.xlu0 0
        %1027 = vperm.xlu0 %1026, %v1009
        %v1028 = vpop.permute.xlu0 %1027
        %1031 = vset.pattern.permute.xlu0 0
        %1032 = vperm.xlu0 %1031, %v1010
        %v1033 = vpop.permute.xlu0 %1032
        %1036 = vset.pattern.permute.xlu0 0
        %1037 = vperm.xlu0 %1036, %v1011
        %v1038 = vpop.permute.xlu0 %1037
        %1041 = vset.pattern.permute.xlu0 0
        %1042 = vperm.xlu0 %1041, %v1012
        %v1043 = vpop.permute.xlu0 %1042
        %1046 = vset.pattern.permute.xlu0 0
        %1047 = vperm.xlu0 %1046, %v1013
        %v1048 = vpop.permute.xlu0 %1047
        %1051 = vset.pattern.permute.xlu0 0
        %1052 = vperm.xlu0 %1051, %v1014
        %v1053 = vpop.permute.xlu0 %1052
        %v1056 = vsel %vm406, %v999, 0
        %1058 = vmatprep.subr.mxu0 0.0
        %1059 = vmatpush1.msra.mxu0 %v346
        %1060 = vmatprep.subr.mxu0 0.0
        %1061 = vmatpush1.msra.mxu0 %v347
        %1062 = vmatprep.subr.mxu0 0.0
        %1063 = vmatpush1.msra.mxu0 %v348
        %1064 = vmatprep.subr.mxu0 0.0
        %1065 = vmatpush1.msra.mxu0 %v349
        %1066 = vmatprep.subr.mxu0 0.0
        %1067 = vmatpush1.msra.mxu0 0.0
        %1068 = vmatprep.subr.mxu0 0.0
        %1069 = vmatpush1.msra.mxu0 0.0
        %1070 = vmatprep.subr.mxu0 0.0
        %1071 = vmatpush1.msra.mxu0 0.0
        %1072 = vmatprep.subr.mxu0 0.0
        %1073 = vmatpush1.msra.mxu0 0.0
        %1074 = vmatprep.subr.mxu0 0.0
        %1075 = vmatpush1.msra.mxu0 0.0
        %1076 = vmatprep.subr.mxu0 0.0
        %1077 = vmatpush1.msra.mxu0 0.0
        %1078 = vmatprep.subr.mxu0 0.0
        %1079 = vmatpush1.msra.mxu0 0.0
        %1080 = vmatprep.subr.mxu0 0.0
        %1081 = vmatpush1.msra.mxu0 0.0
        %1082 = vmatprep.subr.mxu0 0.0
        %1083 = vmatpush1.msra.mxu0 0.0
        %1084 = vmatprep.subr.mxu0 0.0
        %1085 = vmatpush1.msra.mxu0 0.0
        %1086 = vmatprep.subr.mxu0 0.0
        %1087 = vmatpush1.msra.mxu0 0.0
        %1088 = vmatprep.subr.mxu0 0.0
        %1089 = vmatpush1.msra.mxu0 0.0
        %1090 = vmatprep.subr.mxu0 0.0
        %1091 = vmatpush1.msra.mxu0 0.0
        %1092 = vmatprep.subr.mxu0 0.0
        %1093 = vmatpush1.msra.mxu0 0.0
        %1094 = vmatprep.subr.mxu0 0.0
        %1095 = vmatpush1.msra.mxu0 0.0
        %1096 = vmatprep.subr.mxu0 0.0
        %1097 = vmatpush1.msra.mxu0 0.0
        %1098 = vmatprep.subr.mxu0 0.0
        %1099 = vmatpush1.msra.mxu0 0.0
        %1100 = vmatprep.subr.mxu0 0.0
        %1101 = vmatpush1.msra.mxu0 0.0
        %1102 = vmatprep.subr.mxu0 0.0
        %1103 = vmatpush1.msra.mxu0 0.0
        %1104 = vmatprep.subr.mxu0 0.0
        %1105 = vmatpush1.msra.mxu0 0.0
        %1106 = vmatprep.subr.mxu0 0.0
        %1107 = vmatpush1.msra.mxu0 0.0
        %1108 = vmatprep.subr.mxu0 0.0
        %1109 = vmatpush1.msra.mxu0 0.0
        %1110 = vmatprep.subr.mxu0 0.0
        %1111 = vmatpush1.msra.mxu0 0.0
        %1112 = vmatprep.subr.mxu0 0.0
        %1113 = vmatpush1.msra.mxu0 0.0
        %1114 = vmatprep.subr.mxu0 0.0
        %1115 = vmatpush1.msra.mxu0 0.0
        %1116 = vmatprep.subr.mxu0 0.0
        %1117 = vmatpush1.msra.mxu0 0.0
        %1118 = vmatprep.subr.mxu0 0.0
        %1119 = vmatpush1.msra.mxu0 0.0
        %1120 = vmatprep.subr.mxu0 0.0
        %1121 = vmatpush1.msra.mxu0 0.0
        %1122 = vmatprep.mubr.f32.mxu0 0.0
        %1123 = vmatmul.mubr.f32.gmra.mrb[0].mxu0 %v1056
        %v1124 = vpop.f32.mrb[0].mxu0
        %v1125 = vadd.f32 %v1018, %v1124
        %v1126 = vpop.f32.mrb[0].mxu0
        %1127 = vdwg.mxu0
        %v1129 = vsel %vm406, %v1000, 0
        %1131 = vmatprep.subr.mxu0 0.0
        %1132 = vmatpush1.msra.mxu0 %v346
        %1133 = vmatprep.subr.mxu0 0.0
        %1134 = vmatpush1.msra.mxu0 %v347
        %1135 = vmatprep.subr.mxu0 0.0
        %1136 = vmatpush1.msra.mxu0 %v348
        %1137 = vmatprep.subr.mxu0 0.0
        %1138 = vmatpush1.msra.mxu0 %v349
        %1139 = vmatprep.subr.mxu0 0.0
        %1140 = vmatpush1.msra.mxu0 0.0
        %1141 = vmatprep.subr.mxu0 0.0
        %1142 = vmatpush1.msra.mxu0 0.0
        %1143 = vmatprep.subr.mxu0 0.0
        %1144 = vmatpush1.msra.mxu0 0.0
        %1145 = vmatprep.subr.mxu0 0.0
        %1146 = vmatpush1.msra.mxu0 0.0
        %1147 = vmatprep.subr.mxu0 0.0
        %1148 = vmatpush1.msra.mxu0 0.0
        %1149 = vmatprep.subr.mxu0 0.0
        %1150 = vmatpush1.msra.mxu0 0.0
        %1151 = vmatprep.subr.mxu0 0.0
        %1152 = vmatpush1.msra.mxu0 0.0
        %1153 = vmatprep.subr.mxu0 0.0
        %1154 = vmatpush1.msra.mxu0 0.0
        %1155 = vmatprep.subr.mxu0 0.0
        %1156 = vmatpush1.msra.mxu0 0.0
        %1157 = vmatprep.subr.mxu0 0.0
        %1158 = vmatpush1.msra.mxu0 0.0
        %1159 = vmatprep.subr.mxu0 0.0
        %1160 = vmatpush1.msra.mxu0 0.0
        %1161 = vmatprep.subr.mxu0 0.0
        %1162 = vmatpush1.msra.mxu0 0.0
        %1163 = vmatprep.subr.mxu0 0.0
        %1164 = vmatpush1.msra.mxu0 0.0
        %1165 = vmatprep.subr.mxu0 0.0
        %1166 = vmatpush1.msra.mxu0 0.0
        %1167 = vmatprep.subr.mxu0 0.0
        %1168 = vmatpush1.msra.mxu0 0.0
        %1169 = vmatprep.subr.mxu0 0.0
        %1170 = vmatpush1.msra.mxu0 0.0
        %1171 = vmatprep.subr.mxu0 0.0
        %1172 = vmatpush1.msra.mxu0 0.0
        %1173 = vmatprep.subr.mxu0 0.0
        %1174 = vmatpush1.msra.mxu0 0.0
        %1175 = vmatprep.subr.mxu0 0.0
        %1176 = vmatpush1.msra.mxu0 0.0
        %1177 = vmatprep.subr.mxu0 0.0
        %1178 = vmatpush1.msra.mxu0 0.0
        %1179 = vmatprep.subr.mxu0 0.0
        %1180 = vmatpush1.msra.mxu0 0.0
        %1181 = vmatprep.subr.mxu0 0.0
        %1182 = vmatpush1.msra.mxu0 0.0
        %1183 = vmatprep.subr.mxu0 0.0
        %1184 = vmatpush1.msra.mxu0 0.0
        %1185 = vmatprep.subr.mxu0 0.0
        %1186 = vmatpush1.msra.mxu0 0.0
        %1187 = vmatprep.subr.mxu0 0.0
        %1188 = vmatpush1.msra.mxu0 0.0
        %1189 = vmatprep.subr.mxu0 0.0
        %1190 = vmatpush1.msra.mxu0 0.0
        %1191 = vmatprep.subr.mxu0 0.0
        %1192 = vmatpush1.msra.mxu0 0.0
        %1193 = vmatprep.subr.mxu0 0.0
        %1194 = vmatpush1.msra.mxu0 0.0
        %1195 = vmatprep.mubr.f32.mxu0 0.0
        %1196 = vmatmul.mubr.f32.gmra.mrb[0].mxu0 %v1129
        %v1197 = vpop.f32.mrb[0].mxu0
        %v1198 = vadd.f32 %v1023, %v1197
        %v1199 = vpop.f32.mrb[0].mxu0
        %1200 = vdwg.mxu0
        %v1202 = vsel %vm406, %v1001, 0
        %1204 = vmatprep.subr.mxu0 0.0
        %1205 = vmatpush1.msra.mxu0 %v346
        %1206 = vmatprep.subr.mxu0 0.0
        %1207 = vmatpush1.msra.mxu0 %v347
        %1208 = vmatprep.subr.mxu0 0.0
        %1209 = vmatpush1.msra.mxu0 %v348
        %1210 = vmatprep.subr.mxu0 0.0
        %1211 = vmatpush1.msra.mxu0 %v349
        %1212 = vmatprep.subr.mxu0 0.0
        %1213 = vmatpush1.msra.mxu0 0.0
        %1214 = vmatprep.subr.mxu0 0.0
        %1215 = vmatpush1.msra.mxu0 0.0
        %1216 = vmatprep.subr.mxu0 0.0
        %1217 = vmatpush1.msra.mxu0 0.0
        %1218 = vmatprep.subr.mxu0 0.0
        %1219 = vmatpush1.msra.mxu0 0.0
        %1220 = vmatprep.subr.mxu0 0.0
        %1221 = vmatpush1.msra.mxu0 0.0
        %1222 = vmatprep.subr.mxu0 0.0
        %1223 = vmatpush1.msra.mxu0 0.0
        %1224 = vmatprep.subr.mxu0 0.0
        %1225 = vmatpush1.msra.mxu0 0.0
        %1226 = vmatprep.subr.mxu0 0.0
        %1227 = vmatpush1.msra.mxu0 0.0
        %1228 = vmatprep.subr.mxu0 0.0
        %1229 = vmatpush1.msra.mxu0 0.0
        %1230 = vmatprep.subr.mxu0 0.0
        %1231 = vmatpush1.msra.mxu0 0.0
        %1232 = vmatprep.subr.mxu0 0.0
        %1233 = vmatpush1.msra.mxu0 0.0
        %1234 = vmatprep.subr.mxu0 0.0
        %1235 = vmatpush1.msra.mxu0 0.0
        %1236 = vmatprep.subr.mxu0 0.0
        %1237 = vmatpush1.msra.mxu0 0.0
        %1238 = vmatprep.subr.mxu0 0.0
        %1239 = vmatpush1.msra.mxu0 0.0
        %1240 = vmatprep.subr.mxu0 0.0
        %1241 = vmatpush1.msra.mxu0 0.0
        %1242 = vmatprep.subr.mxu0 0.0
        %1243 = vmatpush1.msra.mxu0 0.0
        %1244 = vmatprep.subr.mxu0 0.0
        %1245 = vmatpush1.msra.mxu0 0.0
        %1246 = vmatprep.subr.mxu0 0.0
        %1247 = vmatpush1.msra.mxu0 0.0
        %1248 = vmatprep.subr.mxu0 0.0
        %1249 = vmatpush1.msra.mxu0 0.0
        %1250 = vmatprep.subr.mxu0 0.0
        %1251 = vmatpush1.msra.mxu0 0.0
        %1252 = vmatprep.subr.mxu0 0.0
        %1253 = vmatpush1.msra.mxu0 0.0
        %1254 = vmatprep.subr.mxu0 0.0
        %1255 = vmatpush1.msra.mxu0 0.0
        %1256 = vmatprep.subr.mxu0 0.0
        %1257 = vmatpush1.msra.mxu0 0.0
        %1258 = vmatprep.subr.mxu0 0.0
        %1259 = vmatpush1.msra.mxu0 0.0
        %1260 = vmatprep.subr.mxu0 0.0
        %1261 = vmatpush1.msra.mxu0 0.0
        %1262 = vmatprep.subr.mxu0 0.0
        %1263 = vmatpush1.msra.mxu0 0.0
        %1264 = vmatprep.subr.mxu0 0.0
        %1265 = vmatpush1.msra.mxu0 0.0
        %1266 = vmatprep.subr.mxu0 0.0
        %1267 = vmatpush1.msra.mxu0 0.0
        %1268 = vmatprep.mubr.f32.mxu0 0.0
        %1269 = vmatmul.mubr.f32.gmra.mrb[0].mxu0 %v1202
        %v1270 = vpop.f32.mrb[0].mxu0
        %v1271 = vadd.f32 %v1028, %v1270
        %v1272 = vpop.f32.mrb[0].mxu0
        %1273 = vdwg.mxu0
        %v1275 = vsel %vm406, %v1002, 0
        %1277 = vmatprep.subr.mxu0 0.0
        %1278 = vmatpush1.msra.mxu0 %v346
        %1279 = vmatprep.subr.mxu0 0.0
        %1280 = vmatpush1.msra.mxu0 %v347
        %1281 = vmatprep.subr.mxu0 0.0
        %1282 = vmatpush1.msra.mxu0 %v348
        %1283 = vmatprep.subr.mxu0 0.0
        %1284 = vmatpush1.msra.mxu0 %v349
        %1285 = vmatprep.subr.mxu0 0.0
        %1286 = vmatpush1.msra.mxu0 0.0
        %1287 = vmatprep.subr.mxu0 0.0
        %1288 = vmatpush1.msra.mxu0 0.0
        %1289 = vmatprep.subr.mxu0 0.0
        %1290 = vmatpush1.msra.mxu0 0.0
        %1291 = vmatprep.subr.mxu0 0.0
        %1292 = vmatpush1.msra.mxu0 0.0
        %1293 = vmatprep.subr.mxu0 0.0
        %1294 = vmatpush1.msra.mxu0 0.0
        %1295 = vmatprep.subr.mxu0 0.0
        %1296 = vmatpush1.msra.mxu0 0.0
        %1297 = vmatprep.subr.mxu0 0.0
        %1298 = vmatpush1.msra.mxu0 0.0
        %1299 = vmatprep.subr.mxu0 0.0
        %1300 = vmatpush1.msra.mxu0 0.0
        %1301 = vmatprep.subr.mxu0 0.0
        %1302 = vmatpush1.msra.mxu0 0.0
        %1303 = vmatprep.subr.mxu0 0.0
        %1304 = vmatpush1.msra.mxu0 0.0
        %1305 = vmatprep.subr.mxu0 0.0
        %1306 = vmatpush1.msra.mxu0 0.0
        %1307 = vmatprep.subr.mxu0 0.0
        %1308 = vmatpush1.msra.mxu0 0.0
        %1309 = vmatprep.subr.mxu0 0.0
        %1310 = vmatpush1.msra.mxu0 0.0
        %1311 = vmatprep.subr.mxu0 0.0
        %1312 = vmatpush1.msra.mxu0 0.0
        %1313 = vmatprep.subr.mxu0 0.0
        %1314 = vmatpush1.msra.mxu0 0.0
        %1315 = vmatprep.subr.mxu0 0.0
        %1316 = vmatpush1.msra.mxu0 0.0
        %1317 = vmatprep.subr.mxu0 0.0
        %1318 = vmatpush1.msra.mxu0 0.0
        %1319 = vmatprep.subr.mxu0 0.0
        %1320 = vmatpush1.msra.mxu0 0.0
        %1321 = vmatprep.subr.mxu0 0.0
        %1322 = vmatpush1.msra.mxu0 0.0
        %1323 = vmatprep.subr.mxu0 0.0
        %1324 = vmatpush1.msra.mxu0 0.0
        %1325 = vmatprep.subr.mxu0 0.0
        %1326 = vmatpush1.msra.mxu0 0.0
        %1327 = vmatprep.subr.mxu0 0.0
        %1328 = vmatpush1.msra.mxu0 0.0
        %1329 = vmatprep.subr.mxu0 0.0
        %1330 = vmatpush1.msra.mxu0 0.0
        %1331 = vmatprep.subr.mxu0 0.0
        %1332 = vmatpush1.msra.mxu0 0.0
        %1333 = vmatprep.subr.mxu0 0.0
        %1334 = vmatpush1.msra.mxu0 0.0
        %1335 = vmatprep.subr.mxu0 0.0
        %1336 = vmatpush1.msra.mxu0 0.0
        %1337 = vmatprep.subr.mxu0 0.0
        %1338 = vmatpush1.msra.mxu0 0.0
        %1339 = vmatprep.subr.mxu0 0.0
        %1340 = vmatpush1.msra.mxu0 0.0
        %1341 = vmatprep.mubr.f32.mxu0 0.0
        %1342 = vmatmul.mubr.f32.gmra.mrb[0].mxu0 %v1275
        %v1343 = vpop.f32.mrb[0].mxu0
        %v1344 = vadd.f32 %v1033, %v1343
        %v1345 = vpop.f32.mrb[0].mxu0
        %1346 = vdwg.mxu0
        %v1348 = vsel %vm406, %v1003, 0
        %1350 = vmatprep.subr.mxu0 0.0
        %1351 = vmatpush1.msra.mxu0 %v346
        %1352 = vmatprep.subr.mxu0 0.0
        %1353 = vmatpush1.msra.mxu0 %v347
        %1354 = vmatprep.subr.mxu0 0.0
        %1355 = vmatpush1.msra.mxu0 %v348
        %1356 = vmatprep.subr.mxu0 0.0
        %1357 = vmatpush1.msra.mxu0 %v349
        %1358 = vmatprep.subr.mxu0 0.0
        %1359 = vmatpush1.msra.mxu0 0.0
        %1360 = vmatprep.subr.mxu0 0.0
        %1361 = vmatpush1.msra.mxu0 0.0
        %1362 = vmatprep.subr.mxu0 0.0
        %1363 = vmatpush1.msra.mxu0 0.0
        %1364 = vmatprep.subr.mxu0 0.0
        %1365 = vmatpush1.msra.mxu0 0.0
        %1366 = vmatprep.subr.mxu0 0.0
        %1367 = vmatpush1.msra.mxu0 0.0
        %1368 = vmatprep.subr.mxu0 0.0
        %1369 = vmatpush1.msra.mxu0 0.0
        %1370 = vmatprep.subr.mxu0 0.0
        %1371 = vmatpush1.msra.mxu0 0.0
        %1372 = vmatprep.subr.mxu0 0.0
        %1373 = vmatpush1.msra.mxu0 0.0
        %1374 = vmatprep.subr.mxu0 0.0
        %1375 = vmatpush1.msra.mxu0 0.0
        %1376 = vmatprep.subr.mxu0 0.0
        %1377 = vmatpush1.msra.mxu0 0.0
        %1378 = vmatprep.subr.mxu0 0.0
        %1379 = vmatpush1.msra.mxu0 0.0
        %1380 = vmatprep.subr.mxu0 0.0
        %1381 = vmatpush1.msra.mxu0 0.0
        %1382 = vmatprep.subr.mxu0 0.0
        %1383 = vmatpush1.msra.mxu0 0.0
        %1384 = vmatprep.subr.mxu0 0.0
        %1385 = vmatpush1.msra.mxu0 0.0
        %1386 = vmatprep.subr.mxu0 0.0
        %1387 = vmatpush1.msra.mxu0 0.0
        %1388 = vmatprep.subr.mxu0 0.0
        %1389 = vmatpush1.msra.mxu0 0.0
        %1390 = vmatprep.subr.mxu0 0.0
        %1391 = vmatpush1.msra.mxu0 0.0
        %1392 = vmatprep.subr.mxu0 0.0
        %1393 = vmatpush1.msra.mxu0 0.0
        %1394 = vmatprep.subr.mxu0 0.0
        %1395 = vmatpush1.msra.mxu0 0.0
        %1396 = vmatprep.subr.mxu0 0.0
        %1397 = vmatpush1.msra.mxu0 0.0
        %1398 = vmatprep.subr.mxu0 0.0
        %1399 = vmatpush1.msra.mxu0 0.0
        %1400 = vmatprep.subr.mxu0 0.0
        %1401 = vmatpush1.msra.mxu0 0.0
        %1402 = vmatprep.subr.mxu0 0.0
        %1403 = vmatpush1.msra.mxu0 0.0
        %1404 = vmatprep.subr.mxu0 0.0
        %1405 = vmatpush1.msra.mxu0 0.0
        %1406 = vmatprep.subr.mxu0 0.0
        %1407 = vmatpush1.msra.mxu0 0.0
        %1408 = vmatprep.subr.mxu0 0.0
        %1409 = vmatpush1.msra.mxu0 0.0
        %1410 = vmatprep.subr.mxu0 0.0
        %1411 = vmatpush1.msra.mxu0 0.0
        %1412 = vmatprep.subr.mxu0 0.0
        %1413 = vmatpush1.msra.mxu0 0.0
        %1414 = vmatprep.mubr.f32.mxu0 0.0
        %1415 = vmatmul.mubr.f32.gmra.mrb[0].mxu0 %v1348
        %v1416 = vpop.f32.mrb[0].mxu0
        %v1417 = vadd.f32 %v1038, %v1416
        %v1418 = vpop.f32.mrb[0].mxu0
        %1419 = vdwg.mxu0
        %v1421 = vsel %vm406, %v1004, 0
        %1423 = vmatprep.subr.mxu0 0.0
        %1424 = vmatpush1.msra.mxu0 %v346
        %1425 = vmatprep.subr.mxu0 0.0
        %1426 = vmatpush1.msra.mxu0 %v347
        %1427 = vmatprep.subr.mxu0 0.0
        %1428 = vmatpush1.msra.mxu0 %v348
        %1429 = vmatprep.subr.mxu0 0.0
        %1430 = vmatpush1.msra.mxu0 %v349
        %1431 = vmatprep.subr.mxu0 0.0
        %1432 = vmatpush1.msra.mxu0 0.0
        %1433 = vmatprep.subr.mxu0 0.0
        %1434 = vmatpush1.msra.mxu0 0.0
        %1435 = vmatprep.subr.mxu0 0.0
        %1436 = vmatpush1.msra.mxu0 0.0
        %1437 = vmatprep.subr.mxu0 0.0
        %1438 = vmatpush1.msra.mxu0 0.0
        %1439 = vmatprep.subr.mxu0 0.0
        %1440 = vmatpush1.msra.mxu0 0.0
        %1441 = vmatprep.subr.mxu0 0.0
        %1442 = vmatpush1.msra.mxu0 0.0
        %1443 = vmatprep.subr.mxu0 0.0
        %1444 = vmatpush1.msra.mxu0 0.0
        %1445 = vmatprep.subr.mxu0 0.0
        %1446 = vmatpush1.msra.mxu0 0.0
        %1447 = vmatprep.subr.mxu0 0.0
        %1448 = vmatpush1.msra.mxu0 0.0
        %1449 = vmatprep.subr.mxu0 0.0
        %1450 = vmatpush1.msra.mxu0 0.0
        %1451 = vmatprep.subr.mxu0 0.0
        %1452 = vmatpush1.msra.mxu0 0.0
        %1453 = vmatprep.subr.mxu0 0.0
        %1454 = vmatpush1.msra.mxu0 0.0
        %1455 = vmatprep.subr.mxu0 0.0
        %1456 = vmatpush1.msra.mxu0 0.0
        %1457 = vmatprep.subr.mxu0 0.0
        %1458 = vmatpush1.msra.mxu0 0.0
        %1459 = vmatprep.subr.mxu0 0.0
        %1460 = vmatpush1.msra.mxu0 0.0
        %1461 = vmatprep.subr.mxu0 0.0
        %1462 = vmatpush1.msra.mxu0 0.0
        %1463 = vmatprep.subr.mxu0 0.0
        %1464 = vmatpush1.msra.mxu0 0.0
        %1465 = vmatprep.subr.mxu0 0.0
        %1466 = vmatpush1.msra.mxu0 0.0
        %1467 = vmatprep.subr.mxu0 0.0
        %1468 = vmatpush1.msra.mxu0 0.0
        %1469 = vmatprep.subr.mxu0 0.0
        %1470 = vmatpush1.msra.mxu0 0.0
        %1471 = vmatprep.subr.mxu0 0.0
        %1472 = vmatpush1.msra.mxu0 0.0
        %1473 = vmatprep.subr.mxu0 0.0
        %1474 = vmatpush1.msra.mxu0 0.0
        %1475 = vmatprep.subr.mxu0 0.0
        %1476 = vmatpush1.msra.mxu0 0.0
        %1477 = vmatprep.subr.mxu0 0.0
        %1478 = vmatpush1.msra.mxu0 0.0
        %1479 = vmatprep.subr.mxu0 0.0
        %1480 = vmatpush1.msra.mxu0 0.0
        %1481 = vmatprep.subr.mxu0 0.0
        %1482 = vmatpush1.msra.mxu0 0.0
        %1483 = vmatprep.subr.mxu0 0.0
        %1484 = vmatpush1.msra.mxu0 0.0
        %1485 = vmatprep.subr.mxu0 0.0
        %1486 = vmatpush1.msra.mxu0 0.0
        %1487 = vmatprep.mubr.f32.mxu0 0.0
        %1488 = vmatmul.mubr.f32.gmra.mrb[0].mxu0 %v1421
        %v1489 = vpop.f32.mrb[0].mxu0
        %v1490 = vadd.f32 %v1043, %v1489
        %v1491 = vpop.f32.mrb[0].mxu0
        %1492 = vdwg.mxu0
        %v1494 = vsel %vm406, %v1005, 0
        %1496 = vmatprep.subr.mxu0 0.0
        %1497 = vmatpush1.msra.mxu0 %v346
        %1498 = vmatprep.subr.mxu0 0.0
        %1499 = vmatpush1.msra.mxu0 %v347
        %1500 = vmatprep.subr.mxu0 0.0
        %1501 = vmatpush1.msra.mxu0 %v348
        %1502 = vmatprep.subr.mxu0 0.0
        %1503 = vmatpush1.msra.mxu0 %v349
        %1504 = vmatprep.subr.mxu0 0.0
        %1505 = vmatpush1.msra.mxu0 0.0
        %1506 = vmatprep.subr.mxu0 0.0
        %1507 = vmatpush1.msra.mxu0 0.0
        %1508 = vmatprep.subr.mxu0 0.0
        %1509 = vmatpush1.msra.mxu0 0.0
        %1510 = vmatprep.subr.mxu0 0.0
        %1511 = vmatpush1.msra.mxu0 0.0
        %1512 = vmatprep.subr.mxu0 0.0
        %1513 = vmatpush1.msra.mxu0 0.0
        %1514 = vmatprep.subr.mxu0 0.0
        %1515 = vmatpush1.msra.mxu0 0.0
        %1516 = vmatprep.subr.mxu0 0.0
        %1517 = vmatpush1.msra.mxu0 0.0
        %1518 = vmatprep.subr.mxu0 0.0
        %1519 = vmatpush1.msra.mxu0 0.0
        %1520 = vmatprep.subr.mxu0 0.0
        %1521 = vmatpush1.msra.mxu0 0.0
        %1522 = vmatprep.subr.mxu0 0.0
        %1523 = vmatpush1.msra.mxu0 0.0
        %1524 = vmatprep.subr.mxu0 0.0
        %1525 = vmatpush1.msra.mxu0 0.0
        %1526 = vmatprep.subr.mxu0 0.0
        %1527 = vmatpush1.msra.mxu0 0.0
        %1528 = vmatprep.subr.mxu0 0.0
        %1529 = vmatpush1.msra.mxu0 0.0
        %1530 = vmatprep.subr.mxu0 0.0
        %1531 = vmatpush1.msra.mxu0 0.0
        %1532 = vmatprep.subr.mxu0 0.0
        %1533 = vmatpush1.msra.mxu0 0.0
        %1534 = vmatprep.subr.mxu0 0.0
        %1535 = vmatpush1.msra.mxu0 0.0
        %1536 = vmatprep.subr.mxu0 0.0
        %1537 = vmatpush1.msra.mxu0 0.0
        %1538 = vmatprep.subr.mxu0 0.0
        %1539 = vmatpush1.msra.mxu0 0.0
        %1540 = vmatprep.subr.mxu0 0.0
        %1541 = vmatpush1.msra.mxu0 0.0
        %1542 = vmatprep.subr.mxu0 0.0
        %1543 = vmatpush1.msra.mxu0 0.0
        %1544 = vmatprep.subr.mxu0 0.0
        %1545 = vmatpush1.msra.mxu0 0.0
        %1546 = vmatprep.subr.mxu0 0.0
        %1547 = vmatpush1.msra.mxu0 0.0
        %1548 = vmatprep.subr.mxu0 0.0
        %1549 = vmatpush1.msra.mxu0 0.0
        %1550 = vmatprep.subr.mxu0 0.0
        %1551 = vmatpush1.msra.mxu0 0.0
        %1552 = vmatprep.subr.mxu0 0.0
        %1553 = vmatpush1.msra.mxu0 0.0
        %1554 = vmatprep.subr.mxu0 0.0
        %1555 = vmatpush1.msra.mxu0 0.0
        %1556 = vmatprep.subr.mxu0 0.0
        %1557 = vmatpush1.msra.mxu0 0.0
        %1558 = vmatprep.subr.mxu0 0.0
        %1559 = vmatpush1.msra.mxu0 0.0
        %1560 = vmatprep.mubr.f32.mxu0 0.0
        %1561 = vmatmul.mubr.f32.gmra.mrb[0].mxu0 %v1494
        %v1562 = vpop.f32.mrb[0].mxu0
        %v1563 = vadd.f32 %v1048, %v1562
        %v1564 = vpop.f32.mrb[0].mxu0
        %1565 = vdwg.mxu0
        %v1567 = vsel %vm406, %v1006, 0
        %1569 = vmatprep.subr.mxu0 0.0
        %1570 = vmatpush1.msra.mxu0 %v346
        %1571 = vmatprep.subr.mxu0 0.0
        %1572 = vmatpush1.msra.mxu0 %v347
        %1573 = vmatprep.subr.mxu0 0.0
        %1574 = vmatpush1.msra.mxu0 %v348
        %1575 = vmatprep.subr.mxu0 0.0
        %1576 = vmatpush1.msra.mxu0 %v349
        %1577 = vmatprep.subr.mxu0 0.0
        %1578 = vmatpush1.msra.mxu0 0.0
        %1579 = vmatprep.subr.mxu0 0.0
        %1580 = vmatpush1.msra.mxu0 0.0
        %1581 = vmatprep.subr.mxu0 0.0
        %1582 = vmatpush1.msra.mxu0 0.0
        %1583 = vmatprep.subr.mxu0 0.0
        %1584 = vmatpush1.msra.mxu0 0.0
        %1585 = vmatprep.subr.mxu0 0.0
        %1586 = vmatpush1.msra.mxu0 0.0
        %1587 = vmatprep.subr.mxu0 0.0
        %1588 = vmatpush1.msra.mxu0 0.0
        %1589 = vmatprep.subr.mxu0 0.0
        %1590 = vmatpush1.msra.mxu0 0.0
        %1591 = vmatprep.subr.mxu0 0.0
        %1592 = vmatpush1.msra.mxu0 0.0
        %1593 = vmatprep.subr.mxu0 0.0
        %1594 = vmatpush1.msra.mxu0 0.0
        %1595 = vmatprep.subr.mxu0 0.0
        %1596 = vmatpush1.msra.mxu0 0.0
        %1597 = vmatprep.subr.mxu0 0.0
        %1598 = vmatpush1.msra.mxu0 0.0
        %1599 = vmatprep.subr.mxu0 0.0
        %1600 = vmatpush1.msra.mxu0 0.0
        %1601 = vmatprep.subr.mxu0 0.0
        %1602 = vmatpush1.msra.mxu0 0.0
        %1603 = vmatprep.subr.mxu0 0.0
        %1604 = vmatpush1.msra.mxu0 0.0
        %1605 = vmatprep.subr.mxu0 0.0
        %1606 = vmatpush1.msra.mxu0 0.0
        %1607 = vmatprep.subr.mxu0 0.0
        %1608 = vmatpush1.msra.mxu0 0.0
        %1609 = vmatprep.subr.mxu0 0.0
        %1610 = vmatpush1.msra.mxu0 0.0
        %1611 = vmatprep.subr.mxu0 0.0
        %1612 = vmatpush1.msra.mxu0 0.0
        %1613 = vmatprep.subr.mxu0 0.0
        %1614 = vmatpush1.msra.mxu0 0.0
        %1615 = vmatprep.subr.mxu0 0.0
        %1616 = vmatpush1.msra.mxu0 0.0
        %1617 = vmatprep.subr.mxu0 0.0
        %1618 = vmatpush1.msra.mxu0 0.0
        %1619 = vmatprep.subr.mxu0 0.0
        %1620 = vmatpush1.msra.mxu0 0.0
        %1621 = vmatprep.subr.mxu0 0.0
        %1622 = vmatpush1.msra.mxu0 0.0
        %1623 = vmatprep.subr.mxu0 0.0
        %1624 = vmatpush1.msra.mxu0 0.0
        %1625 = vmatprep.subr.mxu0 0.0
        %1626 = vmatpush1.msra.mxu0 0.0
        %1627 = vmatprep.subr.mxu0 0.0
        %1628 = vmatpush1.msra.mxu0 0.0
        %1629 = vmatprep.subr.mxu0 0.0
        %1630 = vmatpush1.msra.mxu0 0.0
        %1631 = vmatprep.subr.mxu0 0.0
        %1632 = vmatpush1.msra.mxu0 0.0
        %1633 = vmatprep.mubr.f32.mxu0 0.0
        %1634 = vmatmul.mubr.f32.gmra.mrb[0].mxu0 %v1567
        %v1635 = vpop.f32.mrb[0].mxu0
        %v1636 = vadd.f32 %v1053, %v1635
        %v1637 = vpop.f32.mrb[0].mxu0
        %1638 = vdwg.mxu0
        %v1639 = vld [vmem:[#allocation2] sm:$0xf]
        %v1640 = vld [vmem:[#allocation2 + $0x4] sm:$0xf]
        %v1641 = vld [vmem:[#allocation2 + $0x8] sm:$0xf]
        %v1642 = vld [vmem:[#allocation2 + $0xc] sm:$0xf]
        %v1643 = vld [vmem:[#allocation2 + $0x10] sm:$0xf]
        %v1644 = vld [vmem:[#allocation2 + $0x14] sm:$0xf]
        %v1645 = vld [vmem:[#allocation2 + $0x18] sm:$0xf]
        %v1646 = vld [vmem:[#allocation2 + $0x1c] sm:$0xf]
        %v1647 = vld [vmem:[%s6] sm:$0xf]
        %v1648 = vld [vmem:[%s6 + $0x4] sm:$0xf]
        %v1649 = vld [vmem:[%s6 + $0x8] sm:$0xf]
        %v1650 = vld [vmem:[%s6 + $0xc] sm:$0xf]
        %v1651 = vld [vmem:[%s6 + $0x10] sm:$0xf]
        %v1652 = vld [vmem:[%s6 + $0x14] sm:$0xf]
        %v1653 = vld [vmem:[%s6 + $0x18] sm:$0xf]
        %v1654 = vld [vmem:[%s6 + $0x1c] sm:$0xf]
        %1656 = vset.pattern.permute.xlu0 0
        %1657 = vperm.xlu0 %1656, %v1647
        %v1658 = vpop.permute.xlu0 %1657
        %1661 = vset.pattern.permute.xlu0 0
        %1662 = vperm.xlu0 %1661, %v1648
        %v1663 = vpop.permute.xlu0 %1662
        %1666 = vset.pattern.permute.xlu0 0
        %1667 = vperm.xlu0 %1666, %v1649
        %v1668 = vpop.permute.xlu0 %1667
        %1671 = vset.pattern.permute.xlu0 0
        %1672 = vperm.xlu0 %1671, %v1650
        %v1673 = vpop.permute.xlu0 %1672
        %1676 = vset.pattern.permute.xlu0 0
        %1677 = vperm.xlu0 %1676, %v1651
        %v1678 = vpop.permute.xlu0 %1677
        %1681 = vset.pattern.permute.xlu0 0
        %1682 = vperm.xlu0 %1681, %v1652
        %v1683 = vpop.permute.xlu0 %1682
        %1686 = vset.pattern.permute.xlu0 0
        %1687 = vperm.xlu0 %1686, %v1653
        %v1688 = vpop.permute.xlu0 %1687
        %1691 = vset.pattern.permute.xlu0 0
        %1692 = vperm.xlu0 %1691, %v1654
        %v1693 = vpop.permute.xlu0 %1692
        %v1696 = vsel %vm406, %v1639, 0
        %1698 = vmatprep.subr.mxu0 0.0
        %1699 = vmatpush1.msra.mxu0 %v346
        %1700 = vmatprep.subr.mxu0 0.0
        %1701 = vmatpush1.msra.mxu0 %v347
        %1702 = vmatprep.subr.mxu0 0.0
        %1703 = vmatpush1.msra.mxu0 %v348
        %1704 = vmatprep.subr.mxu0 0.0
        %1705 = vmatpush1.msra.mxu0 %v349
        %1706 = vmatprep.subr.mxu0 0.0
        %1707 = vmatpush1.msra.mxu0 0.0
        %1708 = vmatprep.subr.mxu0 0.0
        %1709 = vmatpush1.msra.mxu0 0.0
        %1710 = vmatprep.subr.mxu0 0.0
        %1711 = vmatpush1.msra.mxu0 0.0
        %1712 = vmatprep.subr.mxu0 0.0
        %1713 = vmatpush1.msra.mxu0 0.0
        %1714 = vmatprep.subr.mxu0 0.0
        %1715 = vmatpush1.msra.mxu0 0.0
        %1716 = vmatprep.subr.mxu0 0.0
        %1717 = vmatpush1.msra.mxu0 0.0
        %1718 = vmatprep.subr.mxu0 0.0
        %1719 = vmatpush1.msra.mxu0 0.0
        %1720 = vmatprep.subr.mxu0 0.0
        %1721 = vmatpush1.msra.mxu0 0.0
        %1722 = vmatprep.subr.mxu0 0.0
        %1723 = vmatpush1.msra.mxu0 0.0
        %1724 = vmatprep.subr.mxu0 0.0
        %1725 = vmatpush1.msra.mxu0 0.0
        %1726 = vmatprep.subr.mxu0 0.0
        %1727 = vmatpush1.msra.mxu0 0.0
        %1728 = vmatprep.subr.mxu0 0.0
        %1729 = vmatpush1.msra.mxu0 0.0
        %1730 = vmatprep.subr.mxu0 0.0
        %1731 = vmatpush1.msra.mxu0 0.0
        %1732 = vmatprep.subr.mxu0 0.0
        %1733 = vmatpush1.msra.mxu0 0.0
        %1734 = vmatprep.subr.mxu0 0.0
        %1735 = vmatpush1.msra.mxu0 0.0
        %1736 = vmatprep.subr.mxu0 0.0
        %1737 = vmatpush1.msra.mxu0 0.0
        %1738 = vmatprep.subr.mxu0 0.0
        %1739 = vmatpush1.msra.mxu0 0.0
        %1740 = vmatprep.subr.mxu0 0.0
        %1741 = vmatpush1.msra.mxu0 0.0
        %1742 = vmatprep.subr.mxu0 0.0
        %1743 = vmatpush1.msra.mxu0 0.0
        %1744 = vmatprep.subr.mxu0 0.0
        %1745 = vmatpush1.msra.mxu0 0.0
        %1746 = vmatprep.subr.mxu0 0.0
        %1747 = vmatpush1.msra.mxu0 0.0
        %1748 = vmatprep.subr.mxu0 0.0
        %1749 = vmatpush1.msra.mxu0 0.0
        %1750 = vmatprep.subr.mxu0 0.0
        %1751 = vmatpush1.msra.mxu0 0.0
        %1752 = vmatprep.subr.mxu0 0.0
        %1753 = vmatpush1.msra.mxu0 0.0
        %1754 = vmatprep.subr.mxu0 0.0
        %1755 = vmatpush1.msra.mxu0 0.0
        %1756 = vmatprep.subr.mxu0 0.0
        %1757 = vmatpush1.msra.mxu0 0.0
        %1758 = vmatprep.subr.mxu0 0.0
        %1759 = vmatpush1.msra.mxu0 0.0
        %1760 = vmatprep.subr.mxu0 0.0
        %1761 = vmatpush1.msra.mxu0 0.0
        %1762 = vmatprep.mubr.f32.mxu0 0.0
        %1763 = vmatmul.mubr.f32.gmra.mrb[0].mxu0 %v1696
        %v1764 = vpop.f32.mrb[0].mxu0
        %v1765 = vadd.f32 %v1658, %v1764
        %v1766 = vpop.f32.mrb[0].mxu0
        %1767 = vdwg.mxu0
        %v1769 = vsel %vm406, %v1640, 0
        %1771 = vmatprep.subr.mxu0 0.0
        %1772 = vmatpush1.msra.mxu0 %v346
        %1773 = vmatprep.subr.mxu0 0.0
        %1774 = vmatpush1.msra.mxu0 %v347
        %1775 = vmatprep.subr.mxu0 0.0
        %1776 = vmatpush1.msra.mxu0 %v348
        %1777 = vmatprep.subr.mxu0 0.0
        %1778 = vmatpush1.msra.mxu0 %v349
        %1779 = vmatprep.subr.mxu0 0.0
        %1780 = vmatpush1.msra.mxu0 0.0
        %1781 = vmatprep.subr.mxu0 0.0
        %1782 = vmatpush1.msra.mxu0 0.0
        %1783 = vmatprep.subr.mxu0 0.0
        %1784 = vmatpush1.msra.mxu0 0.0
        %1785 = vmatprep.subr.mxu0 0.0
        %1786 = vmatpush1.msra.mxu0 0.0
        %1787 = vmatprep.subr.mxu0 0.0
        %1788 = vmatpush1.msra.mxu0 0.0
        %1789 = vmatprep.subr.mxu0 0.0
        %1790 = vmatpush1.msra.mxu0 0.0
        %1791 = vmatprep.subr.mxu0 0.0
        %1792 = vmatpush1.msra.mxu0 0.0
        %1793 = vmatprep.subr.mxu0 0.0
        %1794 = vmatpush1.msra.mxu0 0.0
        %1795 = vmatprep.subr.mxu0 0.0
        %1796 = vmatpush1.msra.mxu0 0.0
        %1797 = vmatprep.subr.mxu0 0.0
        %1798 = vmatpush1.msra.mxu0 0.0
        %1799 = vmatprep.subr.mxu0 0.0
        %1800 = vmatpush1.msra.mxu0 0.0
        %1801 = vmatprep.subr.mxu0 0.0
        %1802 = vmatpush1.msra.mxu0 0.0
        %1803 = vmatprep.subr.mxu0 0.0
        %1804 = vmatpush1.msra.mxu0 0.0
        %1805 = vmatprep.subr.mxu0 0.0
        %1806 = vmatpush1.msra.mxu0 0.0
        %1807 = vmatprep.subr.mxu0 0.0
        %1808 = vmatpush1.msra.mxu0 0.0
        %1809 = vmatprep.subr.mxu0 0.0
        %1810 = vmatpush1.msra.mxu0 0.0
        %1811 = vmatprep.subr.mxu0 0.0
        %1812 = vmatpush1.msra.mxu0 0.0
        %1813 = vmatprep.subr.mxu0 0.0
        %1814 = vmatpush1.msra.mxu0 0.0
        %1815 = vmatprep.subr.mxu0 0.0
        %1816 = vmatpush1.msra.mxu0 0.0
        %1817 = vmatprep.subr.mxu0 0.0
        %1818 = vmatpush1.msra.mxu0 0.0
        %1819 = vmatprep.subr.mxu0 0.0
        %1820 = vmatpush1.msra.mxu0 0.0
        %1821 = vmatprep.subr.mxu0 0.0
        %1822 = vmatpush1.msra.mxu0 0.0
        %1823 = vmatprep.subr.mxu0 0.0
        %1824 = vmatpush1.msra.mxu0 0.0
        %1825 = vmatprep.subr.mxu0 0.0
        %1826 = vmatpush1.msra.mxu0 0.0
        %1827 = vmatprep.subr.mxu0 0.0
        %1828 = vmatpush1.msra.mxu0 0.0
        %1829 = vmatprep.subr.mxu0 0.0
        %1830 = vmatpush1.msra.mxu0 0.0
        %1831 = vmatprep.subr.mxu0 0.0
        %1832 = vmatpush1.msra.mxu0 0.0
        %1833 = vmatprep.subr.mxu0 0.0
        %1834 = vmatpush1.msra.mxu0 0.0
        %1835 = vmatprep.mubr.f32.mxu0 0.0
        %1836 = vmatmul.mubr.f32.gmra.mrb[0].mxu0 %v1769
        %v1837 = vpop.f32.mrb[0].mxu0
        %v1838 = vadd.f32 %v1663, %v1837
        %v1839 = vpop.f32.mrb[0].mxu0
        %1840 = vdwg.mxu0
        %v1842 = vsel %vm406, %v1641, 0
        %1844 = vmatprep.subr.mxu0 0.0
        %1845 = vmatpush1.msra.mxu0 %v346
        %1846 = vmatprep.subr.mxu0 0.0
        %1847 = vmatpush1.msra.mxu0 %v347
        %1848 = vmatprep.subr.mxu0 0.0
        %1849 = vmatpush1.msra.mxu0 %v348
        %1850 = vmatprep.subr.mxu0 0.0
        %1851 = vmatpush1.msra.mxu0 %v349
        %1852 = vmatprep.subr.mxu0 0.0
        %1853 = vmatpush1.msra.mxu0 0.0
        %1854 = vmatprep.subr.mxu0 0.0
        %1855 = vmatpush1.msra.mxu0 0.0
        %1856 = vmatprep.subr.mxu0 0.0
        %1857 = vmatpush1.msra.mxu0 0.0
        %1858 = vmatprep.subr.mxu0 0.0
        %1859 = vmatpush1.msra.mxu0 0.0
        %1860 = vmatprep.subr.mxu0 0.0
        %1861 = vmatpush1.msra.mxu0 0.0
        %1862 = vmatprep.subr.mxu0 0.0
        %1863 = vmatpush1.msra.mxu0 0.0
        %1864 = vmatprep.subr.mxu0 0.0
        %1865 = vmatpush1.msra.mxu0 0.0
        %1866 = vmatprep.subr.mxu0 0.0
        %1867 = vmatpush1.msra.mxu0 0.0
        %1868 = vmatprep.subr.mxu0 0.0
        %1869 = vmatpush1.msra.mxu0 0.0
        %1870 = vmatprep.subr.mxu0 0.0
        %1871 = vmatpush1.msra.mxu0 0.0
        %1872 = vmatprep.subr.mxu0 0.0
        %1873 = vmatpush1.msra.mxu0 0.0
        %1874 = vmatprep.subr.mxu0 0.0
        %1875 = vmatpush1.msra.mxu0 0.0
        %1876 = vmatprep.subr.mxu0 0.0
        %1877 = vmatpush1.msra.mxu0 0.0
        %1878 = vmatprep.subr.mxu0 0.0
        %1879 = vmatpush1.msra.mxu0 0.0
        %1880 = vmatprep.subr.mxu0 0.0
        %1881 = vmatpush1.msra.mxu0 0.0
        %1882 = vmatprep.subr.mxu0 0.0
        %1883 = vmatpush1.msra.mxu0 0.0
        %1884 = vmatprep.subr.mxu0 0.0
        %1885 = vmatpush1.msra.mxu0 0.0
        %1886 = vmatprep.subr.mxu0 0.0
        %1887 = vmatpush1.msra.mxu0 0.0
        %1888 = vmatprep.subr.mxu0 0.0
        %1889 = vmatpush1.msra.mxu0 0.0
        %1890 = vmatprep.subr.mxu0 0.0
        %1891 = vmatpush1.msra.mxu0 0.0
        %1892 = vmatprep.subr.mxu0 0.0
        %1893 = vmatpush1.msra.mxu0 0.0
        %1894 = vmatprep.subr.mxu0 0.0
        %1895 = vmatpush1.msra.mxu0 0.0
        %1896 = vmatprep.subr.mxu0 0.0
        %1897 = vmatpush1.msra.mxu0 0.0
        %1898 = vmatprep.subr.mxu0 0.0
        %1899 = vmatpush1.msra.mxu0 0.0
        %1900 = vmatprep.subr.mxu0 0.0
        %1901 = vmatpush1.msra.mxu0 0.0
        %1902 = vmatprep.subr.mxu0 0.0
        %1903 = vmatpush1.msra.mxu0 0.0
        %1904 = vmatprep.subr.mxu0 0.0
        %1905 = vmatpush1.msra.mxu0 0.0
        %1906 = vmatprep.subr.mxu0 0.0
        %1907 = vmatpush1.msra.mxu0 0.0
        %1908 = vmatprep.mubr.f32.mxu0 0.0
        %1909 = vmatmul.mubr.f32.gmra.mrb[0].mxu0 %v1842
        %v1910 = vpop.f32.mrb[0].mxu0
        %v1911 = vadd.f32 %v1668, %v1910
        %v1912 = vpop.f32.mrb[0].mxu0
        %1913 = vdwg.mxu0
        %v1915 = vsel %vm406, %v1642, 0
        %1917 = vmatprep.subr.mxu0 0.0
        %1918 = vmatpush1.msra.mxu0 %v346
        %1919 = vmatprep.subr.mxu0 0.0
        %1920 = vmatpush1.msra.mxu0 %v347
        %1921 = vmatprep.subr.mxu0 0.0
        %1922 = vmatpush1.msra.mxu0 %v348
        %1923 = vmatprep.subr.mxu0 0.0
        %1924 = vmatpush1.msra.mxu0 %v349
        %1925 = vmatprep.subr.mxu0 0.0
        %1926 = vmatpush1.msra.mxu0 0.0
        %1927 = vmatprep.subr.mxu0 0.0
        %1928 = vmatpush1.msra.mxu0 0.0
        %1929 = vmatprep.subr.mxu0 0.0
        %1930 = vmatpush1.msra.mxu0 0.0
        %1931 = vmatprep.subr.mxu0 0.0
        %1932 = vmatpush1.msra.mxu0 0.0
        %1933 = vmatprep.subr.mxu0 0.0
        %1934 = vmatpush1.msra.mxu0 0.0
        %1935 = vmatprep.subr.mxu0 0.0
        %1936 = vmatpush1.msra.mxu0 0.0
        %1937 = vmatprep.subr.mxu0 0.0
        %1938 = vmatpush1.msra.mxu0 0.0
        %1939 = vmatprep.subr.mxu0 0.0
        %1940 = vmatpush1.msra.mxu0 0.0
        %1941 = vmatprep.subr.mxu0 0.0
        %1942 = vmatpush1.msra.mxu0 0.0
        %1943 = vmatprep.subr.mxu0 0.0
        %1944 = vmatpush1.msra.mxu0 0.0
        %1945 = vmatprep.subr.mxu0 0.0
        %1946 = vmatpush1.msra.mxu0 0.0
        %1947 = vmatprep.subr.mxu0 0.0
        %1948 = vmatpush1.msra.mxu0 0.0
        %1949 = vmatprep.subr.mxu0 0.0
        %1950 = vmatpush1.msra.mxu0 0.0
        %1951 = vmatprep.subr.mxu0 0.0
        %1952 = vmatpush1.msra.mxu0 0.0
        %1953 = vmatprep.subr.mxu0 0.0
        %1954 = vmatpush1.msra.mxu0 0.0
        %1955 = vmatprep.subr.mxu0 0.0
        %1956 = vmatpush1.msra.mxu0 0.0
        %1957 = vmatprep.subr.mxu0 0.0
        %1958 = vmatpush1.msra.mxu0 0.0
        %1959 = vmatprep.subr.mxu0 0.0
        %1960 = vmatpush1.msra.mxu0 0.0
        %1961 = vmatprep.subr.mxu0 0.0
        %1962 = vmatpush1.msra.mxu0 0.0
        %1963 = vmatprep.subr.mxu0 0.0
        %1964 = vmatpush1.msra.mxu0 0.0
        %1965 = vmatprep.subr.mxu0 0.0
        %1966 = vmatpush1.msra.mxu0 0.0
        %1967 = vmatprep.subr.mxu0 0.0
        %1968 = vmatpush1.msra.mxu0 0.0
        %1969 = vmatprep.subr.mxu0 0.0
        %1970 = vmatpush1.msra.mxu0 0.0
        %1971 = vmatprep.subr.mxu0 0.0
        %1972 = vmatpush1.msra.mxu0 0.0
        %1973 = vmatprep.subr.mxu0 0.0
        %1974 = vmatpush1.msra.mxu0 0.0
        %1975 = vmatprep.subr.mxu0 0.0
        %1976 = vmatpush1.msra.mxu0 0.0
        %1977 = vmatprep.subr.mxu0 0.0
        %1978 = vmatpush1.msra.mxu0 0.0
        %1979 = vmatprep.subr.mxu0 0.0
        %1980 = vmatpush1.msra.mxu0 0.0
        %1981 = vmatprep.mubr.f32.mxu0 0.0
        %1982 = vmatmul.mubr.f32.gmra.mrb[0].mxu0 %v1915
        %v1983 = vpop.f32.mrb[0].mxu0
        %v1984 = vadd.f32 %v1673, %v1983
        %v1985 = vpop.f32.mrb[0].mxu0
        %1986 = vdwg.mxu0
        %v1988 = vsel %vm406, %v1643, 0
        %1990 = vmatprep.subr.mxu0 0.0
        %1991 = vmatpush1.msra.mxu0 %v346
        %1992 = vmatprep.subr.mxu0 0.0
        %1993 = vmatpush1.msra.mxu0 %v347
        %1994 = vmatprep.subr.mxu0 0.0
        %1995 = vmatpush1.msra.mxu0 %v348
        %1996 = vmatprep.subr.mxu0 0.0
        %1997 = vmatpush1.msra.mxu0 %v349
        %1998 = vmatprep.subr.mxu0 0.0
        %1999 = vmatpush1.msra.mxu0 0.0
        %2000 = vmatprep.subr.mxu0 0.0
        %2001 = vmatpush1.msra.mxu0 0.0
        %2002 = vmatprep.subr.mxu0 0.0
        %2003 = vmatpush1.msra.mxu0 0.0
        %2004 = vmatprep.subr.mxu0 0.0
        %2005 = vmatpush1.msra.mxu0 0.0
        %2006 = vmatprep.subr.mxu0 0.0
        %2007 = vmatpush1.msra.mxu0 0.0
        %2008 = vmatprep.subr.mxu0 0.0
        %2009 = vmatpush1.msra.mxu0 0.0
        %2010 = vmatprep.subr.mxu0 0.0
        %2011 = vmatpush1.msra.mxu0 0.0
        %2012 = vmatprep.subr.mxu0 0.0
        %2013 = vmatpush1.msra.mxu0 0.0
        %2014 = vmatprep.subr.mxu0 0.0
        %2015 = vmatpush1.msra.mxu0 0.0
        %2016 = vmatprep.subr.mxu0 0.0
        %2017 = vmatpush1.msra.mxu0 0.0
        %2018 = vmatprep.subr.mxu0 0.0
        %2019 = vmatpush1.msra.mxu0 0.0
        %2020 = vmatprep.subr.mxu0 0.0
        %2021 = vmatpush1.msra.mxu0 0.0
        %2022 = vmatprep.subr.mxu0 0.0
        %2023 = vmatpush1.msra.mxu0 0.0
        %2024 = vmatprep.subr.mxu0 0.0
        %2025 = vmatpush1.msra.mxu0 0.0
        %2026 = vmatprep.subr.mxu0 0.0
        %2027 = vmatpush1.msra.mxu0 0.0
        %2028 = vmatprep.subr.mxu0 0.0
        %2029 = vmatpush1.msra.mxu0 0.0
        %2030 = vmatprep.subr.mxu0 0.0
        %2031 = vmatpush1.msra.mxu0 0.0
        %2032 = vmatprep.subr.mxu0 0.0
        %2033 = vmatpush1.msra.mxu0 0.0
        %2034 = vmatprep.subr.mxu0 0.0
        %2035 = vmatpush1.msra.mxu0 0.0
        %2036 = vmatprep.subr.mxu0 0.0
        %2037 = vmatpush1.msra.mxu0 0.0
        %2038 = vmatprep.subr.mxu0 0.0
        %2039 = vmatpush1.msra.mxu0 0.0
        %2040 = vmatprep.subr.mxu0 0.0
        %2041 = vmatpush1.msra.mxu0 0.0
        %2042 = vmatprep.subr.mxu0 0.0
        %2043 = vmatpush1.msra.mxu0 0.0
        %2044 = vmatprep.subr.mxu0 0.0
        %2045 = vmatpush1.msra.mxu0 0.0
        %2046 = vmatprep.subr.mxu0 0.0
        %2047 = vmatpush1.msra.mxu0 0.0
        %2048 = vmatprep.subr.mxu0 0.0
        %2049 = vmatpush1.msra.mxu0 0.0
        %2050 = vmatprep.subr.mxu0 0.0
        %2051 = vmatpush1.msra.mxu0 0.0
        %2052 = vmatprep.subr.mxu0 0.0
        %2053 = vmatpush1.msra.mxu0 0.0
        %2054 = vmatprep.mubr.f32.mxu0 0.0
        %2055 = vmatmul.mubr.f32.gmra.mrb[0].mxu0 %v1988
        %v2056 = vpop.f32.mrb[0].mxu0
        %v2057 = vadd.f32 %v1678, %v2056
        %v2058 = vpop.f32.mrb[0].mxu0
        %2059 = vdwg.mxu0
        %v2061 = vsel %vm406, %v1644, 0
        %2063 = vmatprep.subr.mxu0 0.0
        %2064 = vmatpush1.msra.mxu0 %v346
        %2065 = vmatprep.subr.mxu0 0.0
        %2066 = vmatpush1.msra.mxu0 %v347
        %2067 = vmatprep.subr.mxu0 0.0
        %2068 = vmatpush1.msra.mxu0 %v348
        %2069 = vmatprep.subr.mxu0 0.0
        %2070 = vmatpush1.msra.mxu0 %v349
        %2071 = vmatprep.subr.mxu0 0.0
        %2072 = vmatpush1.msra.mxu0 0.0
        %2073 = vmatprep.subr.mxu0 0.0
        %2074 = vmatpush1.msra.mxu0 0.0
        %2075 = vmatprep.subr.mxu0 0.0
        %2076 = vmatpush1.msra.mxu0 0.0
        %2077 = vmatprep.subr.mxu0 0.0
        %2078 = vmatpush1.msra.mxu0 0.0
        %2079 = vmatprep.subr.mxu0 0.0
        %2080 = vmatpush1.msra.mxu0 0.0
        %2081 = vmatprep.subr.mxu0 0.0
        %2082 = vmatpush1.msra.mxu0 0.0
        %2083 = vmatprep.subr.mxu0 0.0
        %2084 = vmatpush1.msra.mxu0 0.0
        %2085 = vmatprep.subr.mxu0 0.0
        %2086 = vmatpush1.msra.mxu0 0.0
        %2087 = vmatprep.subr.mxu0 0.0
        %2088 = vmatpush1.msra.mxu0 0.0
        %2089 = vmatprep.subr.mxu0 0.0
        %2090 = vmatpush1.msra.mxu0 0.0
        %2091 = vmatprep.subr.mxu0 0.0
        %2092 = vmatpush1.msra.mxu0 0.0
        %2093 = vmatprep.subr.mxu0 0.0
        %2094 = vmatpush1.msra.mxu0 0.0
        %2095 = vmatprep.subr.mxu0 0.0
        %2096 = vmatpush1.msra.mxu0 0.0
        %2097 = vmatprep.subr.mxu0 0.0
        %2098 = vmatpush1.msra.mxu0 0.0
        %2099 = vmatprep.subr.mxu0 0.0
        %2100 = vmatpush1.msra.mxu0 0.0
        %2101 = vmatprep.subr.mxu0 0.0
        %2102 = vmatpush1.msra.mxu0 0.0
        %2103 = vmatprep.subr.mxu0 0.0
        %2104 = vmatpush1.msra.mxu0 0.0
        %2105 = vmatprep.subr.mxu0 0.0
        %2106 = vmatpush1.msra.mxu0 0.0
        %2107 = vmatprep.subr.mxu0 0.0
        %2108 = vmatpush1.msra.mxu0 0.0
        %2109 = vmatprep.subr.mxu0 0.0
        %2110 = vmatpush1.msra.mxu0 0.0
        %2111 = vmatprep.subr.mxu0 0.0
        %2112 = vmatpush1.msra.mxu0 0.0
        %2113 = vmatprep.subr.mxu0 0.0
        %2114 = vmatpush1.msra.mxu0 0.0
        %2115 = vmatprep.subr.mxu0 0.0
        %2116 = vmatpush1.msra.mxu0 0.0
        %2117 = vmatprep.subr.mxu0 0.0
        %2118 = vmatpush1.msra.mxu0 0.0
        %2119 = vmatprep.subr.mxu0 0.0
        %2120 = vmatpush1.msra.mxu0 0.0
        %2121 = vmatprep.subr.mxu0 0.0
        %2122 = vmatpush1.msra.mxu0 0.0
        %2123 = vmatprep.subr.mxu0 0.0
        %2124 = vmatpush1.msra.mxu0 0.0
        %2125 = vmatprep.subr.mxu0 0.0
        %2126 = vmatpush1.msra.mxu0 0.0
        %2127 = vmatprep.mubr.f32.mxu0 0.0
        %2128 = vmatmul.mubr.f32.gmra.mrb[0].mxu0 %v2061
        %v2129 = vpop.f32.mrb[0].mxu0
        %v2130 = vadd.f32 %v1683, %v2129
        %v2131 = vpop.f32.mrb[0].mxu0
        %2132 = vdwg.mxu0
        %v2134 = vsel %vm406, %v1645, 0
        %2136 = vmatprep.subr.mxu0 0.0
        %2137 = vmatpush1.msra.mxu0 %v346
        %2138 = vmatprep.subr.mxu0 0.0
        %2139 = vmatpush1.msra.mxu0 %v347
        %2140 = vmatprep.subr.mxu0 0.0
        %2141 = vmatpush1.msra.mxu0 %v348
        %2142 = vmatprep.subr.mxu0 0.0
        %2143 = vmatpush1.msra.mxu0 %v349
        %2144 = vmatprep.subr.mxu0 0.0
        %2145 = vmatpush1.msra.mxu0 0.0
        %2146 = vmatprep.subr.mxu0 0.0
        %2147 = vmatpush1.msra.mxu0 0.0
        %2148 = vmatprep.subr.mxu0 0.0
        %2149 = vmatpush1.msra.mxu0 0.0
        %2150 = vmatprep.subr.mxu0 0.0
        %2151 = vmatpush1.msra.mxu0 0.0
        %2152 = vmatprep.subr.mxu0 0.0
        %2153 = vmatpush1.msra.mxu0 0.0
        %2154 = vmatprep.subr.mxu0 0.0
        %2155 = vmatpush1.msra.mxu0 0.0
        %2156 = vmatprep.subr.mxu0 0.0
        %2157 = vmatpush1.msra.mxu0 0.0
        %2158 = vmatprep.subr.mxu0 0.0
        %2159 = vmatpush1.msra.mxu0 0.0
        %2160 = vmatprep.subr.mxu0 0.0
        %2161 = vmatpush1.msra.mxu0 0.0
        %2162 = vmatprep.subr.mxu0 0.0
        %2163 = vmatpush1.msra.mxu0 0.0
        %2164 = vmatprep.subr.mxu0 0.0
        %2165 = vmatpush1.msra.mxu0 0.0
        %2166 = vmatprep.subr.mxu0 0.0
        %2167 = vmatpush1.msra.mxu0 0.0
        %2168 = vmatprep.subr.mxu0 0.0
        %2169 = vmatpush1.msra.mxu0 0.0
        %2170 = vmatprep.subr.mxu0 0.0
        %2171 = vmatpush1.msra.mxu0 0.0
        %2172 = vmatprep.subr.mxu0 0.0
        %2173 = vmatpush1.msra.mxu0 0.0
        %2174 = vmatprep.subr.mxu0 0.0
        %2175 = vmatpush1.msra.mxu0 0.0
        %2176 = vmatprep.subr.mxu0 0.0
        %2177 = vmatpush1.msra.mxu0 0.0
        %2178 = vmatprep.subr.mxu0 0.0
        %2179 = vmatpush1.msra.mxu0 0.0
        %2180 = vmatprep.subr.mxu0 0.0
        %2181 = vmatpush1.msra.mxu0 0.0
        %2182 = vmatprep.subr.mxu0 0.0
        %2183 = vmatpush1.msra.mxu0 0.0
        %2184 = vmatprep.subr.mxu0 0.0
        %2185 = vmatpush1.msra.mxu0 0.0
        %2186 = vmatprep.subr.mxu0 0.0
        %2187 = vmatpush1.msra.mxu0 0.0
        %2188 = vmatprep.subr.mxu0 0.0
        %2189 = vmatpush1.msra.mxu0 0.0
        %2190 = vmatprep.subr.mxu0 0.0
        %2191 = vmatpush1.msra.mxu0 0.0
        %2192 = vmatprep.subr.mxu0 0.0
        %2193 = vmatpush1.msra.mxu0 0.0
        %2194 = vmatprep.subr.mxu0 0.0
        %2195 = vmatpush1.msra.mxu0 0.0
        %2196 = vmatprep.subr.mxu0 0.0
        %2197 = vmatpush1.msra.mxu0 0.0
        %2198 = vmatprep.subr.mxu0 0.0
        %2199 = vmatpush1.msra.mxu0 0.0
        %2200 = vmatprep.mubr.f32.mxu0 0.0
        %2201 = vmatmul.mubr.f32.gmra.mrb[0].mxu0 %v2134
        %v2202 = vpop.f32.mrb[0].mxu0
        %v2203 = vadd.f32 %v1688, %v2202
        %v2204 = vpop.f32.mrb[0].mxu0
        %2205 = vdwg.mxu0
        %v2207 = vsel %vm406, %v1646, 0
        %2209 = vmatprep.subr.mxu0 0.0
        %2210 = vmatpush1.msra.mxu0 %v346
        %2211 = vmatprep.subr.mxu0 0.0
        %2212 = vmatpush1.msra.mxu0 %v347
        %2213 = vmatprep.subr.mxu0 0.0
        %2214 = vmatpush1.msra.mxu0 %v348
        %2215 = vmatprep.subr.mxu0 0.0
        %2216 = vmatpush1.msra.mxu0 %v349
        %2217 = vmatprep.subr.mxu0 0.0
        %2218 = vmatpush1.msra.mxu0 0.0
        %2219 = vmatprep.subr.mxu0 0.0
        %2220 = vmatpush1.msra.mxu0 0.0
        %2221 = vmatprep.subr.mxu0 0.0
        %2222 = vmatpush1.msra.mxu0 0.0
        %2223 = vmatprep.subr.mxu0 0.0
        %2224 = vmatpush1.msra.mxu0 0.0
        %2225 = vmatprep.subr.mxu0 0.0
        %2226 = vmatpush1.msra.mxu0 0.0
        %2227 = vmatprep.subr.mxu0 0.0
        %2228 = vmatpush1.msra.mxu0 0.0
        %2229 = vmatprep.subr.mxu0 0.0
        %2230 = vmatpush1.msra.mxu0 0.0
        %2231 = vmatprep.subr.mxu0 0.0
        %2232 = vmatpush1.msra.mxu0 0.0
        %2233 = vmatprep.subr.mxu0 0.0
        %2234 = vmatpush1.msra.mxu0 0.0
        %2235 = vmatprep.subr.mxu0 0.0
        %2236 = vmatpush1.msra.mxu0 0.0
        %2237 = vmatprep.subr.mxu0 0.0
        %2238 = vmatpush1.msra.mxu0 0.0
        %2239 = vmatprep.subr.mxu0 0.0
        %2240 = vmatpush1.msra.mxu0 0.0
        %2241 = vmatprep.subr.mxu0 0.0
        %2242 = vmatpush1.msra.mxu0 0.0
        %2243 = vmatprep.subr.mxu0 0.0
        %2244 = vmatpush1.msra.mxu0 0.0
        %2245 = vmatprep.subr.mxu0 0.0
        %2246 = vmatpush1.msra.mxu0 0.0
        %2247 = vmatprep.subr.mxu0 0.0
        %2248 = vmatpush1.msra.mxu0 0.0
        %2249 = vmatprep.subr.mxu0 0.0
        %2250 = vmatpush1.msra.mxu0 0.0
        %2251 = vmatprep.subr.mxu0 0.0
        %2252 = vmatpush1.msra.mxu0 0.0
        %2253 = vmatprep.subr.mxu0 0.0
        %2254 = vmatpush1.msra.mxu0 0.0
        %2255 = vmatprep.subr.mxu0 0.0
        %2256 = vmatpush1.msra.mxu0 0.0
        %2257 = vmatprep.subr.mxu0 0.0
        %2258 = vmatpush1.msra.mxu0 0.0
        %2259 = vmatprep.subr.mxu0 0.0
        %2260 = vmatpush1.msra.mxu0 0.0
        %2261 = vmatprep.subr.mxu0 0.0
        %2262 = vmatpush1.msra.mxu0 0.0
        %2263 = vmatprep.subr.mxu0 0.0
        %2264 = vmatpush1.msra.mxu0 0.0
        %2265 = vmatprep.subr.mxu0 0.0
        %2266 = vmatpush1.msra.mxu0 0.0
        %2267 = vmatprep.subr.mxu0 0.0
        %2268 = vmatpush1.msra.mxu0 0.0
        %2269 = vmatprep.subr.mxu0 0.0
        %2270 = vmatpush1.msra.mxu0 0.0
        %2271 = vmatprep.subr.mxu0 0.0
        %2272 = vmatpush1.msra.mxu0 0.0
        %2273 = vmatprep.mubr.f32.mxu0 0.0
        %2274 = vmatmul.mubr.f32.gmra.mrb[0].mxu0 %v2207
        %v2275 = vpop.f32.mrb[0].mxu0
        %v2276 = vadd.f32 %v1693, %v2275
        %v2277 = vpop.f32.mrb[0].mxu0
        %2278 = vdwg.mxu0
        %2279 = vxpose.xlu0.b32.start [1/16] %v991, 128
        %2280 = vxpose.xlu0.b32.cont [2/16] 0.0, 128
        %2281 = vxpose.xlu0.b32.cont [3/16] 0.0, 128
        %2282 = vxpose.xlu0.b32.cont [4/16] 0.0, 128
        %2283 = vxpose.xlu0.b32.cont [5/16] 0.0, 128
        %2284 = vxpose.xlu0.b32.cont [6/16] 0.0, 128
        %2285 = vxpose.xlu0.b32.cont [7/16] 0.0, 128
        %2286 = vxpose.xlu0.b32.cont [8/16] 0.0, 128
        %2287 = vxpose.xlu0.b32.cont [9/16] 0.0, 128
        %2288 = vxpose.xlu0.b32.cont [10/16] 0.0, 128
        %2289 = vxpose.xlu0.b32.cont [11/16] 0.0, 128
        %2290 = vxpose.xlu0.b32.cont [12/16] 0.0, 128
        %2291 = vxpose.xlu0.b32.cont [13/16] 0.0, 128
        %2292 = vxpose.xlu0.b32.cont [14/16] 0.0, 128
        %2293 = vxpose.xlu0.b32.cont [15/16] 0.0, 128
        %2294 = vxpose.xlu0.b32.end [16/16] 0.0, 128
        %v2295 = vpop.trf.xlu0
        %v2296 = vpop.trf.xlu0
        %v2297 = vpop.trf.xlu0
        %v2298 = vpop.trf.xlu0
        %v2299 = vpop.trf.xlu0
        %v2300 = vpop.trf.xlu0
        %v2301 = vpop.trf.xlu0
        %v2302 = vpop.trf.xlu0
        %v2303 = vpop.trf.xlu0
        %v2304 = vpop.trf.xlu0
        %v2305 = vpop.trf.xlu0
        %v2306 = vpop.trf.xlu0
        %v2307 = vpop.trf.xlu0
        %v2308 = vpop.trf.xlu0
        %v2309 = vpop.trf.xlu0
        %v2310 = vpop.trf.xlu0
        %vm2311 = vcmask 31744
        %v2313 = vsel %vm2311, %v2295, 0
        %v2316 = vsel %vm2311, %v2296, 0
        %v2319 = vsel %vm2311, %v2297, 0
        %v2322 = vsel %vm2311, %v2298, 0
        %v2325 = vsel %vm2311, %v2299, 0
        %v2328 = vsel %vm2311, %v2300, 0
        %v2331 = vsel %vm2311, %v2301, 0
        %v2334 = vsel %vm2311, %v2302, 0
        %vm2336 = vcmask 1043456
        %v2338 = vsel %vm2336, %v1125, 0
        %2340 = vmatprep.subr.mxu0 0.0
        %2341 = vmatpush1.msra.mxu0 %v2338
        %2342 = vmatprep.subr.mxu0 0.0
        %2343 = vmatpush1.msra.mxu0 0.0
        %2344 = vmatprep.subr.mxu0 0.0
        %2345 = vmatpush1.msra.mxu0 0.0
        %2346 = vmatprep.subr.mxu0 0.0
        %2347 = vmatpush1.msra.mxu0 0.0
        %2348 = vmatprep.subr.mxu0 0.0
        %2349 = vmatpush1.msra.mxu0 0.0
        %2350 = vmatprep.subr.mxu0 0.0
        %2351 = vmatpush1.msra.mxu0 0.0
        %2352 = vmatprep.subr.mxu0 0.0
        %2353 = vmatpush1.msra.mxu0 0.0
        %2354 = vmatprep.subr.mxu0 0.0
        %2355 = vmatpush1.msra.mxu0 0.0
        %2356 = vmatprep.subr.mxu0 0.0
        %2357 = vmatpush1.msra.mxu0 0.0
        %2358 = vmatprep.subr.mxu0 0.0
        %2359 = vmatpush1.msra.mxu0 0.0
        %2360 = vmatprep.subr.mxu0 0.0
        %2361 = vmatpush1.msra.mxu0 0.0
        %2362 = vmatprep.subr.mxu0 0.0
        %2363 = vmatpush1.msra.mxu0 0.0
        %2364 = vmatprep.subr.mxu0 0.0
        %2365 = vmatpush1.msra.mxu0 0.0
        %2366 = vmatprep.subr.mxu0 0.0
        %2367 = vmatpush1.msra.mxu0 0.0
        %2368 = vmatprep.subr.mxu0 0.0
        %2369 = vmatpush1.msra.mxu0 0.0
        %2370 = vmatprep.subr.mxu0 0.0
        %2371 = vmatpush1.msra.mxu0 0.0
        %2372 = vmatprep.subr.mxu0 0.0
        %2373 = vmatpush1.msra.mxu0 0.0
        %2374 = vmatprep.subr.mxu0 0.0
        %2375 = vmatpush1.msra.mxu0 0.0
        %2376 = vmatprep.subr.mxu0 0.0
        %2377 = vmatpush1.msra.mxu0 0.0
        %2378 = vmatprep.subr.mxu0 0.0
        %2379 = vmatpush1.msra.mxu0 0.0
        %2380 = vmatprep.subr.mxu0 0.0
        %2381 = vmatpush1.msra.mxu0 0.0
        %2382 = vmatprep.subr.mxu0 0.0
        %2383 = vmatpush1.msra.mxu0 0.0
        %2384 = vmatprep.subr.mxu0 0.0
        %2385 = vmatpush1.msra.mxu0 0.0
        %2386 = vmatprep.subr.mxu0 0.0
        %2387 = vmatpush1.msra.mxu0 0.0
        %2388 = vmatprep.subr.mxu0 0.0
        %2389 = vmatpush1.msra.mxu0 0.0
        %2390 = vmatprep.subr.mxu0 0.0
        %2391 = vmatpush1.msra.mxu0 0.0
        %2392 = vmatprep.subr.mxu0 0.0
        %2393 = vmatpush1.msra.mxu0 0.0
        %2394 = vmatprep.subr.mxu0 0.0
        %2395 = vmatpush1.msra.mxu0 0.0
        %2396 = vmatprep.subr.mxu0 0.0
        %2397 = vmatpush1.msra.mxu0 0.0
        %2398 = vmatprep.subr.mxu0 0.0
        %2399 = vmatpush1.msra.mxu0 0.0
        %2400 = vmatprep.subr.mxu0 0.0
        %2401 = vmatpush1.msra.mxu0 0.0
        %2402 = vmatprep.subr.mxu0 0.0
        %2403 = vmatpush1.msra.mxu0 0.0
        %2404 = vmatprep.mubr.f32.mxu0 0.0
        %2405 = vmatmul.mubr.f32.gmra.mrb[0].mxu0 %v2313
        %v2406 = vpop.f32.mrb[0].mxu0
        %v2407 = vadd.f32 0.0, %v2406
        %v2408 = vpop.f32.mrb[0].mxu0
        %2409 = vmatprep.mubr.f32.mxu0 0.0
        %2410 = vmatmul.mubr.f32.gmra.mrb[0].mxu0 %v2316
        %v2411 = vpop.f32.mrb[0].mxu0
        %v2412 = vadd.f32 0.0, %v2411
        %v2413 = vpop.f32.mrb[0].mxu0
        %2414 = vmatprep.mubr.f32.mxu0 0.0
        %2415 = vmatmul.mubr.f32.gmra.mrb[0].mxu0 %v2319
        %v2416 = vpop.f32.mrb[0].mxu0
        %v2417 = vadd.f32 0.0, %v2416
        %v2418 = vpop.f32.mrb[0].mxu0
        %2419 = vmatprep.mubr.f32.mxu0 0.0
        %2420 = vmatmul.mubr.f32.gmra.mrb[0].mxu0 %v2322
        %v2421 = vpop.f32.mrb[0].mxu0
        %v2422 = vadd.f32 0.0, %v2421
        %v2423 = vpop.f32.mrb[0].mxu0
        %2424 = vmatprep.mubr.f32.mxu0 0.0
        %2425 = vmatmul.mubr.f32.gmra.mrb[0].mxu0 %v2325
        %v2426 = vpop.f32.mrb[0].mxu0
        %v2427 = vadd.f32 0.0, %v2426
        %v2428 = vpop.f32.mrb[0].mxu0
        %2429 = vmatprep.mubr.f32.mxu0 0.0
        %2430 = vmatmul.mubr.f32.gmra.mrb[0].mxu0 %v2328
        %v2431 = vpop.f32.mrb[0].mxu0
        %v2432 = vadd.f32 0.0, %v2431
        %v2433 = vpop.f32.mrb[0].mxu0
        %2434 = vmatprep.mubr.f32.mxu0 0.0
        %2435 = vmatmul.mubr.f32.gmra.mrb[0].mxu0 %v2331
        %v2436 = vpop.f32.mrb[0].mxu0
        %v2437 = vadd.f32 0.0, %v2436
        %v2438 = vpop.f32.mrb[0].mxu0
        %2439 = vmatprep.mubr.f32.mxu0 0.0
        %2440 = vmatmul.mubr.f32.gmra.mrb[0].mxu0 %v2334
        %v2441 = vpop.f32.mrb[0].mxu0
        %v2442 = vadd.f32 0.0, %v2441
        %v2443 = vpop.f32.mrb[0].mxu0
        %2444 = vdwg.mxu0
        %2445 = vxpose.xlu0.b32.start [1/16] %v992, 128
        %2446 = vxpose.xlu0.b32.cont [2/16] 0.0, 128
        %2447 = vxpose.xlu0.b32.cont [3/16] 0.0, 128
        %2448 = vxpose.xlu0.b32.cont [4/16] 0.0, 128
        %2449 = vxpose.xlu0.b32.cont [5/16] 0.0, 128
        %2450 = vxpose.xlu0.b32.cont [6/16] 0.0, 128
        %2451 = vxpose.xlu0.b32.cont [7/16] 0.0, 128
        %2452 = vxpose.xlu0.b32.cont [8/16] 0.0, 128
        %2453 = vxpose.xlu0.b32.cont [9/16] 0.0, 128
        %2454 = vxpose.xlu0.b32.cont [10/16] 0.0, 128
        %2455 = vxpose.xlu0.b32.cont [11/16] 0.0, 128
        %2456 = vxpose.xlu0.b32.cont [12/16] 0.0, 128
        %2457 = vxpose.xlu0.b32.cont [13/16] 0.0, 128
        %2458 = vxpose.xlu0.b32.cont [14/16] 0.0, 128
        %2459 = vxpose.xlu0.b32.cont [15/16] 0.0, 128
        %2460 = vxpose.xlu0.b32.end [16/16] 0.0, 128
        %v2461 = vpop.trf.xlu0
        %v2462 = vpop.trf.xlu0
        %v2463 = vpop.trf.xlu0
        %v2464 = vpop.trf.xlu0
        %v2465 = vpop.trf.xlu0
        %v2466 = vpop.trf.xlu0
        %v2467 = vpop.trf.xlu0
        %v2468 = vpop.trf.xlu0
        %v2469 = vpop.trf.xlu0
        %v2470 = vpop.trf.xlu0
        %v2471 = vpop.trf.xlu0
        %v2472 = vpop.trf.xlu0
        %v2473 = vpop.trf.xlu0
        %v2474 = vpop.trf.xlu0
        %v2475 = vpop.trf.xlu0
        %v2476 = vpop.trf.xlu0
        %v2478 = vsel %vm2311, %v2461, 0
        %v2481 = vsel %vm2311, %v2462, 0
        %v2484 = vsel %vm2311, %v2463, 0
        %v2487 = vsel %vm2311, %v2464, 0
        %v2490 = vsel %vm2311, %v2465, 0
        %v2493 = vsel %vm2311, %v2466, 0
        %v2496 = vsel %vm2311, %v2467, 0
        %v2499 = vsel %vm2311, %v2468, 0
        %v2502 = vsel %vm2336, %v1198, 0
        %2504 = vmatprep.subr.mxu0 0.0
        %2505 = vmatpush1.msra.mxu0 %v2502
        %2506 = vmatprep.subr.mxu0 0.0
        %2507 = vmatpush1.msra.mxu0 0.0
        %2508 = vmatprep.subr.mxu0 0.0
        %2509 = vmatpush1.msra.mxu0 0.0
        %2510 = vmatprep.subr.mxu0 0.0
        %2511 = vmatpush1.msra.mxu0 0.0
        %2512 = vmatprep.subr.mxu0 0.0
        %2513 = vmatpush1.msra.mxu0 0.0
        %2514 = vmatprep.subr.mxu0 0.0
        %2515 = vmatpush1.msra.mxu0 0.0
        %2516 = vmatprep.subr.mxu0 0.0
        %2517 = vmatpush1.msra.mxu0 0.0
        %2518 = vmatprep.subr.mxu0 0.0
        %2519 = vmatpush1.msra.mxu0 0.0
        %2520 = vmatprep.subr.mxu0 0.0
        %2521 = vmatpush1.msra.mxu0 0.0
        %2522 = vmatprep.subr.mxu0 0.0
        %2523 = vmatpush1.msra.mxu0 0.0
        %2524 = vmatprep.subr.mxu0 0.0
        %2525 = vmatpush1.msra.mxu0 0.0
        %2526 = vmatprep.subr.mxu0 0.0
        %2527 = vmatpush1.msra.mxu0 0.0
        %2528 = vmatprep.subr.mxu0 0.0
        %2529 = vmatpush1.msra.mxu0 0.0
        %2530 = vmatprep.subr.mxu0 0.0
        %2531 = vmatpush1.msra.mxu0 0.0
        %2532 = vmatprep.subr.mxu0 0.0
        %2533 = vmatpush1.msra.mxu0 0.0
        %2534 = vmatprep.subr.mxu0 0.0
        %2535 = vmatpush1.msra.mxu0 0.0
        %2536 = vmatprep.subr.mxu0 0.0
        %2537 = vmatpush1.msra.mxu0 0.0
        %2538 = vmatprep.subr.mxu0 0.0
        %2539 = vmatpush1.msra.mxu0 0.0
        %2540 = vmatprep.subr.mxu0 0.0
        %2541 = vmatpush1.msra.mxu0 0.0
        %2542 = vmatprep.subr.mxu0 0.0
        %2543 = vmatpush1.msra.mxu0 0.0
        %2544 = vmatprep.subr.mxu0 0.0
        %2545 = vmatpush1.msra.mxu0 0.0
        %2546 = vmatprep.subr.mxu0 0.0
        %2547 = vmatpush1.msra.mxu0 0.0
        %2548 = vmatprep.subr.mxu0 0.0
        %2549 = vmatpush1.msra.mxu0 0.0
        %2550 = vmatprep.subr.mxu0 0.0
        %2551 = vmatpush1.msra.mxu0 0.0
        %2552 = vmatprep.subr.mxu0 0.0
        %2553 = vmatpush1.msra.mxu0 0.0
        %2554 = vmatprep.subr.mxu0 0.0
        %2555 = vmatpush1.msra.mxu0 0.0
        %2556 = vmatprep.subr.mxu0 0.0
        %2557 = vmatpush1.msra.mxu0 0.0
        %2558 = vmatprep.subr.mxu0 0.0
        %2559 = vmatpush1.msra.mxu0 0.0
        %2560 = vmatprep.subr.mxu0 0.0
        %2561 = vmatpush1.msra.mxu0 0.0
        %2562 = vmatprep.subr.mxu0 0.0
        %2563 = vmatpush1.msra.mxu0 0.0
        %2564 = vmatprep.subr.mxu0 0.0
        %2565 = vmatpush1.msra.mxu0 0.0
        %2566 = vmatprep.subr.mxu0 0.0
        %2567 = vmatpush1.msra.mxu0 0.0
        %2568 = vmatprep.mubr.f32.mxu0 0.0
        %2569 = vmatmul.mubr.f32.gmra.mrb[0].mxu0 %v2478
        %v2570 = vpop.f32.mrb[0].mxu0
        %v2571 = vadd.f32 0.0, %v2570
        %v2572 = vpop.f32.mrb[0].mxu0
        %2573 = vmatprep.mubr.f32.mxu0 0.0
        %2574 = vmatmul.mubr.f32.gmra.mrb[0].mxu0 %v2481
        %v2575 = vpop.f32.mrb[0].mxu0
        %v2576 = vadd.f32 0.0, %v2575
        %v2577 = vpop.f32.mrb[0].mxu0
        %2578 = vmatprep.mubr.f32.mxu0 0.0
        %2579 = vmatmul.mubr.f32.gmra.mrb[0].mxu0 %v2484
        %v2580 = vpop.f32.mrb[0].mxu0
        %v2581 = vadd.f32 0.0, %v2580
        %v2582 = vpop.f32.mrb[0].mxu0
        %2583 = vmatprep.mubr.f32.mxu0 0.0
        %2584 = vmatmul.mubr.f32.gmra.mrb[0].mxu0 %v2487
        %v2585 = vpop.f32.mrb[0].mxu0
        %v2586 = vadd.f32 0.0, %v2585
        %v2587 = vpop.f32.mrb[0].mxu0
        %2588 = vmatprep.mubr.f32.mxu0 0.0
        %2589 = vmatmul.mubr.f32.gmra.mrb[0].mxu0 %v2490
        %v2590 = vpop.f32.mrb[0].mxu0
        %v2591 = vadd.f32 0.0, %v2590
        %v2592 = vpop.f32.mrb[0].mxu0
        %2593 = vmatprep.mubr.f32.mxu0 0.0
        %2594 = vmatmul.mubr.f32.gmra.mrb[0].mxu0 %v2493
        %v2595 = vpop.f32.mrb[0].mxu0
        %v2596 = vadd.f32 0.0, %v2595
        %v2597 = vpop.f32.mrb[0].mxu0
        %2598 = vmatprep.mubr.f32.mxu0 0.0
        %2599 = vmatmul.mubr.f32.gmra.mrb[0].mxu0 %v2496
        %v2600 = vpop.f32.mrb[0].mxu0
        %v2601 = vadd.f32 0.0, %v2600
        %v2602 = vpop.f32.mrb[0].mxu0
        %2603 = vmatprep.mubr.f32.mxu0 0.0
        %2604 = vmatmul.mubr.f32.gmra.mrb[0].mxu0 %v2499
        %v2605 = vpop.f32.mrb[0].mxu0
        %v2606 = vadd.f32 0.0, %v2605
        %v2607 = vpop.f32.mrb[0].mxu0
        %2608 = vdwg.mxu0
        %2609 = vxpose.xlu0.b32.start [1/16] %v993, 128
        %2610 = vxpose.xlu0.b32.cont [2/16] 0.0, 128
        %2611 = vxpose.xlu0.b32.cont [3/16] 0.0, 128
        %2612 = vxpose.xlu0.b32.cont [4/16] 0.0, 128
        %2613 = vxpose.xlu0.b32.cont [5/16] 0.0, 128
        %2614 = vxpose.xlu0.b32.cont [6/16] 0.0, 128
        %2615 = vxpose.xlu0.b32.cont [7/16] 0.0, 128
        %2616 = vxpose.xlu0.b32.cont [8/16] 0.0, 128
        %2617 = vxpose.xlu0.b32.cont [9/16] 0.0, 128
        %2618 = vxpose.xlu0.b32.cont [10/16] 0.0, 128
        %2619 = vxpose.xlu0.b32.cont [11/16] 0.0, 128
        %2620 = vxpose.xlu0.b32.cont [12/16] 0.0, 128
        %2621 = vxpose.xlu0.b32.cont [13/16] 0.0, 128
        %2622 = vxpose.xlu0.b32.cont [14/16] 0.0, 128
        %2623 = vxpose.xlu0.b32.cont [15/16] 0.0, 128
        %2624 = vxpose.xlu0.b32.end [16/16] 0.0, 128
        %v2625 = vpop.trf.xlu0
        %v2626 = vpop.trf.xlu0
        %v2627 = vpop.trf.xlu0
        %v2628 = vpop.trf.xlu0
        %v2629 = vpop.trf.xlu0
        %v2630 = vpop.trf.xlu0
        %v2631 = vpop.trf.xlu0
        %v2632 = vpop.trf.xlu0
        %v2633 = vpop.trf.xlu0
        %v2634 = vpop.trf.xlu0
        %v2635 = vpop.trf.xlu0
        %v2636 = vpop.trf.xlu0
        %v2637 = vpop.trf.xlu0
        %v2638 = vpop.trf.xlu0
        %v2639 = vpop.trf.xlu0
        %v2640 = vpop.trf.xlu0
        %v2642 = vsel %vm2311, %v2625, 0
        %v2645 = vsel %vm2311, %v2626, 0
        %v2648 = vsel %vm2311, %v2627, 0
        %v2651 = vsel %vm2311, %v2628, 0
        %v2654 = vsel %vm2311, %v2629, 0
        %v2657 = vsel %vm2311, %v2630, 0
        %v2660 = vsel %vm2311, %v2631, 0
        %v2663 = vsel %vm2311, %v2632, 0
        %v2666 = vsel %vm2336, %v1271, 0
        %2668 = vmatprep.subr.mxu0 0.0
        %2669 = vmatpush1.msra.mxu0 %v2666
        %2670 = vmatprep.subr.mxu0 0.0
        %2671 = vmatpush1.msra.mxu0 0.0
        %2672 = vmatprep.subr.mxu0 0.0
        %2673 = vmatpush1.msra.mxu0 0.0
        %2674 = vmatprep.subr.mxu0 0.0
        %2675 = vmatpush1.msra.mxu0 0.0
        %2676 = vmatprep.subr.mxu0 0.0
        %2677 = vmatpush1.msra.mxu0 0.0
        %2678 = vmatprep.subr.mxu0 0.0
        %2679 = vmatpush1.msra.mxu0 0.0
        %2680 = vmatprep.subr.mxu0 0.0
        %2681 = vmatpush1.msra.mxu0 0.0
        %2682 = vmatprep.subr.mxu0 0.0
        %2683 = vmatpush1.msra.mxu0 0.0
        %2684 = vmatprep.subr.mxu0 0.0
        %2685 = vmatpush1.msra.mxu0 0.0
        %2686 = vmatprep.subr.mxu0 0.0
        %2687 = vmatpush1.msra.mxu0 0.0
        %2688 = vmatprep.subr.mxu0 0.0
        %2689 = vmatpush1.msra.mxu0 0.0
        %2690 = vmatprep.subr.mxu0 0.0
        %2691 = vmatpush1.msra.mxu0 0.0
        %2692 = vmatprep.subr.mxu0 0.0
        %2693 = vmatpush1.msra.mxu0 0.0
        %2694 = vmatprep.subr.mxu0 0.0
        %2695 = vmatpush1.msra.mxu0 0.0
        %2696 = vmatprep.subr.mxu0 0.0
        %2697 = vmatpush1.msra.mxu0 0.0
        %2698 = vmatprep.subr.mxu0 0.0
        %2699 = vmatpush1.msra.mxu0 0.0
        %2700 = vmatprep.subr.mxu0 0.0
        %2701 = vmatpush1.msra.mxu0 0.0
        %2702 = vmatprep.subr.mxu0 0.0
        %2703 = vmatpush1.msra.mxu0 0.0
        %2704 = vmatprep.subr.mxu0 0.0
        %2705 = vmatpush1.msra.mxu0 0.0
        %2706 = vmatprep.subr.mxu0 0.0
        %2707 = vmatpush1.msra.mxu0 0.0
        %2708 = vmatprep.subr.mxu0 0.0
        %2709 = vmatpush1.msra.mxu0 0.0
        %2710 = vmatprep.subr.mxu0 0.0
        %2711 = vmatpush1.msra.mxu0 0.0
        %2712 = vmatprep.subr.mxu0 0.0
        %2713 = vmatpush1.msra.mxu0 0.0
        %2714 = vmatprep.subr.mxu0 0.0
        %2715 = vmatpush1.msra.mxu0 0.0
        %2716 = vmatprep.subr.mxu0 0.0
        %2717 = vmatpush1.msra.mxu0 0.0
        %2718 = vmatprep.subr.mxu0 0.0
        %2719 = vmatpush1.msra.mxu0 0.0
        %2720 = vmatprep.subr.mxu0 0.0
        %2721 = vmatpush1.msra.mxu0 0.0
        %2722 = vmatprep.subr.mxu0 0.0
        %2723 = vmatpush1.msra.mxu0 0.0
        %2724 = vmatprep.subr.mxu0 0.0
        %2725 = vmatpush1.msra.mxu0 0.0
        %2726 = vmatprep.subr.mxu0 0.0
        %2727 = vmatpush1.msra.mxu0 0.0
        %2728 = vmatprep.subr.mxu0 0.0
        %2729 = vmatpush1.msra.mxu0 0.0
        %2730 = vmatprep.subr.mxu0 0.0
        %2731 = vmatpush1.msra.mxu0 0.0
        %2732 = vmatprep.mubr.f32.mxu0 0.0
        %2733 = vmatmul.mubr.f32.gmra.mrb[0].mxu0 %v2642
        %v2734 = vpop.f32.mrb[0].mxu0
        %v2735 = vadd.f32 0.0, %v2734
        %v2736 = vpop.f32.mrb[0].mxu0
        %2737 = vmatprep.mubr.f32.mxu0 0.0
        %2738 = vmatmul.mubr.f32.gmra.mrb[0].mxu0 %v2645
        %v2739 = vpop.f32.mrb[0].mxu0
        %v2740 = vadd.f32 0.0, %v2739
        %v2741 = vpop.f32.mrb[0].mxu0
        %2742 = vmatprep.mubr.f32.mxu0 0.0
        %2743 = vmatmul.mubr.f32.gmra.mrb[0].mxu0 %v2648
        %v2744 = vpop.f32.mrb[0].mxu0
        %v2745 = vadd.f32 0.0, %v2744
        %v2746 = vpop.f32.mrb[0].mxu0
        %2747 = vmatprep.mubr.f32.mxu0 0.0
        %2748 = vmatmul.mubr.f32.gmra.mrb[0].mxu0 %v2651
        %v2749 = vpop.f32.mrb[0].mxu0
        %v2750 = vadd.f32 0.0, %v2749
        %v2751 = vpop.f32.mrb[0].mxu0
        %2752 = vmatprep.mubr.f32.mxu0 0.0
        %2753 = vmatmul.mubr.f32.gmra.mrb[0].mxu0 %v2654
        %v2754 = vpop.f32.mrb[0].mxu0
        %v2755 = vadd.f32 0.0, %v2754
        %v2756 = vpop.f32.mrb[0].mxu0
        %2757 = vmatprep.mubr.f32.mxu0 0.0
        %2758 = vmatmul.mubr.f32.gmra.mrb[0].mxu0 %v2657
        %v2759 = vpop.f32.mrb[0].mxu0
        %v2760 = vadd.f32 0.0, %v2759
        %v2761 = vpop.f32.mrb[0].mxu0
        %2762 = vmatprep.mubr.f32.mxu0 0.0
        %2763 = vmatmul.mubr.f32.gmra.mrb[0].mxu0 %v2660
        %v2764 = vpop.f32.mrb[0].mxu0
        %v2765 = vadd.f32 0.0, %v2764
        %v2766 = vpop.f32.mrb[0].mxu0
        %2767 = vmatprep.mubr.f32.mxu0 0.0
        %2768 = vmatmul.mubr.f32.gmra.mrb[0].mxu0 %v2663
        %v2769 = vpop.f32.mrb[0].mxu0
        %v2770 = vadd.f32 0.0, %v2769
        %v2771 = vpop.f32.mrb[0].mxu0
        %2772 = vdwg.mxu0
        %2773 = vxpose.xlu0.b32.start [1/16] %v994, 128
        %2774 = vxpose.xlu0.b32.cont [2/16] 0.0, 128
        %2775 = vxpose.xlu0.b32.cont [3/16] 0.0, 128
        %2776 = vxpose.xlu0.b32.cont [4/16] 0.0, 128
        %2777 = vxpose.xlu0.b32.cont [5/16] 0.0, 128
        %2778 = vxpose.xlu0.b32.cont [6/16] 0.0, 128
        %2779 = vxpose.xlu0.b32.cont [7/16] 0.0, 128
        %2780 = vxpose.xlu0.b32.cont [8/16] 0.0, 128
        %2781 = vxpose.xlu0.b32.cont [9/16] 0.0, 128
        %2782 = vxpose.xlu0.b32.cont [10/16] 0.0, 128
        %2783 = vxpose.xlu0.b32.cont [11/16] 0.0, 128
        %2784 = vxpose.xlu0.b32.cont [12/16] 0.0, 128
        %2785 = vxpose.xlu0.b32.cont [13/16] 0.0, 128
        %2786 = vxpose.xlu0.b32.cont [14/16] 0.0, 128
        %2787 = vxpose.xlu0.b32.cont [15/16] 0.0, 128
        %2788 = vxpose.xlu0.b32.end [16/16] 0.0, 128
        %v2789 = vpop.trf.xlu0
        %v2790 = vpop.trf.xlu0
        %v2791 = vpop.trf.xlu0
        %v2792 = vpop.trf.xlu0
        %v2793 = vpop.trf.xlu0
        %v2794 = vpop.trf.xlu0
        %v2795 = vpop.trf.xlu0
        %v2796 = vpop.trf.xlu0
        %v2797 = vpop.trf.xlu0
        %v2798 = vpop.trf.xlu0
        %v2799 = vpop.trf.xlu0
        %v2800 = vpop.trf.xlu0
        %v2801 = vpop.trf.xlu0
        %v2802 = vpop.trf.xlu0
        %v2803 = vpop.trf.xlu0
        %v2804 = vpop.trf.xlu0
        %v2806 = vsel %vm2311, %v2789, 0
        %v2809 = vsel %vm2311, %v2790, 0
        %v2812 = vsel %vm2311, %v2791, 0
        %v2815 = vsel %vm2311, %v2792, 0
        %v2818 = vsel %vm2311, %v2793, 0
        %v2821 = vsel %vm2311, %v2794, 0
        %v2824 = vsel %vm2311, %v2795, 0
        %v2827 = vsel %vm2311, %v2796, 0
        %v2830 = vsel %vm2336, %v1344, 0
        %2832 = vmatprep.subr.mxu0 0.0
        %2833 = vmatpush1.msra.mxu0 %v2830
        %2834 = vmatprep.subr.mxu0 0.0
        %2835 = vmatpush1.msra.mxu0 0.0
        %2836 = vmatprep.subr.mxu0 0.0
        %2837 = vmatpush1.msra.mxu0 0.0
        %2838 = vmatprep.subr.mxu0 0.0
        %2839 = vmatpush1.msra.mxu0 0.0
        %2840 = vmatprep.subr.mxu0 0.0
        %2841 = vmatpush1.msra.mxu0 0.0
        %2842 = vmatprep.subr.mxu0 0.0
        %2843 = vmatpush1.msra.mxu0 0.0
        %2844 = vmatprep.subr.mxu0 0.0
        %2845 = vmatpush1.msra.mxu0 0.0
        %2846 = vmatprep.subr.mxu0 0.0
        %2847 = vmatpush1.msra.mxu0 0.0
        %2848 = vmatprep.subr.mxu0 0.0
        %2849 = vmatpush1.msra.mxu0 0.0
        %2850 = vmatprep.subr.mxu0 0.0
        %2851 = vmatpush1.msra.mxu0 0.0
        %2852 = vmatprep.subr.mxu0 0.0
        %2853 = vmatpush1.msra.mxu0 0.0
        %2854 = vmatprep.subr.mxu0 0.0
        %2855 = vmatpush1.msra.mxu0 0.0
        %2856 = vmatprep.subr.mxu0 0.0
        %2857 = vmatpush1.msra.mxu0 0.0
        %2858 = vmatprep.subr.mxu0 0.0
        %2859 = vmatpush1.msra.mxu0 0.0
        %2860 = vmatprep.subr.mxu0 0.0
        %2861 = vmatpush1.msra.mxu0 0.0
        %2862 = vmatprep.subr.mxu0 0.0
        %2863 = vmatpush1.msra.mxu0 0.0
        %2864 = vmatprep.subr.mxu0 0.0
        %2865 = vmatpush1.msra.mxu0 0.0
        %2866 = vmatprep.subr.mxu0 0.0
        %2867 = vmatpush1.msra.mxu0 0.0
        %2868 = vmatprep.subr.mxu0 0.0
        %2869 = vmatpush1.msra.mxu0 0.0
        %2870 = vmatprep.subr.mxu0 0.0
        %2871 = vmatpush1.msra.mxu0 0.0
        %2872 = vmatprep.subr.mxu0 0.0
        %2873 = vmatpush1.msra.mxu0 0.0
        %2874 = vmatprep.subr.mxu0 0.0
        %2875 = vmatpush1.msra.mxu0 0.0
        %2876 = vmatprep.subr.mxu0 0.0
        %2877 = vmatpush1.msra.mxu0 0.0
        %2878 = vmatprep.subr.mxu0 0.0
        %2879 = vmatpush1.msra.mxu0 0.0
        %2880 = vmatprep.subr.mxu0 0.0
        %2881 = vmatpush1.msra.mxu0 0.0
        %2882 = vmatprep.subr.mxu0 0.0
        %2883 = vmatpush1.msra.mxu0 0.0
        %2884 = vmatprep.subr.mxu0 0.0
        %2885 = vmatpush1.msra.mxu0 0.0
        %2886 = vmatprep.subr.mxu0 0.0
        %2887 = vmatpush1.msra.mxu0 0.0
        %2888 = vmatprep.subr.mxu0 0.0
        %2889 = vmatpush1.msra.mxu0 0.0
        %2890 = vmatprep.subr.mxu0 0.0
        %2891 = vmatpush1.msra.mxu0 0.0
        %2892 = vmatprep.subr.mxu0 0.0
        %2893 = vmatpush1.msra.mxu0 0.0
        %2894 = vmatprep.subr.mxu0 0.0
        %2895 = vmatpush1.msra.mxu0 0.0
        %2896 = vmatprep.mubr.f32.mxu0 0.0
        %2897 = vmatmul.mubr.f32.gmra.mrb[0].mxu0 %v2806
        %v2898 = vpop.f32.mrb[0].mxu0
        %v2899 = vadd.f32 0.0, %v2898
        %v2900 = vpop.f32.mrb[0].mxu0
        %2901 = vmatprep.mubr.f32.mxu0 0.0
        %2902 = vmatmul.mubr.f32.gmra.mrb[0].mxu0 %v2809
        %v2903 = vpop.f32.mrb[0].mxu0
        %v2904 = vadd.f32 0.0, %v2903
        %v2905 = vpop.f32.mrb[0].mxu0
        %2906 = vmatprep.mubr.f32.mxu0 0.0
        %2907 = vmatmul.mubr.f32.gmra.mrb[0].mxu0 %v2812
        %v2908 = vpop.f32.mrb[0].mxu0
        %v2909 = vadd.f32 0.0, %v2908
        %v2910 = vpop.f32.mrb[0].mxu0
        %2911 = vmatprep.mubr.f32.mxu0 0.0
        %2912 = vmatmul.mubr.f32.gmra.mrb[0].mxu0 %v2815
        %v2913 = vpop.f32.mrb[0].mxu0
        %v2914 = vadd.f32 0.0, %v2913
        %v2915 = vpop.f32.mrb[0].mxu0
        %2916 = vmatprep.mubr.f32.mxu0 0.0
        %2917 = vmatmul.mubr.f32.gmra.mrb[0].mxu0 %v2818
        %v2918 = vpop.f32.mrb[0].mxu0
        %v2919 = vadd.f32 0.0, %v2918
        %v2920 = vpop.f32.mrb[0].mxu0
        %2921 = vmatprep.mubr.f32.mxu0 0.0
        %2922 = vmatmul.mubr.f32.gmra.mrb[0].mxu0 %v2821
        %v2923 = vpop.f32.mrb[0].mxu0
        %v2924 = vadd.f32 0.0, %v2923
        %v2925 = vpop.f32.mrb[0].mxu0
        %2926 = vmatprep.mubr.f32.mxu0 0.0
        %2927 = vmatmul.mubr.f32.gmra.mrb[0].mxu0 %v2824
        %v2928 = vpop.f32.mrb[0].mxu0
        %v2929 = vadd.f32 0.0, %v2928
        %v2930 = vpop.f32.mrb[0].mxu0
        %2931 = vmatprep.mubr.f32.mxu0 0.0
        %2932 = vmatmul.mubr.f32.gmra.mrb[0].mxu0 %v2827
        %v2933 = vpop.f32.mrb[0].mxu0
        %v2934 = vadd.f32 0.0, %v2933
        %v2935 = vpop.f32.mrb[0].mxu0
        %2936 = vdwg.mxu0
        %2937 = vxpose.xlu0.b32.start [1/16] %v995, 128
        %2938 = vxpose.xlu0.b32.cont [2/16] 0.0, 128
        %2939 = vxpose.xlu0.b32.cont [3/16] 0.0, 128
        %2940 = vxpose.xlu0.b32.cont [4/16] 0.0, 128
        %2941 = vxpose.xlu0.b32.cont [5/16] 0.0, 128
        %2942 = vxpose.xlu0.b32.cont [6/16] 0.0, 128
        %2943 = vxpose.xlu0.b32.cont [7/16] 0.0, 128
        %2944 = vxpose.xlu0.b32.cont [8/16] 0.0, 128
        %2945 = vxpose.xlu0.b32.cont [9/16] 0.0, 128
        %2946 = vxpose.xlu0.b32.cont [10/16] 0.0, 128
        %2947 = vxpose.xlu0.b32.cont [11/16] 0.0, 128
        %2948 = vxpose.xlu0.b32.cont [12/16] 0.0, 128
        %2949 = vxpose.xlu0.b32.cont [13/16] 0.0, 128
        %2950 = vxpose.xlu0.b32.cont [14/16] 0.0, 128
        %2951 = vxpose.xlu0.b32.cont [15/16] 0.0, 128
        %2952 = vxpose.xlu0.b32.end [16/16] 0.0, 128
        %v2953 = vpop.trf.xlu0
        %v2954 = vpop.trf.xlu0
        %v2955 = vpop.trf.xlu0
        %v2956 = vpop.trf.xlu0
        %v2957 = vpop.trf.xlu0
        %v2958 = vpop.trf.xlu0
        %v2959 = vpop.trf.xlu0
        %v2960 = vpop.trf.xlu0
        %v2961 = vpop.trf.xlu0
        %v2962 = vpop.trf.xlu0
        %v2963 = vpop.trf.xlu0
        %v2964 = vpop.trf.xlu0
        %v2965 = vpop.trf.xlu0
        %v2966 = vpop.trf.xlu0
        %v2967 = vpop.trf.xlu0
        %v2968 = vpop.trf.xlu0
        %v2970 = vsel %vm2311, %v2953, 0
        %v2973 = vsel %vm2311, %v2954, 0
        %v2976 = vsel %vm2311, %v2955, 0
        %v2979 = vsel %vm2311, %v2956, 0
        %v2982 = vsel %vm2311, %v2957, 0
        %v2985 = vsel %vm2311, %v2958, 0
        %v2988 = vsel %vm2311, %v2959, 0
        %v2991 = vsel %vm2311, %v2960, 0
        %v2994 = vsel %vm2336, %v1417, 0
        %2996 = vmatprep.subr.mxu0 0.0
        %2997 = vmatpush1.msra.mxu0 %v2994
        %2998 = vmatprep.subr.mxu0 0.0
        %2999 = vmatpush1.msra.mxu0 0.0
        %3000 = vmatprep.subr.mxu0 0.0
        %3001 = vmatpush1.msra.mxu0 0.0
        %3002 = vmatprep.subr.mxu0 0.0
        %3003 = vmatpush1.msra.mxu0 0.0
        %3004 = vmatprep.subr.mxu0 0.0
        %3005 = vmatpush1.msra.mxu0 0.0
        %3006 = vmatprep.subr.mxu0 0.0
        %3007 = vmatpush1.msra.mxu0 0.0
        %3008 = vmatprep.subr.mxu0 0.0
        %3009 = vmatpush1.msra.mxu0 0.0
        %3010 = vmatprep.subr.mxu0 0.0
        %3011 = vmatpush1.msra.mxu0 0.0
        %3012 = vmatprep.subr.mxu0 0.0
        %3013 = vmatpush1.msra.mxu0 0.0
        %3014 = vmatprep.subr.mxu0 0.0
        %3015 = vmatpush1.msra.mxu0 0.0
        %3016 = vmatprep.subr.mxu0 0.0
        %3017 = vmatpush1.msra.mxu0 0.0
        %3018 = vmatprep.subr.mxu0 0.0
        %3019 = vmatpush1.msra.mxu0 0.0
        %3020 = vmatprep.subr.mxu0 0.0
        %3021 = vmatpush1.msra.mxu0 0.0
        %3022 = vmatprep.subr.mxu0 0.0
        %3023 = vmatpush1.msra.mxu0 0.0
        %3024 = vmatprep.subr.mxu0 0.0
        %3025 = vmatpush1.msra.mxu0 0.0
        %3026 = vmatprep.subr.mxu0 0.0
        %3027 = vmatpush1.msra.mxu0 0.0
        %3028 = vmatprep.subr.mxu0 0.0
        %3029 = vmatpush1.msra.mxu0 0.0
        %3030 = vmatprep.subr.mxu0 0.0
        %3031 = vmatpush1.msra.mxu0 0.0
        %3032 = vmatprep.subr.mxu0 0.0
        %3033 = vmatpush1.msra.mxu0 0.0
        %3034 = vmatprep.subr.mxu0 0.0
        %3035 = vmatpush1.msra.mxu0 0.0
        %3036 = vmatprep.subr.mxu0 0.0
        %3037 = vmatpush1.msra.mxu0 0.0
        %3038 = vmatprep.subr.mxu0 0.0
        %3039 = vmatpush1.msra.mxu0 0.0
        %3040 = vmatprep.subr.mxu0 0.0
        %3041 = vmatpush1.msra.mxu0 0.0
        %3042 = vmatprep.subr.mxu0 0.0
        %3043 = vmatpush1.msra.mxu0 0.0
        %3044 = vmatprep.subr.mxu0 0.0
        %3045 = vmatpush1.msra.mxu0 0.0
        %3046 = vmatprep.subr.mxu0 0.0
        %3047 = vmatpush1.msra.mxu0 0.0
        %3048 = vmatprep.subr.mxu0 0.0
        %3049 = vmatpush1.msra.mxu0 0.0
        %3050 = vmatprep.subr.mxu0 0.0
        %3051 = vmatpush1.msra.mxu0 0.0
        %3052 = vmatprep.subr.mxu0 0.0
        %3053 = vmatpush1.msra.mxu0 0.0
        %3054 = vmatprep.subr.mxu0 0.0
        %3055 = vmatpush1.msra.mxu0 0.0
        %3056 = vmatprep.subr.mxu0 0.0
        %3057 = vmatpush1.msra.mxu0 0.0
        %3058 = vmatprep.subr.mxu0 0.0
        %3059 = vmatpush1.msra.mxu0 0.0
        %3060 = vmatprep.mubr.f32.mxu0 0.0
        %3061 = vmatmul.mubr.f32.gmra.mrb[0].mxu0 %v2970
        %v3062 = vpop.f32.mrb[0].mxu0
        %v3063 = vadd.f32 0.0, %v3062
        %v3064 = vpop.f32.mrb[0].mxu0
        %3065 = vmatprep.mubr.f32.mxu0 0.0
        %3066 = vmatmul.mubr.f32.gmra.mrb[0].mxu0 %v2973
        %v3067 = vpop.f32.mrb[0].mxu0
        %v3068 = vadd.f32 0.0, %v3067
        %v3069 = vpop.f32.mrb[0].mxu0
        %3070 = vmatprep.mubr.f32.mxu0 0.0
        %3071 = vmatmul.mubr.f32.gmra.mrb[0].mxu0 %v2976
        %v3072 = vpop.f32.mrb[0].mxu0
        %v3073 = vadd.f32 0.0, %v3072
        %v3074 = vpop.f32.mrb[0].mxu0
        %3075 = vmatprep.mubr.f32.mxu0 0.0
        %3076 = vmatmul.mubr.f32.gmra.mrb[0].mxu0 %v2979
        %v3077 = vpop.f32.mrb[0].mxu0
        %v3078 = vadd.f32 0.0, %v3077
        %v3079 = vpop.f32.mrb[0].mxu0
        %3080 = vmatprep.mubr.f32.mxu0 0.0
        %3081 = vmatmul.mubr.f32.gmra.mrb[0].mxu0 %v2982
        %v3082 = vpop.f32.mrb[0].mxu0
        %v3083 = vadd.f32 0.0, %v3082
        %v3084 = vpop.f32.mrb[0].mxu0
        %3085 = vmatprep.mubr.f32.mxu0 0.0
        %3086 = vmatmul.mubr.f32.gmra.mrb[0].mxu0 %v2985
        %v3087 = vpop.f32.mrb[0].mxu0
        %v3088 = vadd.f32 0.0, %v3087
        %v3089 = vpop.f32.mrb[0].mxu0
        %3090 = vmatprep.mubr.f32.mxu0 0.0
        %3091 = vmatmul.mubr.f32.gmra.mrb[0].mxu0 %v2988
        %v3092 = vpop.f32.mrb[0].mxu0
        %v3093 = vadd.f32 0.0, %v3092
        %v3094 = vpop.f32.mrb[0].mxu0
        %3095 = vmatprep.mubr.f32.mxu0 0.0
        %3096 = vmatmul.mubr.f32.gmra.mrb[0].mxu0 %v2991
        %v3097 = vpop.f32.mrb[0].mxu0
        %v3098 = vadd.f32 0.0, %v3097
        %v3099 = vpop.f32.mrb[0].mxu0
        %3100 = vdwg.mxu0
        %3101 = vxpose.xlu0.b32.start [1/16] %v996, 128
        %3102 = vxpose.xlu0.b32.cont [2/16] 0.0, 128
        %3103 = vxpose.xlu0.b32.cont [3/16] 0.0, 128
        %3104 = vxpose.xlu0.b32.cont [4/16] 0.0, 128
        %3105 = vxpose.xlu0.b32.cont [5/16] 0.0, 128
        %3106 = vxpose.xlu0.b32.cont [6/16] 0.0, 128
        %3107 = vxpose.xlu0.b32.cont [7/16] 0.0, 128
        %3108 = vxpose.xlu0.b32.cont [8/16] 0.0, 128
        %3109 = vxpose.xlu0.b32.cont [9/16] 0.0, 128
        %3110 = vxpose.xlu0.b32.cont [10/16] 0.0, 128
        %3111 = vxpose.xlu0.b32.cont [11/16] 0.0, 128
        %3112 = vxpose.xlu0.b32.cont [12/16] 0.0, 128
        %3113 = vxpose.xlu0.b32.cont [13/16] 0.0, 128
        %3114 = vxpose.xlu0.b32.cont [14/16] 0.0, 128
        %3115 = vxpose.xlu0.b32.cont [15/16] 0.0, 128
        %3116 = vxpose.xlu0.b32.end [16/16] 0.0, 128
        %v3117 = vpop.trf.xlu0
        %v3118 = vpop.trf.xlu0
        %v3119 = vpop.trf.xlu0
        %v3120 = vpop.trf.xlu0
        %v3121 = vpop.trf.xlu0
        %v3122 = vpop.trf.xlu0
        %v3123 = vpop.trf.xlu0
        %v3124 = vpop.trf.xlu0
        %v3125 = vpop.trf.xlu0
        %v3126 = vpop.trf.xlu0
        %v3127 = vpop.trf.xlu0
        %v3128 = vpop.trf.xlu0
        %v3129 = vpop.trf.xlu0
        %v3130 = vpop.trf.xlu0
        %v3131 = vpop.trf.xlu0
        %v3132 = vpop.trf.xlu0
        %v3134 = vsel %vm2311, %v3117, 0
        %v3137 = vsel %vm2311, %v3118, 0
        %v3140 = vsel %vm2311, %v3119, 0
        %v3143 = vsel %vm2311, %v3120, 0
        %v3146 = vsel %vm2311, %v3121, 0
        %v3149 = vsel %vm2311, %v3122, 0
        %v3152 = vsel %vm2311, %v3123, 0
        %v3155 = vsel %vm2311, %v3124, 0
        %v3158 = vsel %vm2336, %v1490, 0
        %3160 = vmatprep.subr.mxu0 0.0
        %3161 = vmatpush1.msra.mxu0 %v3158
        %3162 = vmatprep.subr.mxu0 0.0
        %3163 = vmatpush1.msra.mxu0 0.0
        %3164 = vmatprep.subr.mxu0 0.0
        %3165 = vmatpush1.msra.mxu0 0.0
        %3166 = vmatprep.subr.mxu0 0.0
        %3167 = vmatpush1.msra.mxu0 0.0
        %3168 = vmatprep.subr.mxu0 0.0
        %3169 = vmatpush1.msra.mxu0 0.0
        %3170 = vmatprep.subr.mxu0 0.0
        %3171 = vmatpush1.msra.mxu0 0.0
        %3172 = vmatprep.subr.mxu0 0.0
        %3173 = vmatpush1.msra.mxu0 0.0
        %3174 = vmatprep.subr.mxu0 0.0
        %3175 = vmatpush1.msra.mxu0 0.0
        %3176 = vmatprep.subr.mxu0 0.0
        %3177 = vmatpush1.msra.mxu0 0.0
        %3178 = vmatprep.subr.mxu0 0.0
        %3179 = vmatpush1.msra.mxu0 0.0
        %3180 = vmatprep.subr.mxu0 0.0
        %3181 = vmatpush1.msra.mxu0 0.0
        %3182 = vmatprep.subr.mxu0 0.0
        %3183 = vmatpush1.msra.mxu0 0.0
        %3184 = vmatprep.subr.mxu0 0.0
        %3185 = vmatpush1.msra.mxu0 0.0
        %3186 = vmatprep.subr.mxu0 0.0
        %3187 = vmatpush1.msra.mxu0 0.0
        %3188 = vmatprep.subr.mxu0 0.0
        %3189 = vmatpush1.msra.mxu0 0.0
        %3190 = vmatprep.subr.mxu0 0.0
        %3191 = vmatpush1.msra.mxu0 0.0
        %3192 = vmatprep.subr.mxu0 0.0
        %3193 = vmatpush1.msra.mxu0 0.0
        %3194 = vmatprep.subr.mxu0 0.0
        %3195 = vmatpush1.msra.mxu0 0.0
        %3196 = vmatprep.subr.mxu0 0.0
        %3197 = vmatpush1.msra.mxu0 0.0
        %3198 = vmatprep.subr.mxu0 0.0
        %3199 = vmatpush1.msra.mxu0 0.0
        %3200 = vmatprep.subr.mxu0 0.0
        %3201 = vmatpush1.msra.mxu0 0.0
        %3202 = vmatprep.subr.mxu0 0.0
        %3203 = vmatpush1.msra.mxu0 0.0
        %3204 = vmatprep.subr.mxu0 0.0
        %3205 = vmatpush1.msra.mxu0 0.0
        %3206 = vmatprep.subr.mxu0 0.0
        %3207 = vmatpush1.msra.mxu0 0.0
        %3208 = vmatprep.subr.mxu0 0.0
        %3209 = vmatpush1.msra.mxu0 0.0
        %3210 = vmatprep.subr.mxu0 0.0
        %3211 = vmatpush1.msra.mxu0 0.0
        %3212 = vmatprep.subr.mxu0 0.0
        %3213 = vmatpush1.msra.mxu0 0.0
        %3214 = vmatprep.subr.mxu0 0.0
        %3215 = vmatpush1.msra.mxu0 0.0
        %3216 = vmatprep.subr.mxu0 0.0
        %3217 = vmatpush1.msra.mxu0 0.0
        %3218 = vmatprep.subr.mxu0 0.0
        %3219 = vmatpush1.msra.mxu0 0.0
        %3220 = vmatprep.subr.mxu0 0.0
        %3221 = vmatpush1.msra.mxu0 0.0
        %3222 = vmatprep.subr.mxu0 0.0
        %3223 = vmatpush1.msra.mxu0 0.0
        %3224 = vmatprep.mubr.f32.mxu0 0.0
        %3225 = vmatmul.mubr.f32.gmra.mrb[0].mxu0 %v3134
        %v3226 = vpop.f32.mrb[0].mxu0
        %v3227 = vadd.f32 0.0, %v3226
        %v3228 = vpop.f32.mrb[0].mxu0
        %3229 = vmatprep.mubr.f32.mxu0 0.0
        %3230 = vmatmul.mubr.f32.gmra.mrb[0].mxu0 %v3137
        %v3231 = vpop.f32.mrb[0].mxu0
        %v3232 = vadd.f32 0.0, %v3231
        %v3233 = vpop.f32.mrb[0].mxu0
        %3234 = vmatprep.mubr.f32.mxu0 0.0
        %3235 = vmatmul.mubr.f32.gmra.mrb[0].mxu0 %v3140
        %v3236 = vpop.f32.mrb[0].mxu0
        %v3237 = vadd.f32 0.0, %v3236
        %v3238 = vpop.f32.mrb[0].mxu0
        %3239 = vmatprep.mubr.f32.mxu0 0.0
        %3240 = vmatmul.mubr.f32.gmra.mrb[0].mxu0 %v3143
        %v3241 = vpop.f32.mrb[0].mxu0
        %v3242 = vadd.f32 0.0, %v3241
        %v3243 = vpop.f32.mrb[0].mxu0
        %3244 = vmatprep.mubr.f32.mxu0 0.0
        %3245 = vmatmul.mubr.f32.gmra.mrb[0].mxu0 %v3146
        %v3246 = vpop.f32.mrb[0].mxu0
        %v3247 = vadd.f32 0.0, %v3246
        %v3248 = vpop.f32.mrb[0].mxu0
        %3249 = vmatprep.mubr.f32.mxu0 0.0
        %3250 = vmatmul.mubr.f32.gmra.mrb[0].mxu0 %v3149
        %v3251 = vpop.f32.mrb[0].mxu0
        %v3252 = vadd.f32 0.0, %v3251
        %v3253 = vpop.f32.mrb[0].mxu0
        %3254 = vmatprep.mubr.f32.mxu0 0.0
        %3255 = vmatmul.mubr.f32.gmra.mrb[0].mxu0 %v3152
        %v3256 = vpop.f32.mrb[0].mxu0
        %v3257 = vadd.f32 0.0, %v3256
        %v3258 = vpop.f32.mrb[0].mxu0
        %3259 = vmatprep.mubr.f32.mxu0 0.0
        %3260 = vmatmul.mubr.f32.gmra.mrb[0].mxu0 %v3155
        %v3261 = vpop.f32.mrb[0].mxu0
        %v3262 = vadd.f32 0.0, %v3261
        %v3263 = vpop.f32.mrb[0].mxu0
        %3264 = vdwg.mxu0
        %3265 = vxpose.xlu0.b32.start [1/16] %v997, 128
        %3266 = vxpose.xlu0.b32.cont [2/16] 0.0, 128
        %3267 = vxpose.xlu0.b32.cont [3/16] 0.0, 128
        %3268 = vxpose.xlu0.b32.cont [4/16] 0.0, 128
        %3269 = vxpose.xlu0.b32.cont [5/16] 0.0, 128
        %3270 = vxpose.xlu0.b32.cont [6/16] 0.0, 128
        %3271 = vxpose.xlu0.b32.cont [7/16] 0.0, 128
        %3272 = vxpose.xlu0.b32.cont [8/16] 0.0, 128
        %3273 = vxpose.xlu0.b32.cont [9/16] 0.0, 128
        %3274 = vxpose.xlu0.b32.cont [10/16] 0.0, 128
        %3275 = vxpose.xlu0.b32.cont [11/16] 0.0, 128
        %3276 = vxpose.xlu0.b32.cont [12/16] 0.0, 128
        %3277 = vxpose.xlu0.b32.cont [13/16] 0.0, 128
        %3278 = vxpose.xlu0.b32.cont [14/16] 0.0, 128
        %3279 = vxpose.xlu0.b32.cont [15/16] 0.0, 128
        %3280 = vxpose.xlu0.b32.end [16/16] 0.0, 128
        %v3281 = vpop.trf.xlu0
        %v3282 = vpop.trf.xlu0
        %v3283 = vpop.trf.xlu0
        %v3284 = vpop.trf.xlu0
        %v3285 = vpop.trf.xlu0
        %v3286 = vpop.trf.xlu0
        %v3287 = vpop.trf.xlu0
        %v3288 = vpop.trf.xlu0
        %v3289 = vpop.trf.xlu0
        %v3290 = vpop.trf.xlu0
        %v3291 = vpop.trf.xlu0
        %v3292 = vpop.trf.xlu0
        %v3293 = vpop.trf.xlu0
        %v3294 = vpop.trf.xlu0
        %v3295 = vpop.trf.xlu0
        %v3296 = vpop.trf.xlu0
        %v3298 = vsel %vm2311, %v3281, 0
        %v3301 = vsel %vm2311, %v3282, 0
        %v3304 = vsel %vm2311, %v3283, 0
        %v3307 = vsel %vm2311, %v3284, 0
        %v3310 = vsel %vm2311, %v3285, 0
        %v3313 = vsel %vm2311, %v3286, 0
        %v3316 = vsel %vm2311, %v3287, 0
        %v3319 = vsel %vm2311, %v3288, 0
        %v3322 = vsel %vm2336, %v1563, 0
        %3324 = vmatprep.subr.mxu0 0.0
        %3325 = vmatpush1.msra.mxu0 %v3322
        %3326 = vmatprep.subr.mxu0 0.0
        %3327 = vmatpush1.msra.mxu0 0.0
        %3328 = vmatprep.subr.mxu0 0.0
        %3329 = vmatpush1.msra.mxu0 0.0
        %3330 = vmatprep.subr.mxu0 0.0
        %3331 = vmatpush1.msra.mxu0 0.0
        %3332 = vmatprep.subr.mxu0 0.0
        %3333 = vmatpush1.msra.mxu0 0.0
        %3334 = vmatprep.subr.mxu0 0.0
        %3335 = vmatpush1.msra.mxu0 0.0
        %3336 = vmatprep.subr.mxu0 0.0
        %3337 = vmatpush1.msra.mxu0 0.0
        %3338 = vmatprep.subr.mxu0 0.0
        %3339 = vmatpush1.msra.mxu0 0.0
        %3340 = vmatprep.subr.mxu0 0.0
        %3341 = vmatpush1.msra.mxu0 0.0
        %3342 = vmatprep.subr.mxu0 0.0
        %3343 = vmatpush1.msra.mxu0 0.0
        %3344 = vmatprep.subr.mxu0 0.0
        %3345 = vmatpush1.msra.mxu0 0.0
        %3346 = vmatprep.subr.mxu0 0.0
        %3347 = vmatpush1.msra.mxu0 0.0
        %3348 = vmatprep.subr.mxu0 0.0
        %3349 = vmatpush1.msra.mxu0 0.0
        %3350 = vmatprep.subr.mxu0 0.0
        %3351 = vmatpush1.msra.mxu0 0.0
        %3352 = vmatprep.subr.mxu0 0.0
        %3353 = vmatpush1.msra.mxu0 0.0
        %3354 = vmatprep.subr.mxu0 0.0
        %3355 = vmatpush1.msra.mxu0 0.0
        %3356 = vmatprep.subr.mxu0 0.0
        %3357 = vmatpush1.msra.mxu0 0.0
        %3358 = vmatprep.subr.mxu0 0.0
        %3359 = vmatpush1.msra.mxu0 0.0
        %3360 = vmatprep.subr.mxu0 0.0
        %3361 = vmatpush1.msra.mxu0 0.0
        %3362 = vmatprep.subr.mxu0 0.0
        %3363 = vmatpush1.msra.mxu0 0.0
        %3364 = vmatprep.subr.mxu0 0.0
        %3365 = vmatpush1.msra.mxu0 0.0
        %3366 = vmatprep.subr.mxu0 0.0
        %3367 = vmatpush1.msra.mxu0 0.0
        %3368 = vmatprep.subr.mxu0 0.0
        %3369 = vmatpush1.msra.mxu0 0.0
        %3370 = vmatprep.subr.mxu0 0.0
        %3371 = vmatpush1.msra.mxu0 0.0
        %3372 = vmatprep.subr.mxu0 0.0
        %3373 = vmatpush1.msra.mxu0 0.0
        %3374 = vmatprep.subr.mxu0 0.0
        %3375 = vmatpush1.msra.mxu0 0.0
        %3376 = vmatprep.subr.mxu0 0.0
        %3377 = vmatpush1.msra.mxu0 0.0
        %3378 = vmatprep.subr.mxu0 0.0
        %3379 = vmatpush1.msra.mxu0 0.0
        %3380 = vmatprep.subr.mxu0 0.0
        %3381 = vmatpush1.msra.mxu0 0.0
        %3382 = vmatprep.subr.mxu0 0.0
        %3383 = vmatpush1.msra.mxu0 0.0
        %3384 = vmatprep.subr.mxu0 0.0
        %3385 = vmatpush1.msra.mxu0 0.0
        %3386 = vmatprep.subr.mxu0 0.0
        %3387 = vmatpush1.msra.mxu0 0.0
        %3388 = vmatprep.mubr.f32.mxu0 0.0
        %3389 = vmatmul.mubr.f32.gmra.mrb[0].mxu0 %v3298
        %v3390 = vpop.f32.mrb[0].mxu0
        %v3391 = vadd.f32 0.0, %v3390
        %v3392 = vpop.f32.mrb[0].mxu0
        %3393 = vmatprep.mubr.f32.mxu0 0.0
        %3394 = vmatmul.mubr.f32.gmra.mrb[0].mxu0 %v3301
        %v3395 = vpop.f32.mrb[0].mxu0
        %v3396 = vadd.f32 0.0, %v3395
        %v3397 = vpop.f32.mrb[0].mxu0
        %3398 = vmatprep.mubr.f32.mxu0 0.0
        %3399 = vmatmul.mubr.f32.gmra.mrb[0].mxu0 %v3304
        %v3400 = vpop.f32.mrb[0].mxu0
        %v3401 = vadd.f32 0.0, %v3400
        %v3402 = vpop.f32.mrb[0].mxu0
        %3403 = vmatprep.mubr.f32.mxu0 0.0
        %3404 = vmatmul.mubr.f32.gmra.mrb[0].mxu0 %v3307
        %v3405 = vpop.f32.mrb[0].mxu0
        %v3406 = vadd.f32 0.0, %v3405
        %v3407 = vpop.f32.mrb[0].mxu0
        %3408 = vmatprep.mubr.f32.mxu0 0.0
        %3409 = vmatmul.mubr.f32.gmra.mrb[0].mxu0 %v3310
        %v3410 = vpop.f32.mrb[0].mxu0
        %v3411 = vadd.f32 0.0, %v3410
        %v3412 = vpop.f32.mrb[0].mxu0
        %3413 = vmatprep.mubr.f32.mxu0 0.0
        %3414 = vmatmul.mubr.f32.gmra.mrb[0].mxu0 %v3313
        %v3415 = vpop.f32.mrb[0].mxu0
        %v3416 = vadd.f32 0.0, %v3415
        %v3417 = vpop.f32.mrb[0].mxu0
        %3418 = vmatprep.mubr.f32.mxu0 0.0
        %3419 = vmatmul.mubr.f32.gmra.mrb[0].mxu0 %v3316
        %v3420 = vpop.f32.mrb[0].mxu0
        %v3421 = vadd.f32 0.0, %v3420
        %v3422 = vpop.f32.mrb[0].mxu0
        %3423 = vmatprep.mubr.f32.mxu0 0.0
        %3424 = vmatmul.mubr.f32.gmra.mrb[0].mxu0 %v3319
        %v3425 = vpop.f32.mrb[0].mxu0
        %v3426 = vadd.f32 0.0, %v3425
        %v3427 = vpop.f32.mrb[0].mxu0
        %3428 = vdwg.mxu0
        %3429 = vxpose.xlu0.b32.start [1/16] %v998, 128
        %3430 = vxpose.xlu0.b32.cont [2/16] 0.0, 128
        %3431 = vxpose.xlu0.b32.cont [3/16] 0.0, 128
        %3432 = vxpose.xlu0.b32.cont [4/16] 0.0, 128
        %3433 = vxpose.xlu0.b32.cont [5/16] 0.0, 128
        %3434 = vxpose.xlu0.b32.cont [6/16] 0.0, 128
        %3435 = vxpose.xlu0.b32.cont [7/16] 0.0, 128
        %3436 = vxpose.xlu0.b32.cont [8/16] 0.0, 128
        %3437 = vxpose.xlu0.b32.cont [9/16] 0.0, 128
        %3438 = vxpose.xlu0.b32.cont [10/16] 0.0, 128
        %3439 = vxpose.xlu0.b32.cont [11/16] 0.0, 128
        %3440 = vxpose.xlu0.b32.cont [12/16] 0.0, 128
        %3441 = vxpose.xlu0.b32.cont [13/16] 0.0, 128
        %3442 = vxpose.xlu0.b32.cont [14/16] 0.0, 128
        %3443 = vxpose.xlu0.b32.cont [15/16] 0.0, 128
        %3444 = vxpose.xlu0.b32.end [16/16] 0.0, 128
        %v3445 = vpop.trf.xlu0
        %v3446 = vpop.trf.xlu0
        %v3447 = vpop.trf.xlu0
        %v3448 = vpop.trf.xlu0
        %v3449 = vpop.trf.xlu0
        %v3450 = vpop.trf.xlu0
        %v3451 = vpop.trf.xlu0
        %v3452 = vpop.trf.xlu0
        %v3453 = vpop.trf.xlu0
        %v3454 = vpop.trf.xlu0
        %v3455 = vpop.trf.xlu0
        %v3456 = vpop.trf.xlu0
        %v3457 = vpop.trf.xlu0
        %v3458 = vpop.trf.xlu0
        %v3459 = vpop.trf.xlu0
        %v3460 = vpop.trf.xlu0
        %v3462 = vsel %vm2311, %v3445, 0
        %v3465 = vsel %vm2311, %v3446, 0
        %v3468 = vsel %vm2311, %v3447, 0
        %v3471 = vsel %vm2311, %v3448, 0
        %v3474 = vsel %vm2311, %v3449, 0
        %v3477 = vsel %vm2311, %v3450, 0
        %v3480 = vsel %vm2311, %v3451, 0
        %v3483 = vsel %vm2311, %v3452, 0
        %v3486 = vsel %vm2336, %v1636, 0
        %3488 = vmatprep.subr.mxu0 0.0
        %3489 = vmatpush1.msra.mxu0 %v3486
        %3490 = vmatprep.subr.mxu0 0.0
        %3491 = vmatpush1.msra.mxu0 0.0
        %3492 = vmatprep.subr.mxu0 0.0
        %3493 = vmatpush1.msra.mxu0 0.0
        %3494 = vmatprep.subr.mxu0 0.0
        %3495 = vmatpush1.msra.mxu0 0.0
        %3496 = vmatprep.subr.mxu0 0.0
        %3497 = vmatpush1.msra.mxu0 0.0
        %3498 = vmatprep.subr.mxu0 0.0
        %3499 = vmatpush1.msra.mxu0 0.0
        %3500 = vmatprep.subr.mxu0 0.0
        %3501 = vmatpush1.msra.mxu0 0.0
        %3502 = vmatprep.subr.mxu0 0.0
        %3503 = vmatpush1.msra.mxu0 0.0
        %3504 = vmatprep.subr.mxu0 0.0
        %3505 = vmatpush1.msra.mxu0 0.0
        %3506 = vmatprep.subr.mxu0 0.0
        %3507 = vmatpush1.msra.mxu0 0.0
        %3508 = vmatprep.subr.mxu0 0.0
        %3509 = vmatpush1.msra.mxu0 0.0
        %3510 = vmatprep.subr.mxu0 0.0
        %3511 = vmatpush1.msra.mxu0 0.0
        %3512 = vmatprep.subr.mxu0 0.0
        %3513 = vmatpush1.msra.mxu0 0.0
        %3514 = vmatprep.subr.mxu0 0.0
        %3515 = vmatpush1.msra.mxu0 0.0
        %3516 = vmatprep.subr.mxu0 0.0
        %3517 = vmatpush1.msra.mxu0 0.0
        %3518 = vmatprep.subr.mxu0 0.0
        %3519 = vmatpush1.msra.mxu0 0.0
        %3520 = vmatprep.subr.mxu0 0.0
        %3521 = vmatpush1.msra.mxu0 0.0
        %3522 = vmatprep.subr.mxu0 0.0
        %3523 = vmatpush1.msra.mxu0 0.0
        %3524 = vmatprep.subr.mxu0 0.0
        %3525 = vmatpush1.msra.mxu0 0.0
        %3526 = vmatprep.subr.mxu0 0.0
        %3527 = vmatpush1.msra.mxu0 0.0
        %3528 = vmatprep.subr.mxu0 0.0
        %3529 = vmatpush1.msra.mxu0 0.0
        %3530 = vmatprep.subr.mxu0 0.0
        %3531 = vmatpush1.msra.mxu0 0.0
        %3532 = vmatprep.subr.mxu0 0.0
        %3533 = vmatpush1.msra.mxu0 0.0
        %3534 = vmatprep.subr.mxu0 0.0
        %3535 = vmatpush1.msra.mxu0 0.0
        %3536 = vmatprep.subr.mxu0 0.0
        %3537 = vmatpush1.msra.mxu0 0.0
        %3538 = vmatprep.subr.mxu0 0.0
        %3539 = vmatpush1.msra.mxu0 0.0
        %3540 = vmatprep.subr.mxu0 0.0
        %3541 = vmatpush1.msra.mxu0 0.0
        %3542 = vmatprep.subr.mxu0 0.0
        %3543 = vmatpush1.msra.mxu0 0.0
        %3544 = vmatprep.subr.mxu0 0.0
        %3545 = vmatpush1.msra.mxu0 0.0
        %3546 = vmatprep.subr.mxu0 0.0
        %3547 = vmatpush1.msra.mxu0 0.0
        %3548 = vmatprep.subr.mxu0 0.0
        %3549 = vmatpush1.msra.mxu0 0.0
        %3550 = vmatprep.subr.mxu0 0.0
        %3551 = vmatpush1.msra.mxu0 0.0
        %3552 = vmatprep.mubr.f32.mxu0 0.0
        %3553 = vmatmul.mubr.f32.gmra.mrb[0].mxu0 %v3462
        %v3554 = vpop.f32.mrb[0].mxu0
        %v3555 = vadd.f32 0.0, %v3554
        %v3556 = vpop.f32.mrb[0].mxu0
        %3557 = vmatprep.mubr.f32.mxu0 0.0
        %3558 = vmatmul.mubr.f32.gmra.mrb[0].mxu0 %v3465
        %v3559 = vpop.f32.mrb[0].mxu0
        %v3560 = vadd.f32 0.0, %v3559
        %v3561 = vpop.f32.mrb[0].mxu0
        %3562 = vmatprep.mubr.f32.mxu0 0.0
        %3563 = vmatmul.mubr.f32.gmra.mrb[0].mxu0 %v3468
        %v3564 = vpop.f32.mrb[0].mxu0
        %v3565 = vadd.f32 0.0, %v3564
        %v3566 = vpop.f32.mrb[0].mxu0
        %3567 = vmatprep.mubr.f32.mxu0 0.0
        %3568 = vmatmul.mubr.f32.gmra.mrb[0].mxu0 %v3471
        %v3569 = vpop.f32.mrb[0].mxu0
        %v3570 = vadd.f32 0.0, %v3569
        %v3571 = vpop.f32.mrb[0].mxu0
        %3572 = vmatprep.mubr.f32.mxu0 0.0
        %3573 = vmatmul.mubr.f32.gmra.mrb[0].mxu0 %v3474
        %v3574 = vpop.f32.mrb[0].mxu0
        %v3575 = vadd.f32 0.0, %v3574
        %v3576 = vpop.f32.mrb[0].mxu0
        %3577 = vmatprep.mubr.f32.mxu0 0.0
        %3578 = vmatmul.mubr.f32.gmra.mrb[0].mxu0 %v3477
        %v3579 = vpop.f32.mrb[0].mxu0
        %v3580 = vadd.f32 0.0, %v3579
        %v3581 = vpop.f32.mrb[0].mxu0
        %3582 = vmatprep.mubr.f32.mxu0 0.0
        %3583 = vmatmul.mubr.f32.gmra.mrb[0].mxu0 %v3480
        %v3584 = vpop.f32.mrb[0].mxu0
        %v3585 = vadd.f32 0.0, %v3584
        %v3586 = vpop.f32.mrb[0].mxu0
        %3587 = vmatprep.mubr.f32.mxu0 0.0
        %3588 = vmatmul.mubr.f32.gmra.mrb[0].mxu0 %v3483
        %v3589 = vpop.f32.mrb[0].mxu0
        %v3590 = vadd.f32 0.0, %v3589
        %v3591 = vpop.f32.mrb[0].mxu0
        %3592 = vdwg.mxu0
        %vm3593 = vcmask 523264
        %v3594 = vsel %vm3593, %v2407, -inf
        %3595 = vmax.xlane.f32.xlu0 %v3594
        %v3596 = vpop.xlane.xlu0 %3595
        %v3597 = vsel %vm3593, %v2412, -inf
        %3598 = vmax.xlane.f32.xlu0 %v3597
        %v3599 = vpop.xlane.xlu0 %3598
        %v3600 = vsel %vm3593, %v2417, -inf
        %3601 = vmax.xlane.f32.xlu0 %v3600
        %v3602 = vpop.xlane.xlu0 %3601
        %v3603 = vsel %vm3593, %v2422, -inf
        %3604 = vmax.xlane.f32.xlu0 %v3603
        %v3605 = vpop.xlane.xlu0 %3604
        %v3606 = vsel %vm3593, %v2427, -inf
        %3607 = vmax.xlane.f32.xlu0 %v3606
        %v3608 = vpop.xlane.xlu0 %3607
        %v3609 = vsel %vm3593, %v2432, -inf
        %3610 = vmax.xlane.f32.xlu0 %v3609
        %v3611 = vpop.xlane.xlu0 %3610
        %v3612 = vsel %vm3593, %v2437, -inf
        %3613 = vmax.xlane.f32.xlu0 %v3612
        %v3614 = vpop.xlane.xlu0 %3613
        %v3615 = vsel %vm3593, %v2442, -inf
        %3616 = vmax.xlane.f32.xlu0 %v3615
        %v3617 = vpop.xlane.xlu0 %3616
        %v3618 = vsel %vm3593, %v2571, -inf
        %3619 = vmax.xlane.f32.xlu0 %v3618
        %v3620 = vpop.xlane.xlu0 %3619
        %v3621 = vsel %vm3593, %v2576, -inf
        %3622 = vmax.xlane.f32.xlu0 %v3621
        %v3623 = vpop.xlane.xlu0 %3622
        %v3624 = vsel %vm3593, %v2581, -inf
        %3625 = vmax.xlane.f32.xlu0 %v3624
        %v3626 = vpop.xlane.xlu0 %3625
        %v3627 = vsel %vm3593, %v2586, -inf
        %3628 = vmax.xlane.f32.xlu0 %v3627
        %v3629 = vpop.xlane.xlu0 %3628
        %v3630 = vsel %vm3593, %v2591, -inf
        %3631 = vmax.xlane.f32.xlu0 %v3630
        %v3632 = vpop.xlane.xlu0 %3631
        %v3633 = vsel %vm3593, %v2596, -inf
        %3634 = vmax.xlane.f32.xlu0 %v3633
        %v3635 = vpop.xlane.xlu0 %3634
        %v3636 = vsel %vm3593, %v2601, -inf
        %3637 = vmax.xlane.f32.xlu0 %v3636
        %v3638 = vpop.xlane.xlu0 %3637
        %v3639 = vsel %vm3593, %v2606, -inf
        %3640 = vmax.xlane.f32.xlu0 %v3639
        %v3641 = vpop.xlane.xlu0 %3640
        %v3642 = vsel %vm3593, %v2735, -inf
        %3643 = vmax.xlane.f32.xlu0 %v3642
        %v3644 = vpop.xlane.xlu0 %3643
        %v3645 = vsel %vm3593, %v2740, -inf
        %3646 = vmax.xlane.f32.xlu0 %v3645
        %v3647 = vpop.xlane.xlu0 %3646
        %v3648 = vsel %vm3593, %v2745, -inf
        %3649 = vmax.xlane.f32.xlu0 %v3648
        %v3650 = vpop.xlane.xlu0 %3649
        %v3651 = vsel %vm3593, %v2750, -inf
        %3652 = vmax.xlane.f32.xlu0 %v3651
        %v3653 = vpop.xlane.xlu0 %3652
        %v3654 = vsel %vm3593, %v2755, -inf
        %3655 = vmax.xlane.f32.xlu0 %v3654
        %v3656 = vpop.xlane.xlu0 %3655
        %v3657 = vsel %vm3593, %v2760, -inf
        %3658 = vmax.xlane.f32.xlu0 %v3657
        %v3659 = vpop.xlane.xlu0 %3658
        %v3660 = vsel %vm3593, %v2765, -inf
        %3661 = vmax.xlane.f32.xlu0 %v3660
        %v3662 = vpop.xlane.xlu0 %3661
        %v3663 = vsel %vm3593, %v2770, -inf
        %3664 = vmax.xlane.f32.xlu0 %v3663
        %v3665 = vpop.xlane.xlu0 %3664
        %v3666 = vsel %vm3593, %v2899, -inf
        %3667 = vmax.xlane.f32.xlu0 %v3666
        %v3668 = vpop.xlane.xlu0 %3667
        %v3669 = vsel %vm3593, %v2904, -inf
        %3670 = vmax.xlane.f32.xlu0 %v3669
        %v3671 = vpop.xlane.xlu0 %3670
        %v3672 = vsel %vm3593, %v2909, -inf
        %3673 = vmax.xlane.f32.xlu0 %v3672
        %v3674 = vpop.xlane.xlu0 %3673
        %v3675 = vsel %vm3593, %v2914, -inf
        %3676 = vmax.xlane.f32.xlu0 %v3675
        %v3677 = vpop.xlane.xlu0 %3676
        %v3678 = vsel %vm3593, %v2919, -inf
        %3679 = vmax.xlane.f32.xlu0 %v3678
        %v3680 = vpop.xlane.xlu0 %3679
        %v3681 = vsel %vm3593, %v2924, -inf
        %3682 = vmax.xlane.f32.xlu0 %v3681
        %v3683 = vpop.xlane.xlu0 %3682
        %v3684 = vsel %vm3593, %v2929, -inf
        %3685 = vmax.xlane.f32.xlu0 %v3684
        %v3686 = vpop.xlane.xlu0 %3685
        %v3687 = vsel %vm3593, %v2934, -inf
        %3688 = vmax.xlane.f32.xlu0 %v3687
        %v3689 = vpop.xlane.xlu0 %3688
        %v3690 = vsel %vm3593, %v3063, -inf
        %3691 = vmax.xlane.f32.xlu0 %v3690
        %v3692 = vpop.xlane.xlu0 %3691
        %v3693 = vsel %vm3593, %v3068, -inf
        %3694 = vmax.xlane.f32.xlu0 %v3693
        %v3695 = vpop.xlane.xlu0 %3694
        %v3696 = vsel %vm3593, %v3073, -inf
        %3697 = vmax.xlane.f32.xlu0 %v3696
        %v3698 = vpop.xlane.xlu0 %3697
        %v3699 = vsel %vm3593, %v3078, -inf
        %3700 = vmax.xlane.f32.xlu0 %v3699
        %v3701 = vpop.xlane.xlu0 %3700
        %v3702 = vsel %vm3593, %v3083, -inf
        %3703 = vmax.xlane.f32.xlu0 %v3702
        %v3704 = vpop.xlane.xlu0 %3703
        %v3705 = vsel %vm3593, %v3088, -inf
        %3706 = vmax.xlane.f32.xlu0 %v3705
        %v3707 = vpop.xlane.xlu0 %3706
        %v3708 = vsel %vm3593, %v3093, -inf
        %3709 = vmax.xlane.f32.xlu0 %v3708
        %v3710 = vpop.xlane.xlu0 %3709
        %v3711 = vsel %vm3593, %v3098, -inf
        %3712 = vmax.xlane.f32.xlu0 %v3711
        %v3713 = vpop.xlane.xlu0 %3712
        %v3714 = vsel %vm3593, %v3227, -inf
        %3715 = vmax.xlane.f32.xlu0 %v3714
        %v3716 = vpop.xlane.xlu0 %3715
        %v3717 = vsel %vm3593, %v3232, -inf
        %3718 = vmax.xlane.f32.xlu0 %v3717
        %v3719 = vpop.xlane.xlu0 %3718
        %v3720 = vsel %vm3593, %v3237, -inf
        %3721 = vmax.xlane.f32.xlu0 %v3720
        %v3722 = vpop.xlane.xlu0 %3721
        %v3723 = vsel %vm3593, %v3242, -inf
        %3724 = vmax.xlane.f32.xlu0 %v3723
        %v3725 = vpop.xlane.xlu0 %3724
        %v3726 = vsel %vm3593, %v3247, -inf
        %3727 = vmax.xlane.f32.xlu0 %v3726
        %v3728 = vpop.xlane.xlu0 %3727
        %v3729 = vsel %vm3593, %v3252, -inf
        %3730 = vmax.xlane.f32.xlu0 %v3729
        %v3731 = vpop.xlane.xlu0 %3730
        %v3732 = vsel %vm3593, %v3257, -inf
        %3733 = vmax.xlane.f32.xlu0 %v3732
        %v3734 = vpop.xlane.xlu0 %3733
        %v3735 = vsel %vm3593, %v3262, -inf
        %3736 = vmax.xlane.f32.xlu0 %v3735
        %v3737 = vpop.xlane.xlu0 %3736
        %v3738 = vsel %vm3593, %v3391, -inf
        %3739 = vmax.xlane.f32.xlu0 %v3738
        %v3740 = vpop.xlane.xlu0 %3739
        %v3741 = vsel %vm3593, %v3396, -inf
        %3742 = vmax.xlane.f32.xlu0 %v3741
        %v3743 = vpop.xlane.xlu0 %3742
        %v3744 = vsel %vm3593, %v3401, -inf
        %3745 = vmax.xlane.f32.xlu0 %v3744
        %v3746 = vpop.xlane.xlu0 %3745
        %v3747 = vsel %vm3593, %v3406, -inf
        %3748 = vmax.xlane.f32.xlu0 %v3747
        %v3749 = vpop.xlane.xlu0 %3748
        %v3750 = vsel %vm3593, %v3411, -inf
        %3751 = vmax.xlane.f32.xlu0 %v3750
        %v3752 = vpop.xlane.xlu0 %3751
        %v3753 = vsel %vm3593, %v3416, -inf
        %3754 = vmax.xlane.f32.xlu0 %v3753
        %v3755 = vpop.xlane.xlu0 %3754
        %v3756 = vsel %vm3593, %v3421, -inf
        %3757 = vmax.xlane.f32.xlu0 %v3756
        %v3758 = vpop.xlane.xlu0 %3757
        %v3759 = vsel %vm3593, %v3426, -inf
        %3760 = vmax.xlane.f32.xlu0 %v3759
        %v3761 = vpop.xlane.xlu0 %3760
        %v3762 = vsel %vm3593, %v3555, -inf
        %3763 = vmax.xlane.f32.xlu0 %v3762
        %v3764 = vpop.xlane.xlu0 %3763
        %v3765 = vsel %vm3593, %v3560, -inf
        %3766 = vmax.xlane.f32.xlu0 %v3765
        %v3767 = vpop.xlane.xlu0 %3766
        %v3768 = vsel %vm3593, %v3565, -inf
        %3769 = vmax.xlane.f32.xlu0 %v3768
        %v3770 = vpop.xlane.xlu0 %3769
        %v3771 = vsel %vm3593, %v3570, -inf
        %3772 = vmax.xlane.f32.xlu0 %v3771
        %v3773 = vpop.xlane.xlu0 %3772
        %v3774 = vsel %vm3593, %v3575, -inf
        %3775 = vmax.xlane.f32.xlu0 %v3774
        %v3776 = vpop.xlane.xlu0 %3775
        %v3777 = vsel %vm3593, %v3580, -inf
        %3778 = vmax.xlane.f32.xlu0 %v3777
        %v3779 = vpop.xlane.xlu0 %3778
        %v3780 = vsel %vm3593, %v3585, -inf
        %3781 = vmax.xlane.f32.xlu0 %v3780
        %v3782 = vpop.xlane.xlu0 %3781
        %v3783 = vsel %vm3593, %v3590, -inf
        %3784 = vmax.xlane.f32.xlu0 %v3783
        %v3785 = vpop.xlane.xlu0 %3784
        %v3786 = vsub.f32 %v2407, %v3596
        %v3787 = vsub.f32 %v2412, %v3599
        %v3788 = vsub.f32 %v2417, %v3602
        %v3789 = vsub.f32 %v2422, %v3605
        %v3790 = vsub.f32 %v2427, %v3608
        %v3791 = vsub.f32 %v2432, %v3611
        %v3792 = vsub.f32 %v2437, %v3614
        %v3793 = vsub.f32 %v2442, %v3617
        %v3794 = vsub.f32 %v2571, %v3620
        %v3795 = vsub.f32 %v2576, %v3623
        %v3796 = vsub.f32 %v2581, %v3626
        %v3797 = vsub.f32 %v2586, %v3629
        %v3798 = vsub.f32 %v2591, %v3632
        %v3799 = vsub.f32 %v2596, %v3635
        %v3800 = vsub.f32 %v2601, %v3638
        %v3801 = vsub.f32 %v2606, %v3641
        %v3802 = vsub.f32 %v2735, %v3644
        %v3803 = vsub.f32 %v2740, %v3647
        %v3804 = vsub.f32 %v2745, %v3650
        %v3805 = vsub.f32 %v2750, %v3653
        %v3806 = vsub.f32 %v2755, %v3656
        %v3807 = vsub.f32 %v2760, %v3659
        %v3808 = vsub.f32 %v2765, %v3662
        %v3809 = vsub.f32 %v2770, %v3665
        %v3810 = vsub.f32 %v2899, %v3668
        %v3811 = vsub.f32 %v2904, %v3671
        %v3812 = vsub.f32 %v2909, %v3674
        %v3813 = vsub.f32 %v2914, %v3677
        %v3814 = vsub.f32 %v2919, %v3680
        %v3815 = vsub.f32 %v2924, %v3683
        %v3816 = vsub.f32 %v2929, %v3686
        %v3817 = vsub.f32 %v2934, %v3689
        %v3818 = vsub.f32 %v3063, %v3692
        %v3819 = vsub.f32 %v3068, %v3695
        %v3820 = vsub.f32 %v3073, %v3698
        %v3821 = vsub.f32 %v3078, %v3701
        %v3822 = vsub.f32 %v3083, %v3704
        %v3823 = vsub.f32 %v3088, %v3707
        %v3824 = vsub.f32 %v3093, %v3710
        %v3825 = vsub.f32 %v3098, %v3713
        %v3826 = vsub.f32 %v3227, %v3716
        %v3827 = vsub.f32 %v3232, %v3719
        %v3828 = vsub.f32 %v3237, %v3722
        %v3829 = vsub.f32 %v3242, %v3725
        %v3830 = vsub.f32 %v3247, %v3728
        %v3831 = vsub.f32 %v3252, %v3731
        %v3832 = vsub.f32 %v3257, %v3734
        %v3833 = vsub.f32 %v3262, %v3737
        %v3834 = vsub.f32 %v3391, %v3740
        %v3835 = vsub.f32 %v3396, %v3743
        %v3836 = vsub.f32 %v3401, %v3746
        %v3837 = vsub.f32 %v3406, %v3749
        %v3838 = vsub.f32 %v3411, %v3752
        %v3839 = vsub.f32 %v3416, %v3755
        %v3840 = vsub.f32 %v3421, %v3758
        %v3841 = vsub.f32 %v3426, %v3761
        %v3842 = vsub.f32 %v3555, %v3764
        %v3843 = vsub.f32 %v3560, %v3767
        %v3844 = vsub.f32 %v3565, %v3770
        %v3845 = vsub.f32 %v3570, %v3773
        %v3846 = vsub.f32 %v3575, %v3776
        %v3847 = vsub.f32 %v3580, %v3779
        %v3848 = vsub.f32 %v3585, %v3782
        %v3849 = vsub.f32 %v3590, %v3785
        %v3850 = vmul.f32 %v3786, 1.442695
        %v3851 = vpow.pop %v3850
        %v3852 = vmul.f32 %v3787, 1.442695
        %v3853 = vpow.pop %v3852
        %v3854 = vmul.f32 %v3788, 1.442695
        %v3855 = vpow.pop %v3854
        %v3856 = vmul.f32 %v3789, 1.442695
        %v3857 = vpow.pop %v3856
        %v3858 = vmul.f32 %v3790, 1.442695
        %v3859 = vpow.pop %v3858
        %v3860 = vmul.f32 %v3791, 1.442695
        %v3861 = vpow.pop %v3860
        %v3862 = vmul.f32 %v3792, 1.442695
        %v3863 = vpow.pop %v3862
        %v3864 = vmul.f32 %v3793, 1.442695
        %v3865 = vpow.pop %v3864
        %v3866 = vmul.f32 %v3794, 1.442695
        %v3867 = vpow.pop %v3866
        %v3868 = vmul.f32 %v3795, 1.442695
        %v3869 = vpow.pop %v3868
        %v3870 = vmul.f32 %v3796, 1.442695
        %v3871 = vpow.pop %v3870
        %v3872 = vmul.f32 %v3797, 1.442695
        %v3873 = vpow.pop %v3872
        %v3874 = vmul.f32 %v3798, 1.442695
        %v3875 = vpow.pop %v3874
        %v3876 = vmul.f32 %v3799, 1.442695
        %v3877 = vpow.pop %v3876
        %v3878 = vmul.f32 %v3800, 1.442695
        %v3879 = vpow.pop %v3878
        %v3880 = vmul.f32 %v3801, 1.442695
        %v3881 = vpow.pop %v3880
        %v3882 = vmul.f32 %v3802, 1.442695
        %v3883 = vpow.pop %v3882
        %v3884 = vmul.f32 %v3803, 1.442695
        %v3885 = vpow.pop %v3884
        %v3886 = vmul.f32 %v3804, 1.442695
        %v3887 = vpow.pop %v3886
        %v3888 = vmul.f32 %v3805, 1.442695
        %v3889 = vpow.pop %v3888
        %v3890 = vmul.f32 %v3806, 1.442695
        %v3891 = vpow.pop %v3890
        %v3892 = vmul.f32 %v3807, 1.442695
        %v3893 = vpow.pop %v3892
        %v3894 = vmul.f32 %v3808, 1.442695
        %v3895 = vpow.pop %v3894
        %v3896 = vmul.f32 %v3809, 1.442695
        %v3897 = vpow.pop %v3896
        %v3898 = vmul.f32 %v3810, 1.442695
        %v3899 = vpow.pop %v3898
        %v3900 = vmul.f32 %v3811, 1.442695
        %v3901 = vpow.pop %v3900
        %v3902 = vmul.f32 %v3812, 1.442695
        %v3903 = vpow.pop %v3902
        %v3904 = vmul.f32 %v3813, 1.442695
        %v3905 = vpow.pop %v3904
        %v3906 = vmul.f32 %v3814, 1.442695
        %v3907 = vpow.pop %v3906
        %v3908 = vmul.f32 %v3815, 1.442695
        %v3909 = vpow.pop %v3908
        %v3910 = vmul.f32 %v3816, 1.442695
        %v3911 = vpow.pop %v3910
        %v3912 = vmul.f32 %v3817, 1.442695
        %v3913 = vpow.pop %v3912
        %v3914 = vmul.f32 %v3818, 1.442695
        %v3915 = vpow.pop %v3914
        %v3916 = vmul.f32 %v3819, 1.442695
        %v3917 = vpow.pop %v3916
        %v3918 = vmul.f32 %v3820, 1.442695
        %v3919 = vpow.pop %v3918
        %v3920 = vmul.f32 %v3821, 1.442695
        %v3921 = vpow.pop %v3920
        %v3922 = vmul.f32 %v3822, 1.442695
        %v3923 = vpow.pop %v3922
        %v3924 = vmul.f32 %v3823, 1.442695
        %v3925 = vpow.pop %v3924
        %v3926 = vmul.f32 %v3824, 1.442695
        %v3927 = vpow.pop %v3926
        %v3928 = vmul.f32 %v3825, 1.442695
        %v3929 = vpow.pop %v3928
        %v3930 = vmul.f32 %v3826, 1.442695
        %v3931 = vpow.pop %v3930
        %v3932 = vmul.f32 %v3827, 1.442695
        %v3933 = vpow.pop %v3932
        %v3934 = vmul.f32 %v3828, 1.442695
        %v3935 = vpow.pop %v3934
        %v3936 = vmul.f32 %v3829, 1.442695
        %v3937 = vpow.pop %v3936
        %v3938 = vmul.f32 %v3830, 1.442695
        %v3939 = vpow.pop %v3938
        %v3940 = vmul.f32 %v3831, 1.442695
        %v3941 = vpow.pop %v3940
        %v3942 = vmul.f32 %v3832, 1.442695
        %v3943 = vpow.pop %v3942
        %v3944 = vmul.f32 %v3833, 1.442695
        %v3945 = vpow.pop %v3944
        %v3946 = vmul.f32 %v3834, 1.442695
        %v3947 = vpow.pop %v3946
        %v3948 = vmul.f32 %v3835, 1.442695
        %v3949 = vpow.pop %v3948
        %v3950 = vmul.f32 %v3836, 1.442695
        %v3951 = vpow.pop %v3950
        %v3952 = vmul.f32 %v3837, 1.442695
        %v3953 = vpow.pop %v3952
        %v3954 = vmul.f32 %v3838, 1.442695
        %v3955 = vpow.pop %v3954
        %v3956 = vmul.f32 %v3839, 1.442695
        %v3957 = vpow.pop %v3956
        %v3958 = vmul.f32 %v3840, 1.442695
        %v3959 = vpow.pop %v3958
        %v3960 = vmul.f32 %v3841, 1.442695
        %v3961 = vpow.pop %v3960
        %v3962 = vmul.f32 %v3842, 1.442695
        %v3963 = vpow.pop %v3962
        %v3964 = vmul.f32 %v3843, 1.442695
        %v3965 = vpow.pop %v3964
        %v3966 = vmul.f32 %v3844, 1.442695
        %v3967 = vpow.pop %v3966
        %v3968 = vmul.f32 %v3845, 1.442695
        %v3969 = vpow.pop %v3968
        %v3970 = vmul.f32 %v3846, 1.442695
        %v3971 = vpow.pop %v3970
        %v3972 = vmul.f32 %v3847, 1.442695
        %v3973 = vpow.pop %v3972
        %v3974 = vmul.f32 %v3848, 1.442695
        %v3975 = vpow.pop %v3974
        %v3976 = vmul.f32 %v3849, 1.442695
        %v3977 = vpow.pop %v3976
        %v3978 = vsel %vm3593, %v3851, 0.0
        %3979 = vadd.xlane.f32.xlu0 %v3978
        %v3980 = vpop.xlane.xlu0 %3979
        %v3981 = vsel %vm3593, %v3853, 0.0
        %3982 = vadd.xlane.f32.xlu0 %v3981
        %v3983 = vpop.xlane.xlu0 %3982
        %v3984 = vsel %vm3593, %v3855, 0.0
        %3985 = vadd.xlane.f32.xlu0 %v3984
        %v3986 = vpop.xlane.xlu0 %3985
        %v3987 = vsel %vm3593, %v3857, 0.0
        %3988 = vadd.xlane.f32.xlu0 %v3987
        %v3989 = vpop.xlane.xlu0 %3988
        %v3990 = vsel %vm3593, %v3859, 0.0
        %3991 = vadd.xlane.f32.xlu0 %v3990
        %v3992 = vpop.xlane.xlu0 %3991
        %v3993 = vsel %vm3593, %v3861, 0.0
        %3994 = vadd.xlane.f32.xlu0 %v3993
        %v3995 = vpop.xlane.xlu0 %3994
        %v3996 = vsel %vm3593, %v3863, 0.0
        %3997 = vadd.xlane.f32.xlu0 %v3996
        %v3998 = vpop.xlane.xlu0 %3997
        %v3999 = vsel %vm3593, %v3865, 0.0
        %4000 = vadd.xlane.f32.xlu0 %v3999
        %v4001 = vpop.xlane.xlu0 %4000
        %v4002 = vsel %vm3593, %v3867, 0.0
        %4003 = vadd.xlane.f32.xlu0 %v4002
        %v4004 = vpop.xlane.xlu0 %4003
        %v4005 = vsel %vm3593, %v3869, 0.0
        %4006 = vadd.xlane.f32.xlu0 %v4005
        %v4007 = vpop.xlane.xlu0 %4006
        %v4008 = vsel %vm3593, %v3871, 0.0
        %4009 = vadd.xlane.f32.xlu0 %v4008
        %v4010 = vpop.xlane.xlu0 %4009
        %v4011 = vsel %vm3593, %v3873, 0.0
        %4012 = vadd.xlane.f32.xlu0 %v4011
        %v4013 = vpop.xlane.xlu0 %4012
        %v4014 = vsel %vm3593, %v3875, 0.0
        %4015 = vadd.xlane.f32.xlu0 %v4014
        %v4016 = vpop.xlane.xlu0 %4015
        %v4017 = vsel %vm3593, %v3877, 0.0
        %4018 = vadd.xlane.f32.xlu0 %v4017
        %v4019 = vpop.xlane.xlu0 %4018
        %v4020 = vsel %vm3593, %v3879, 0.0
        %4021 = vadd.xlane.f32.xlu0 %v4020
        %v4022 = vpop.xlane.xlu0 %4021
        %v4023 = vsel %vm3593, %v3881, 0.0
        %4024 = vadd.xlane.f32.xlu0 %v4023
        %v4025 = vpop.xlane.xlu0 %4024
        %v4026 = vsel %vm3593, %v3883, 0.0
        %4027 = vadd.xlane.f32.xlu0 %v4026
        %v4028 = vpop.xlane.xlu0 %4027
        %v4029 = vsel %vm3593, %v3885, 0.0
        %4030 = vadd.xlane.f32.xlu0 %v4029
        %v4031 = vpop.xlane.xlu0 %4030
        %v4032 = vsel %vm3593, %v3887, 0.0
        %4033 = vadd.xlane.f32.xlu0 %v4032
        %v4034 = vpop.xlane.xlu0 %4033
        %v4035 = vsel %vm3593, %v3889, 0.0
        %4036 = vadd.xlane.f32.xlu0 %v4035
        %v4037 = vpop.xlane.xlu0 %4036
        %v4038 = vsel %vm3593, %v3891, 0.0
        %4039 = vadd.xlane.f32.xlu0 %v4038
        %v4040 = vpop.xlane.xlu0 %4039
        %v4041 = vsel %vm3593, %v3893, 0.0
        %4042 = vadd.xlane.f32.xlu0 %v4041
        %v4043 = vpop.xlane.xlu0 %4042
        %v4044 = vsel %vm3593, %v3895, 0.0
        %4045 = vadd.xlane.f32.xlu0 %v4044
        %v4046 = vpop.xlane.xlu0 %4045
        %v4047 = vsel %vm3593, %v3897, 0.0
        %4048 = vadd.xlane.f32.xlu0 %v4047
        %v4049 = vpop.xlane.xlu0 %4048
        %v4050 = vsel %vm3593, %v3899, 0.0
        %4051 = vadd.xlane.f32.xlu0 %v4050
        %v4052 = vpop.xlane.xlu0 %4051
        %v4053 = vsel %vm3593, %v3901, 0.0
        %4054 = vadd.xlane.f32.xlu0 %v4053
        %v4055 = vpop.xlane.xlu0 %4054
        %v4056 = vsel %vm3593, %v3903, 0.0
        %4057 = vadd.xlane.f32.xlu0 %v4056
        %v4058 = vpop.xlane.xlu0 %4057
        %v4059 = vsel %vm3593, %v3905, 0.0
        %4060 = vadd.xlane.f32.xlu0 %v4059
        %v4061 = vpop.xlane.xlu0 %4060
        %v4062 = vsel %vm3593, %v3907, 0.0
        %4063 = vadd.xlane.f32.xlu0 %v4062
        %v4064 = vpop.xlane.xlu0 %4063
        %v4065 = vsel %vm3593, %v3909, 0.0
        %4066 = vadd.xlane.f32.xlu0 %v4065
        %v4067 = vpop.xlane.xlu0 %4066
        %v4068 = vsel %vm3593, %v3911, 0.0
        %4069 = vadd.xlane.f32.xlu0 %v4068
        %v4070 = vpop.xlane.xlu0 %4069
        %v4071 = vsel %vm3593, %v3913, 0.0
        %4072 = vadd.xlane.f32.xlu0 %v4071
        %v4073 = vpop.xlane.xlu0 %4072
        %v4074 = vsel %vm3593, %v3915, 0.0
        %4075 = vadd.xlane.f32.xlu0 %v4074
        %v4076 = vpop.xlane.xlu0 %4075
        %v4077 = vsel %vm3593, %v3917, 0.0
        %4078 = vadd.xlane.f32.xlu0 %v4077
        %v4079 = vpop.xlane.xlu0 %4078
        %v4080 = vsel %vm3593, %v3919, 0.0
        %4081 = vadd.xlane.f32.xlu0 %v4080
        %v4082 = vpop.xlane.xlu0 %4081
        %v4083 = vsel %vm3593, %v3921, 0.0
        %4084 = vadd.xlane.f32.xlu0 %v4083
        %v4085 = vpop.xlane.xlu0 %4084
        %v4086 = vsel %vm3593, %v3923, 0.0
        %4087 = vadd.xlane.f32.xlu0 %v4086
        %v4088 = vpop.xlane.xlu0 %4087
        %v4089 = vsel %vm3593, %v3925, 0.0
        %4090 = vadd.xlane.f32.xlu0 %v4089
        %v4091 = vpop.xlane.xlu0 %4090
        %v4092 = vsel %vm3593, %v3927, 0.0
        %4093 = vadd.xlane.f32.xlu0 %v4092
        %v4094 = vpop.xlane.xlu0 %4093
        %v4095 = vsel %vm3593, %v3929, 0.0
        %4096 = vadd.xlane.f32.xlu0 %v4095
        %v4097 = vpop.xlane.xlu0 %4096
        %v4098 = vsel %vm3593, %v3931, 0.0
        %4099 = vadd.xlane.f32.xlu0 %v4098
        %v4100 = vpop.xlane.xlu0 %4099
        %v4101 = vsel %vm3593, %v3933, 0.0
        %4102 = vadd.xlane.f32.xlu0 %v4101
        %v4103 = vpop.xlane.xlu0 %4102
        %v4104 = vsel %vm3593, %v3935, 0.0
        %4105 = vadd.xlane.f32.xlu0 %v4104
        %v4106 = vpop.xlane.xlu0 %4105
        %v4107 = vsel %vm3593, %v3937, 0.0
        %4108 = vadd.xlane.f32.xlu0 %v4107
        %v4109 = vpop.xlane.xlu0 %4108
        %v4110 = vsel %vm3593, %v3939, 0.0
        %4111 = vadd.xlane.f32.xlu0 %v4110
        %v4112 = vpop.xlane.xlu0 %4111
        %v4113 = vsel %vm3593, %v3941, 0.0
        %4114 = vadd.xlane.f32.xlu0 %v4113
        %v4115 = vpop.xlane.xlu0 %4114
        %v4116 = vsel %vm3593, %v3943, 0.0
        %4117 = vadd.xlane.f32.xlu0 %v4116
        %v4118 = vpop.xlane.xlu0 %4117
        %v4119 = vsel %vm3593, %v3945, 0.0
        %4120 = vadd.xlane.f32.xlu0 %v4119
        %v4121 = vpop.xlane.xlu0 %4120
        %v4122 = vsel %vm3593, %v3947, 0.0
        %4123 = vadd.xlane.f32.xlu0 %v4122
        %v4124 = vpop.xlane.xlu0 %4123
        %v4125 = vsel %vm3593, %v3949, 0.0
        %4126 = vadd.xlane.f32.xlu0 %v4125
        %v4127 = vpop.xlane.xlu0 %4126
        %v4128 = vsel %vm3593, %v3951, 0.0
        %4129 = vadd.xlane.f32.xlu0 %v4128
        %v4130 = vpop.xlane.xlu0 %4129
        %v4131 = vsel %vm3593, %v3953, 0.0
        %4132 = vadd.xlane.f32.xlu0 %v4131
        %v4133 = vpop.xlane.xlu0 %4132
        %v4134 = vsel %vm3593, %v3955, 0.0
        %4135 = vadd.xlane.f32.xlu0 %v4134
        %v4136 = vpop.xlane.xlu0 %4135
        %v4137 = vsel %vm3593, %v3957, 0.0
        %4138 = vadd.xlane.f32.xlu0 %v4137
        %v4139 = vpop.xlane.xlu0 %4138
        %v4140 = vsel %vm3593, %v3959, 0.0
        %4141 = vadd.xlane.f32.xlu0 %v4140
        %v4142 = vpop.xlane.xlu0 %4141
        %v4143 = vsel %vm3593, %v3961, 0.0
        %4144 = vadd.xlane.f32.xlu0 %v4143
        %v4145 = vpop.xlane.xlu0 %4144
        %v4146 = vsel %vm3593, %v3963, 0.0
        %4147 = vadd.xlane.f32.xlu0 %v4146
        %v4148 = vpop.xlane.xlu0 %4147
        %v4149 = vsel %vm3593, %v3965, 0.0
        %4150 = vadd.xlane.f32.xlu0 %v4149
        %v4151 = vpop.xlane.xlu0 %4150
        %v4152 = vsel %vm3593, %v3967, 0.0
        %4153 = vadd.xlane.f32.xlu0 %v4152
        %v4154 = vpop.xlane.xlu0 %4153
        %v4155 = vsel %vm3593, %v3969, 0.0
        %4156 = vadd.xlane.f32.xlu0 %v4155
        %v4157 = vpop.xlane.xlu0 %4156
        %v4158 = vsel %vm3593, %v3971, 0.0
        %4159 = vadd.xlane.f32.xlu0 %v4158
        %v4160 = vpop.xlane.xlu0 %4159
        %v4161 = vsel %vm3593, %v3973, 0.0
        %4162 = vadd.xlane.f32.xlu0 %v4161
        %v4163 = vpop.xlane.xlu0 %4162
        %v4164 = vsel %vm3593, %v3975, 0.0
        %4165 = vadd.xlane.f32.xlu0 %v4164
        %v4166 = vpop.xlane.xlu0 %4165
        %v4167 = vsel %vm3593, %v3977, 0.0
        %4168 = vadd.xlane.f32.xlu0 %v4167
        %v4169 = vpop.xlane.xlu0 %4168
        %v4171 = vsel %vm3593, %v3851, 0
        %v4174 = vsel %vm3593, %v3853, 0
        %v4177 = vsel %vm3593, %v3855, 0
        %v4180 = vsel %vm3593, %v3857, 0
        %v4183 = vsel %vm3593, %v3859, 0
        %v4186 = vsel %vm3593, %v3861, 0
        %v4189 = vsel %vm3593, %v3863, 0
        %v4192 = vsel %vm3593, %v3865, 0
        %v4195 = vsel %vm3593, %v1765, 0
        %4197 = vmatprep.subr.mxu0 0.0
        %4198 = vmatpush1.xpose.msra.mxu0 %v4195
        %4199 = vmatprep.subr.mxu0 0.0
        %4200 = vmatpush1.xpose.msra.mxu0 0.0
        %4201 = vmatprep.subr.mxu0 0.0
        %4202 = vmatpush1.xpose.msra.mxu0 0.0
        %4203 = vmatprep.subr.mxu0 0.0
        %4204 = vmatpush1.xpose.msra.mxu0 0.0
        %4205 = vmatprep.subr.mxu0 0.0
        %4206 = vmatpush1.xpose.msra.mxu0 0.0
        %4207 = vmatprep.subr.mxu0 0.0
        %4208 = vmatpush1.xpose.msra.mxu0 0.0
        %4209 = vmatprep.subr.mxu0 0.0
        %4210 = vmatpush1.xpose.msra.mxu0 0.0
        %4211 = vmatprep.subr.mxu0 0.0
        %4212 = vmatpush1.xpose.msra.mxu0 0.0
        %4213 = vmatprep.subr.mxu0 0.0
        %4214 = vmatpush1.xpose.msra.mxu0 0.0
        %4215 = vmatprep.subr.mxu0 0.0
        %4216 = vmatpush1.xpose.msra.mxu0 0.0
        %4217 = vmatprep.subr.mxu0 0.0
        %4218 = vmatpush1.xpose.msra.mxu0 0.0
        %4219 = vmatprep.subr.mxu0 0.0
        %4220 = vmatpush1.xpose.msra.mxu0 0.0
        %4221 = vmatprep.subr.mxu0 0.0
        %4222 = vmatpush1.xpose.msra.mxu0 0.0
        %4223 = vmatprep.subr.mxu0 0.0
        %4224 = vmatpush1.xpose.msra.mxu0 0.0
        %4225 = vmatprep.subr.mxu0 0.0
        %4226 = vmatpush1.xpose.msra.mxu0 0.0
        %4227 = vmatprep.subr.mxu0 0.0
        %4228 = vmatpush1.xpose.msra.mxu0 0.0
        %4229 = vmatprep.subr.mxu0 0.0
        %4230 = vmatpush1.xpose.msra.mxu0 0.0
        %4231 = vmatprep.subr.mxu0 0.0
        %4232 = vmatpush1.xpose.msra.mxu0 0.0
        %4233 = vmatprep.subr.mxu0 0.0
        %4234 = vmatpush1.xpose.msra.mxu0 0.0
        %4235 = vmatprep.subr.mxu0 0.0
        %4236 = vmatpush1.xpose.msra.mxu0 0.0
        %4237 = vmatprep.subr.mxu0 0.0
        %4238 = vmatpush1.xpose.msra.mxu0 0.0
        %4239 = vmatprep.subr.mxu0 0.0
        %4240 = vmatpush1.xpose.msra.mxu0 0.0
        %4241 = vmatprep.subr.mxu0 0.0
        %4242 = vmatpush1.xpose.msra.mxu0 0.0
        %4243 = vmatprep.subr.mxu0 0.0
        %4244 = vmatpush1.xpose.msra.mxu0 0.0
        %4245 = vmatprep.subr.mxu0 0.0
        %4246 = vmatpush1.xpose.msra.mxu0 0.0
        %4247 = vmatprep.subr.mxu0 0.0
        %4248 = vmatpush1.xpose.msra.mxu0 0.0
        %4249 = vmatprep.subr.mxu0 0.0
        %4250 = vmatpush1.xpose.msra.mxu0 0.0
        %4251 = vmatprep.subr.mxu0 0.0
        %4252 = vmatpush1.xpose.msra.mxu0 0.0
        %4253 = vmatprep.subr.mxu0 0.0
        %4254 = vmatpush1.xpose.msra.mxu0 0.0
        %4255 = vmatprep.subr.mxu0 0.0
        %4256 = vmatpush1.xpose.msra.mxu0 0.0
        %4257 = vmatprep.subr.mxu0 0.0
        %4258 = vmatpush1.xpose.msra.mxu0 0.0
        %4259 = vmatprep.subr.mxu0 0.0
        %4260 = vmatpush1.xpose.msra.mxu0 0.0
        %4261 = vmatprep.mubr.f32.mxu0 0.0
        %4262 = vmatmul.mubr.f32.gmra.mrb[0].mxu0 %v4171
        %v4263 = vpop.f32.mrb[0].mxu0
        %v4264 = vadd.f32 0.0, %v4263
        %v4265 = vpop.f32.mrb[0].mxu0
        %4266 = vmatprep.mubr.f32.mxu0 0.0
        %4267 = vmatmul.mubr.f32.gmra.mrb[0].mxu0 %v4174
        %v4268 = vpop.f32.mrb[0].mxu0
        %v4269 = vadd.f32 0.0, %v4268
        %v4270 = vpop.f32.mrb[0].mxu0
        %4271 = vmatprep.mubr.f32.mxu0 0.0
        %4272 = vmatmul.mubr.f32.gmra.mrb[0].mxu0 %v4177
        %v4273 = vpop.f32.mrb[0].mxu0
        %v4274 = vadd.f32 0.0, %v4273
        %v4275 = vpop.f32.mrb[0].mxu0
        %4276 = vmatprep.mubr.f32.mxu0 0.0
        %4277 = vmatmul.mubr.f32.gmra.mrb[0].mxu0 %v4180
        %v4278 = vpop.f32.mrb[0].mxu0
        %v4279 = vadd.f32 0.0, %v4278
        %v4280 = vpop.f32.mrb[0].mxu0
        %4281 = vmatprep.mubr.f32.mxu0 0.0
        %4282 = vmatmul.mubr.f32.gmra.mrb[0].mxu0 %v4183
        %v4283 = vpop.f32.mrb[0].mxu0
        %v4284 = vadd.f32 0.0, %v4283
        %v4285 = vpop.f32.mrb[0].mxu0
        %4286 = vmatprep.mubr.f32.mxu0 0.0
        %4287 = vmatmul.mubr.f32.gmra.mrb[0].mxu0 %v4186
        %v4288 = vpop.f32.mrb[0].mxu0
        %v4289 = vadd.f32 0.0, %v4288
        %v4290 = vpop.f32.mrb[0].mxu0
        %4291 = vmatprep.mubr.f32.mxu0 0.0
        %4292 = vmatmul.mubr.f32.gmra.mrb[0].mxu0 %v4189
        %v4293 = vpop.f32.mrb[0].mxu0
        %v4294 = vadd.f32 0.0, %v4293
        %v4295 = vpop.f32.mrb[0].mxu0
        %4296 = vmatprep.mubr.f32.mxu0 0.0
        %4297 = vmatmul.mubr.f32.gmra.mrb[0].mxu0 %v4192
        %v4298 = vpop.f32.mrb[0].mxu0
        %v4299 = vadd.f32 0.0, %v4298
        %v4300 = vpop.f32.mrb[0].mxu0
        %4301 = vdwg.mxu0
        %v4303 = vsel %vm3593, %v3867, 0
        %v4306 = vsel %vm3593, %v3869, 0
        %v4309 = vsel %vm3593, %v3871, 0
        %v4312 = vsel %vm3593, %v3873, 0
        %v4315 = vsel %vm3593, %v3875, 0
        %v4318 = vsel %vm3593, %v3877, 0
        %v4321 = vsel %vm3593, %v3879, 0
        %v4324 = vsel %vm3593, %v3881, 0
        %v4327 = vsel %vm3593, %v1838, 0
        %4329 = vmatprep.subr.mxu0 0.0
        %4330 = vmatpush1.xpose.msra.mxu0 %v4327
        %4331 = vmatprep.subr.mxu0 0.0
        %4332 = vmatpush1.xpose.msra.mxu0 0.0
        %4333 = vmatprep.subr.mxu0 0.0
        %4334 = vmatpush1.xpose.msra.mxu0 0.0
        %4335 = vmatprep.subr.mxu0 0.0
        %4336 = vmatpush1.xpose.msra.mxu0 0.0
        %4337 = vmatprep.subr.mxu0 0.0
        %4338 = vmatpush1.xpose.msra.mxu0 0.0
        %4339 = vmatprep.subr.mxu0 0.0
        %4340 = vmatpush1.xpose.msra.mxu0 0.0
        %4341 = vmatprep.subr.mxu0 0.0
        %4342 = vmatpush1.xpose.msra.mxu0 0.0
        %4343 = vmatprep.subr.mxu0 0.0
        %4344 = vmatpush1.xpose.msra.mxu0 0.0
        %4345 = vmatprep.subr.mxu0 0.0
        %4346 = vmatpush1.xpose.msra.mxu0 0.0
        %4347 = vmatprep.subr.mxu0 0.0
        %4348 = vmatpush1.xpose.msra.mxu0 0.0
        %4349 = vmatprep.subr.mxu0 0.0
        %4350 = vmatpush1.xpose.msra.mxu0 0.0
        %4351 = vmatprep.subr.mxu0 0.0
        %4352 = vmatpush1.xpose.msra.mxu0 0.0
        %4353 = vmatprep.subr.mxu0 0.0
        %4354 = vmatpush1.xpose.msra.mxu0 0.0
        %4355 = vmatprep.subr.mxu0 0.0
        %4356 = vmatpush1.xpose.msra.mxu0 0.0
        %4357 = vmatprep.subr.mxu0 0.0
        %4358 = vmatpush1.xpose.msra.mxu0 0.0
        %4359 = vmatprep.subr.mxu0 0.0
        %4360 = vmatpush1.xpose.msra.mxu0 0.0
        %4361 = vmatprep.subr.mxu0 0.0
        %4362 = vmatpush1.xpose.msra.mxu0 0.0
        %4363 = vmatprep.subr.mxu0 0.0
        %4364 = vmatpush1.xpose.msra.mxu0 0.0
        %4365 = vmatprep.subr.mxu0 0.0
        %4366 = vmatpush1.xpose.msra.mxu0 0.0
        %4367 = vmatprep.subr.mxu0 0.0
        %4368 = vmatpush1.xpose.msra.mxu0 0.0
        %4369 = vmatprep.subr.mxu0 0.0
        %4370 = vmatpush1.xpose.msra.mxu0 0.0
        %4371 = vmatprep.subr.mxu0 0.0
        %4372 = vmatpush1.xpose.msra.mxu0 0.0
        %4373 = vmatprep.subr.mxu0 0.0
        %4374 = vmatpush1.xpose.msra.mxu0 0.0
        %4375 = vmatprep.subr.mxu0 0.0
        %4376 = vmatpush1.xpose.msra.mxu0 0.0
        %4377 = vmatprep.subr.mxu0 0.0
        %4378 = vmatpush1.xpose.msra.mxu0 0.0
        %4379 = vmatprep.subr.mxu0 0.0
        %4380 = vmatpush1.xpose.msra.mxu0 0.0
        %4381 = vmatprep.subr.mxu0 0.0
        %4382 = vmatpush1.xpose.msra.mxu0 0.0
        %4383 = vmatprep.subr.mxu0 0.0
        %4384 = vmatpush1.xpose.msra.mxu0 0.0
        %4385 = vmatprep.subr.mxu0 0.0
        %4386 = vmatpush1.xpose.msra.mxu0 0.0
        %4387 = vmatprep.subr.mxu0 0.0
        %4388 = vmatpush1.xpose.msra.mxu0 0.0
        %4389 = vmatprep.subr.mxu0 0.0
        %4390 = vmatpush1.xpose.msra.mxu0 0.0
        %4391 = vmatprep.subr.mxu0 0.0
        %4392 = vmatpush1.xpose.msra.mxu0 0.0
        %4393 = vmatprep.mubr.f32.mxu0 0.0
        %4394 = vmatmul.mubr.f32.gmra.mrb[0].mxu0 %v4303
        %v4395 = vpop.f32.mrb[0].mxu0
        %v4396 = vadd.f32 0.0, %v4395
        %v4397 = vpop.f32.mrb[0].mxu0
        %4398 = vmatprep.mubr.f32.mxu0 0.0
        %4399 = vmatmul.mubr.f32.gmra.mrb[0].mxu0 %v4306
        %v4400 = vpop.f32.mrb[0].mxu0
        %v4401 = vadd.f32 0.0, %v4400
        %v4402 = vpop.f32.mrb[0].mxu0
        %4403 = vmatprep.mubr.f32.mxu0 0.0
        %4404 = vmatmul.mubr.f32.gmra.mrb[0].mxu0 %v4309
        %v4405 = vpop.f32.mrb[0].mxu0
        %v4406 = vadd.f32 0.0, %v4405
        %v4407 = vpop.f32.mrb[0].mxu0
        %4408 = vmatprep.mubr.f32.mxu0 0.0
        %4409 = vmatmul.mubr.f32.gmra.mrb[0].mxu0 %v4312
        %v4410 = vpop.f32.mrb[0].mxu0
        %v4411 = vadd.f32 0.0, %v4410
        %v4412 = vpop.f32.mrb[0].mxu0
        %4413 = vmatprep.mubr.f32.mxu0 0.0
        %4414 = vmatmul.mubr.f32.gmra.mrb[0].mxu0 %v4315
        %v4415 = vpop.f32.mrb[0].mxu0
        %v4416 = vadd.f32 0.0, %v4415
        %v4417 = vpop.f32.mrb[0].mxu0
        %4418 = vmatprep.mubr.f32.mxu0 0.0
        %4419 = vmatmul.mubr.f32.gmra.mrb[0].mxu0 %v4318
        %v4420 = vpop.f32.mrb[0].mxu0
        %v4421 = vadd.f32 0.0, %v4420
        %v4422 = vpop.f32.mrb[0].mxu0
        %4423 = vmatprep.mubr.f32.mxu0 0.0
        %4424 = vmatmul.mubr.f32.gmra.mrb[0].mxu0 %v4321
        %v4425 = vpop.f32.mrb[0].mxu0
        %v4426 = vadd.f32 0.0, %v4425
        %v4427 = vpop.f32.mrb[0].mxu0
        %4428 = vmatprep.mubr.f32.mxu0 0.0
        %4429 = vmatmul.mubr.f32.gmra.mrb[0].mxu0 %v4324
        %v4430 = vpop.f32.mrb[0].mxu0
        %v4431 = vadd.f32 0.0, %v4430
        %v4432 = vpop.f32.mrb[0].mxu0
        %4433 = vdwg.mxu0
        %v4435 = vsel %vm3593, %v3883, 0
        %v4438 = vsel %vm3593, %v3885, 0
        %v4441 = vsel %vm3593, %v3887, 0
        %v4444 = vsel %vm3593, %v3889, 0
        %v4447 = vsel %vm3593, %v3891, 0
        %v4450 = vsel %vm3593, %v3893, 0
        %v4453 = vsel %vm3593, %v3895, 0
        %v4456 = vsel %vm3593, %v3897, 0
        %v4459 = vsel %vm3593, %v1911, 0
        %4461 = vmatprep.subr.mxu0 0.0
        %4462 = vmatpush1.xpose.msra.mxu0 %v4459
        %4463 = vmatprep.subr.mxu0 0.0
        %4464 = vmatpush1.xpose.msra.mxu0 0.0
        %4465 = vmatprep.subr.mxu0 0.0
        %4466 = vmatpush1.xpose.msra.mxu0 0.0
        %4467 = vmatprep.subr.mxu0 0.0
        %4468 = vmatpush1.xpose.msra.mxu0 0.0
        %4469 = vmatprep.subr.mxu0 0.0
        %4470 = vmatpush1.xpose.msra.mxu0 0.0
        %4471 = vmatprep.subr.mxu0 0.0
        %4472 = vmatpush1.xpose.msra.mxu0 0.0
        %4473 = vmatprep.subr.mxu0 0.0
        %4474 = vmatpush1.xpose.msra.mxu0 0.0
        %4475 = vmatprep.subr.mxu0 0.0
        %4476 = vmatpush1.xpose.msra.mxu0 0.0
        %4477 = vmatprep.subr.mxu0 0.0
        %4478 = vmatpush1.xpose.msra.mxu0 0.0
        %4479 = vmatprep.subr.mxu0 0.0
        %4480 = vmatpush1.xpose.msra.mxu0 0.0
        %4481 = vmatprep.subr.mxu0 0.0
        %4482 = vmatpush1.xpose.msra.mxu0 0.0
        %4483 = vmatprep.subr.mxu0 0.0
        %4484 = vmatpush1.xpose.msra.mxu0 0.0
        %4485 = vmatprep.subr.mxu0 0.0
        %4486 = vmatpush1.xpose.msra.mxu0 0.0
        %4487 = vmatprep.subr.mxu0 0.0
        %4488 = vmatpush1.xpose.msra.mxu0 0.0
        %4489 = vmatprep.subr.mxu0 0.0
        %4490 = vmatpush1.xpose.msra.mxu0 0.0
        %4491 = vmatprep.subr.mxu0 0.0
        %4492 = vmatpush1.xpose.msra.mxu0 0.0
        %4493 = vmatprep.subr.mxu0 0.0
        %4494 = vmatpush1.xpose.msra.mxu0 0.0
        %4495 = vmatprep.subr.mxu0 0.0
        %4496 = vmatpush1.xpose.msra.mxu0 0.0
        %4497 = vmatprep.subr.mxu0 0.0
        %4498 = vmatpush1.xpose.msra.mxu0 0.0
        %4499 = vmatprep.subr.mxu0 0.0
        %4500 = vmatpush1.xpose.msra.mxu0 0.0
        %4501 = vmatprep.subr.mxu0 0.0
        %4502 = vmatpush1.xpose.msra.mxu0 0.0
        %4503 = vmatprep.subr.mxu0 0.0
        %4504 = vmatpush1.xpose.msra.mxu0 0.0
        %4505 = vmatprep.subr.mxu0 0.0
        %4506 = vmatpush1.xpose.msra.mxu0 0.0
        %4507 = vmatprep.subr.mxu0 0.0
        %4508 = vmatpush1.xpose.msra.mxu0 0.0
        %4509 = vmatprep.subr.mxu0 0.0
        %4510 = vmatpush1.xpose.msra.mxu0 0.0
        %4511 = vmatprep.subr.mxu0 0.0
        %4512 = vmatpush1.xpose.msra.mxu0 0.0
        %4513 = vmatprep.subr.mxu0 0.0
        %4514 = vmatpush1.xpose.msra.mxu0 0.0
        %4515 = vmatprep.subr.mxu0 0.0
        %4516 = vmatpush1.xpose.msra.mxu0 0.0
        %4517 = vmatprep.subr.mxu0 0.0
        %4518 = vmatpush1.xpose.msra.mxu0 0.0
        %4519 = vmatprep.subr.mxu0 0.0
        %4520 = vmatpush1.xpose.msra.mxu0 0.0
        %4521 = vmatprep.subr.mxu0 0.0
        %4522 = vmatpush1.xpose.msra.mxu0 0.0
        %4523 = vmatprep.subr.mxu0 0.0
        %4524 = vmatpush1.xpose.msra.mxu0 0.0
        %4525 = vmatprep.mubr.f32.mxu0 0.0
        %4526 = vmatmul.mubr.f32.gmra.mrb[0].mxu0 %v4435
        %v4527 = vpop.f32.mrb[0].mxu0
        %v4528 = vadd.f32 0.0, %v4527
        %v4529 = vpop.f32.mrb[0].mxu0
        %4530 = vmatprep.mubr.f32.mxu0 0.0
        %4531 = vmatmul.mubr.f32.gmra.mrb[0].mxu0 %v4438
        %v4532 = vpop.f32.mrb[0].mxu0
        %v4533 = vadd.f32 0.0, %v4532
        %v4534 = vpop.f32.mrb[0].mxu0
        %4535 = vmatprep.mubr.f32.mxu0 0.0
        %4536 = vmatmul.mubr.f32.gmra.mrb[0].mxu0 %v4441
        %v4537 = vpop.f32.mrb[0].mxu0
        %v4538 = vadd.f32 0.0, %v4537
        %v4539 = vpop.f32.mrb[0].mxu0
        %4540 = vmatprep.mubr.f32.mxu0 0.0
        %4541 = vmatmul.mubr.f32.gmra.mrb[0].mxu0 %v4444
        %v4542 = vpop.f32.mrb[0].mxu0
        %v4543 = vadd.f32 0.0, %v4542
        %v4544 = vpop.f32.mrb[0].mxu0
        %4545 = vmatprep.mubr.f32.mxu0 0.0
        %4546 = vmatmul.mubr.f32.gmra.mrb[0].mxu0 %v4447
        %v4547 = vpop.f32.mrb[0].mxu0
        %v4548 = vadd.f32 0.0, %v4547
        %v4549 = vpop.f32.mrb[0].mxu0
        %4550 = vmatprep.mubr.f32.mxu0 0.0
        %4551 = vmatmul.mubr.f32.gmra.mrb[0].mxu0 %v4450
        %v4552 = vpop.f32.mrb[0].mxu0
        %v4553 = vadd.f32 0.0, %v4552
        %v4554 = vpop.f32.mrb[0].mxu0
        %4555 = vmatprep.mubr.f32.mxu0 0.0
        %4556 = vmatmul.mubr.f32.gmra.mrb[0].mxu0 %v4453
        %v4557 = vpop.f32.mrb[0].mxu0
        %v4558 = vadd.f32 0.0, %v4557
        %v4559 = vpop.f32.mrb[0].mxu0
        %4560 = vmatprep.mubr.f32.mxu0 0.0
        %4561 = vmatmul.mubr.f32.gmra.mrb[0].mxu0 %v4456
        %v4562 = vpop.f32.mrb[0].mxu0
        %v4563 = vadd.f32 0.0, %v4562
        %v4564 = vpop.f32.mrb[0].mxu0
        %4565 = vdwg.mxu0
        %v4567 = vsel %vm3593, %v3899, 0
        %v4570 = vsel %vm3593, %v3901, 0
        %v4573 = vsel %vm3593, %v3903, 0
        %v4576 = vsel %vm3593, %v3905, 0
        %v4579 = vsel %vm3593, %v3907, 0
        %v4582 = vsel %vm3593, %v3909, 0
        %v4585 = vsel %vm3593, %v3911, 0
        %v4588 = vsel %vm3593, %v3913, 0
        %v4591 = vsel %vm3593, %v1984, 0
        %4593 = vmatprep.subr.mxu0 0.0
        %4594 = vmatpush1.xpose.msra.mxu0 %v4591
        %4595 = vmatprep.subr.mxu0 0.0
        %4596 = vmatpush1.xpose.msra.mxu0 0.0
        %4597 = vmatprep.subr.mxu0 0.0
        %4598 = vmatpush1.xpose.msra.mxu0 0.0
        %4599 = vmatprep.subr.mxu0 0.0
        %4600 = vmatpush1.xpose.msra.mxu0 0.0
        %4601 = vmatprep.subr.mxu0 0.0
        %4602 = vmatpush1.xpose.msra.mxu0 0.0
        %4603 = vmatprep.subr.mxu0 0.0
        %4604 = vmatpush1.xpose.msra.mxu0 0.0
        %4605 = vmatprep.subr.mxu0 0.0
        %4606 = vmatpush1.xpose.msra.mxu0 0.0
        %4607 = vmatprep.subr.mxu0 0.0
        %4608 = vmatpush1.xpose.msra.mxu0 0.0
        %4609 = vmatprep.subr.mxu0 0.0
        %4610 = vmatpush1.xpose.msra.mxu0 0.0
        %4611 = vmatprep.subr.mxu0 0.0
        %4612 = vmatpush1.xpose.msra.mxu0 0.0
        %4613 = vmatprep.subr.mxu0 0.0
        %4614 = vmatpush1.xpose.msra.mxu0 0.0
        %4615 = vmatprep.subr.mxu0 0.0
        %4616 = vmatpush1.xpose.msra.mxu0 0.0
        %4617 = vmatprep.subr.mxu0 0.0
        %4618 = vmatpush1.xpose.msra.mxu0 0.0
        %4619 = vmatprep.subr.mxu0 0.0
        %4620 = vmatpush1.xpose.msra.mxu0 0.0
        %4621 = vmatprep.subr.mxu0 0.0
        %4622 = vmatpush1.xpose.msra.mxu0 0.0
        %4623 = vmatprep.subr.mxu0 0.0
        %4624 = vmatpush1.xpose.msra.mxu0 0.0
        %4625 = vmatprep.subr.mxu0 0.0
        %4626 = vmatpush1.xpose.msra.mxu0 0.0
        %4627 = vmatprep.subr.mxu0 0.0
        %4628 = vmatpush1.xpose.msra.mxu0 0.0
        %4629 = vmatprep.subr.mxu0 0.0
        %4630 = vmatpush1.xpose.msra.mxu0 0.0
        %4631 = vmatprep.subr.mxu0 0.0
        %4632 = vmatpush1.xpose.msra.mxu0 0.0
        %4633 = vmatprep.subr.mxu0 0.0
        %4634 = vmatpush1.xpose.msra.mxu0 0.0
        %4635 = vmatprep.subr.mxu0 0.0
        %4636 = vmatpush1.xpose.msra.mxu0 0.0
        %4637 = vmatprep.subr.mxu0 0.0
        %4638 = vmatpush1.xpose.msra.mxu0 0.0
        %4639 = vmatprep.subr.mxu0 0.0
        %4640 = vmatpush1.xpose.msra.mxu0 0.0
        %4641 = vmatprep.subr.mxu0 0.0
        %4642 = vmatpush1.xpose.msra.mxu0 0.0
        %4643 = vmatprep.subr.mxu0 0.0
        %4644 = vmatpush1.xpose.msra.mxu0 0.0
        %4645 = vmatprep.subr.mxu0 0.0
        %4646 = vmatpush1.xpose.msra.mxu0 0.0
        %4647 = vmatprep.subr.mxu0 0.0
        %4648 = vmatpush1.xpose.msra.mxu0 0.0
        %4649 = vmatprep.subr.mxu0 0.0
        %4650 = vmatpush1.xpose.msra.mxu0 0.0
        %4651 = vmatprep.subr.mxu0 0.0
        %4652 = vmatpush1.xpose.msra.mxu0 0.0
        %4653 = vmatprep.subr.mxu0 0.0
        %4654 = vmatpush1.xpose.msra.mxu0 0.0
        %4655 = vmatprep.subr.mxu0 0.0
        %4656 = vmatpush1.xpose.msra.mxu0 0.0
        %4657 = vmatprep.mubr.f32.mxu0 0.0
        %4658 = vmatmul.mubr.f32.gmra.mrb[0].mxu0 %v4567
        %v4659 = vpop.f32.mrb[0].mxu0
        %v4660 = vadd.f32 0.0, %v4659
        %v4661 = vpop.f32.mrb[0].mxu0
        %4662 = vmatprep.mubr.f32.mxu0 0.0
        %4663 = vmatmul.mubr.f32.gmra.mrb[0].mxu0 %v4570
        %v4664 = vpop.f32.mrb[0].mxu0
        %v4665 = vadd.f32 0.0, %v4664
        %v4666 = vpop.f32.mrb[0].mxu0
        %4667 = vmatprep.mubr.f32.mxu0 0.0
        %4668 = vmatmul.mubr.f32.gmra.mrb[0].mxu0 %v4573
        %v4669 = vpop.f32.mrb[0].mxu0
        %v4670 = vadd.f32 0.0, %v4669
        %v4671 = vpop.f32.mrb[0].mxu0
        %4672 = vmatprep.mubr.f32.mxu0 0.0
        %4673 = vmatmul.mubr.f32.gmra.mrb[0].mxu0 %v4576
        %v4674 = vpop.f32.mrb[0].mxu0
        %v4675 = vadd.f32 0.0, %v4674
        %v4676 = vpop.f32.mrb[0].mxu0
        %4677 = vmatprep.mubr.f32.mxu0 0.0
        %4678 = vmatmul.mubr.f32.gmra.mrb[0].mxu0 %v4579
        %v4679 = vpop.f32.mrb[0].mxu0
        %v4680 = vadd.f32 0.0, %v4679
        %v4681 = vpop.f32.mrb[0].mxu0
        %4682 = vmatprep.mubr.f32.mxu0 0.0
        %4683 = vmatmul.mubr.f32.gmra.mrb[0].mxu0 %v4582
        %v4684 = vpop.f32.mrb[0].mxu0
        %v4685 = vadd.f32 0.0, %v4684
        %v4686 = vpop.f32.mrb[0].mxu0
        %4687 = vmatprep.mubr.f32.mxu0 0.0
        %4688 = vmatmul.mubr.f32.gmra.mrb[0].mxu0 %v4585
        %v4689 = vpop.f32.mrb[0].mxu0
        %v4690 = vadd.f32 0.0, %v4689
        %v4691 = vpop.f32.mrb[0].mxu0
        %4692 = vmatprep.mubr.f32.mxu0 0.0
        %4693 = vmatmul.mubr.f32.gmra.mrb[0].mxu0 %v4588
        %v4694 = vpop.f32.mrb[0].mxu0
        %v4695 = vadd.f32 0.0, %v4694
        %v4696 = vpop.f32.mrb[0].mxu0
        %4697 = vdwg.mxu0
        %v4699 = vsel %vm3593, %v3915, 0
        %v4702 = vsel %vm3593, %v3917, 0
        %v4705 = vsel %vm3593, %v3919, 0
        %v4708 = vsel %vm3593, %v3921, 0
        %v4711 = vsel %vm3593, %v3923, 0
        %v4714 = vsel %vm3593, %v3925, 0
        %v4717 = vsel %vm3593, %v3927, 0
        %v4720 = vsel %vm3593, %v3929, 0
        %v4723 = vsel %vm3593, %v2057, 0
        %4725 = vmatprep.subr.mxu0 0.0
        %4726 = vmatpush1.xpose.msra.mxu0 %v4723
        %4727 = vmatprep.subr.mxu0 0.0
        %4728 = vmatpush1.xpose.msra.mxu0 0.0
        %4729 = vmatprep.subr.mxu0 0.0
        %4730 = vmatpush1.xpose.msra.mxu0 0.0
        %4731 = vmatprep.subr.mxu0 0.0
        %4732 = vmatpush1.xpose.msra.mxu0 0.0
        %4733 = vmatprep.subr.mxu0 0.0
        %4734 = vmatpush1.xpose.msra.mxu0 0.0
        %4735 = vmatprep.subr.mxu0 0.0
        %4736 = vmatpush1.xpose.msra.mxu0 0.0
        %4737 = vmatprep.subr.mxu0 0.0
        %4738 = vmatpush1.xpose.msra.mxu0 0.0
        %4739 = vmatprep.subr.mxu0 0.0
        %4740 = vmatpush1.xpose.msra.mxu0 0.0
        %4741 = vmatprep.subr.mxu0 0.0
        %4742 = vmatpush1.xpose.msra.mxu0 0.0
        %4743 = vmatprep.subr.mxu0 0.0
        %4744 = vmatpush1.xpose.msra.mxu0 0.0
        %4745 = vmatprep.subr.mxu0 0.0
        %4746 = vmatpush1.xpose.msra.mxu0 0.0
        %4747 = vmatprep.subr.mxu0 0.0
        %4748 = vmatpush1.xpose.msra.mxu0 0.0
        %4749 = vmatprep.subr.mxu0 0.0
        %4750 = vmatpush1.xpose.msra.mxu0 0.0
        %4751 = vmatprep.subr.mxu0 0.0
        %4752 = vmatpush1.xpose.msra.mxu0 0.0
        %4753 = vmatprep.subr.mxu0 0.0
        %4754 = vmatpush1.xpose.msra.mxu0 0.0
        %4755 = vmatprep.subr.mxu0 0.0
        %4756 = vmatpush1.xpose.msra.mxu0 0.0
        %4757 = vmatprep.subr.mxu0 0.0
        %4758 = vmatpush1.xpose.msra.mxu0 0.0
        %4759 = vmatprep.subr.mxu0 0.0
        %4760 = vmatpush1.xpose.msra.mxu0 0.0
        %4761 = vmatprep.subr.mxu0 0.0
        %4762 = vmatpush1.xpose.msra.mxu0 0.0
        %4763 = vmatprep.subr.mxu0 0.0
        %4764 = vmatpush1.xpose.msra.mxu0 0.0
        %4765 = vmatprep.subr.mxu0 0.0
        %4766 = vmatpush1.xpose.msra.mxu0 0.0
        %4767 = vmatprep.subr.mxu0 0.0
        %4768 = vmatpush1.xpose.msra.mxu0 0.0
        %4769 = vmatprep.subr.mxu0 0.0
        %4770 = vmatpush1.xpose.msra.mxu0 0.0
        %4771 = vmatprep.subr.mxu0 0.0
        %4772 = vmatpush1.xpose.msra.mxu0 0.0
        %4773 = vmatprep.subr.mxu0 0.0
        %4774 = vmatpush1.xpose.msra.mxu0 0.0
        %4775 = vmatprep.subr.mxu0 0.0
        %4776 = vmatpush1.xpose.msra.mxu0 0.0
        %4777 = vmatprep.subr.mxu0 0.0
        %4778 = vmatpush1.xpose.msra.mxu0 0.0
        %4779 = vmatprep.subr.mxu0 0.0
        %4780 = vmatpush1.xpose.msra.mxu0 0.0
        %4781 = vmatprep.subr.mxu0 0.0
        %4782 = vmatpush1.xpose.msra.mxu0 0.0
        %4783 = vmatprep.subr.mxu0 0.0
        %4784 = vmatpush1.xpose.msra.mxu0 0.0
        %4785 = vmatprep.subr.mxu0 0.0
        %4786 = vmatpush1.xpose.msra.mxu0 0.0
        %4787 = vmatprep.subr.mxu0 0.0
        %4788 = vmatpush1.xpose.msra.mxu0 0.0
        %4789 = vmatprep.mubr.f32.mxu0 0.0
        %4790 = vmatmul.mubr.f32.gmra.mrb[0].mxu0 %v4699
        %v4791 = vpop.f32.mrb[0].mxu0
        %v4792 = vadd.f32 0.0, %v4791
        %v4793 = vpop.f32.mrb[0].mxu0
        %4794 = vmatprep.mubr.f32.mxu0 0.0
        %4795 = vmatmul.mubr.f32.gmra.mrb[0].mxu0 %v4702
        %v4796 = vpop.f32.mrb[0].mxu0
        %v4797 = vadd.f32 0.0, %v4796
        %v4798 = vpop.f32.mrb[0].mxu0
        %4799 = vmatprep.mubr.f32.mxu0 0.0
        %4800 = vmatmul.mubr.f32.gmra.mrb[0].mxu0 %v4705
        %v4801 = vpop.f32.mrb[0].mxu0
        %v4802 = vadd.f32 0.0, %v4801
        %v4803 = vpop.f32.mrb[0].mxu0
        %4804 = vmatprep.mubr.f32.mxu0 0.0
        %4805 = vmatmul.mubr.f32.gmra.mrb[0].mxu0 %v4708
        %v4806 = vpop.f32.mrb[0].mxu0
        %v4807 = vadd.f32 0.0, %v4806
        %v4808 = vpop.f32.mrb[0].mxu0
        %4809 = vmatprep.mubr.f32.mxu0 0.0
        %4810 = vmatmul.mubr.f32.gmra.mrb[0].mxu0 %v4711
        %v4811 = vpop.f32.mrb[0].mxu0
        %v4812 = vadd.f32 0.0, %v4811
        %v4813 = vpop.f32.mrb[0].mxu0
        %4814 = vmatprep.mubr.f32.mxu0 0.0
        %4815 = vmatmul.mubr.f32.gmra.mrb[0].mxu0 %v4714
        %v4816 = vpop.f32.mrb[0].mxu0
        %v4817 = vadd.f32 0.0, %v4816
        %v4818 = vpop.f32.mrb[0].mxu0
        %4819 = vmatprep.mubr.f32.mxu0 0.0
        %4820 = vmatmul.mubr.f32.gmra.mrb[0].mxu0 %v4717
        %v4821 = vpop.f32.mrb[0].mxu0
        %v4822 = vadd.f32 0.0, %v4821
        %v4823 = vpop.f32.mrb[0].mxu0
        %4824 = vmatprep.mubr.f32.mxu0 0.0
        %4825 = vmatmul.mubr.f32.gmra.mrb[0].mxu0 %v4720
        %v4826 = vpop.f32.mrb[0].mxu0
        %v4827 = vadd.f32 0.0, %v4826
        %v4828 = vpop.f32.mrb[0].mxu0
        %4829 = vdwg.mxu0
        %v4831 = vsel %vm3593, %v3931, 0
        %v4834 = vsel %vm3593, %v3933, 0
        %v4837 = vsel %vm3593, %v3935, 0
        %v4840 = vsel %vm3593, %v3937, 0
        %v4843 = vsel %vm3593, %v3939, 0
        %v4846 = vsel %vm3593, %v3941, 0
        %v4849 = vsel %vm3593, %v3943, 0
        %v4852 = vsel %vm3593, %v3945, 0
        %v4855 = vsel %vm3593, %v2130, 0
        %4857 = vmatprep.subr.mxu0 0.0
        %4858 = vmatpush1.xpose.msra.mxu0 %v4855
        %4859 = vmatprep.subr.mxu0 0.0
        %4860 = vmatpush1.xpose.msra.mxu0 0.0
        %4861 = vmatprep.subr.mxu0 0.0
        %4862 = vmatpush1.xpose.msra.mxu0 0.0
        %4863 = vmatprep.subr.mxu0 0.0
        %4864 = vmatpush1.xpose.msra.mxu0 0.0
        %4865 = vmatprep.subr.mxu0 0.0
        %4866 = vmatpush1.xpose.msra.mxu0 0.0
        %4867 = vmatprep.subr.mxu0 0.0
        %4868 = vmatpush1.xpose.msra.mxu0 0.0
        %4869 = vmatprep.subr.mxu0 0.0
        %4870 = vmatpush1.xpose.msra.mxu0 0.0
        %4871 = vmatprep.subr.mxu0 0.0
        %4872 = vmatpush1.xpose.msra.mxu0 0.0
        %4873 = vmatprep.subr.mxu0 0.0
        %4874 = vmatpush1.xpose.msra.mxu0 0.0
        %4875 = vmatprep.subr.mxu0 0.0
        %4876 = vmatpush1.xpose.msra.mxu0 0.0
        %4877 = vmatprep.subr.mxu0 0.0
        %4878 = vmatpush1.xpose.msra.mxu0 0.0
        %4879 = vmatprep.subr.mxu0 0.0
        %4880 = vmatpush1.xpose.msra.mxu0 0.0
        %4881 = vmatprep.subr.mxu0 0.0
        %4882 = vmatpush1.xpose.msra.mxu0 0.0
        %4883 = vmatprep.subr.mxu0 0.0
        %4884 = vmatpush1.xpose.msra.mxu0 0.0
        %4885 = vmatprep.subr.mxu0 0.0
        %4886 = vmatpush1.xpose.msra.mxu0 0.0
        %4887 = vmatprep.subr.mxu0 0.0
        %4888 = vmatpush1.xpose.msra.mxu0 0.0
        %4889 = vmatprep.subr.mxu0 0.0
        %4890 = vmatpush1.xpose.msra.mxu0 0.0
        %4891 = vmatprep.subr.mxu0 0.0
        %4892 = vmatpush1.xpose.msra.mxu0 0.0
        %4893 = vmatprep.subr.mxu0 0.0
        %4894 = vmatpush1.xpose.msra.mxu0 0.0
        %4895 = vmatprep.subr.mxu0 0.0
        %4896 = vmatpush1.xpose.msra.mxu0 0.0
        %4897 = vmatprep.subr.mxu0 0.0
        %4898 = vmatpush1.xpose.msra.mxu0 0.0
        %4899 = vmatprep.subr.mxu0 0.0
        %4900 = vmatpush1.xpose.msra.mxu0 0.0
        %4901 = vmatprep.subr.mxu0 0.0
        %4902 = vmatpush1.xpose.msra.mxu0 0.0
        %4903 = vmatprep.subr.mxu0 0.0
        %4904 = vmatpush1.xpose.msra.mxu0 0.0
        %4905 = vmatprep.subr.mxu0 0.0
        %4906 = vmatpush1.xpose.msra.mxu0 0.0
        %4907 = vmatprep.subr.mxu0 0.0
        %4908 = vmatpush1.xpose.msra.mxu0 0.0
        %4909 = vmatprep.subr.mxu0 0.0
        %4910 = vmatpush1.xpose.msra.mxu0 0.0
        %4911 = vmatprep.subr.mxu0 0.0
        %4912 = vmatpush1.xpose.msra.mxu0 0.0
        %4913 = vmatprep.subr.mxu0 0.0
        %4914 = vmatpush1.xpose.msra.mxu0 0.0
        %4915 = vmatprep.subr.mxu0 0.0
        %4916 = vmatpush1.xpose.msra.mxu0 0.0
        %4917 = vmatprep.subr.mxu0 0.0
        %4918 = vmatpush1.xpose.msra.mxu0 0.0
        %4919 = vmatprep.subr.mxu0 0.0
        %4920 = vmatpush1.xpose.msra.mxu0 0.0
        %4921 = vmatprep.mubr.f32.mxu0 0.0
        %4922 = vmatmul.mubr.f32.gmra.mrb[0].mxu0 %v4831
        %v4923 = vpop.f32.mrb[0].mxu0
        %v4924 = vadd.f32 0.0, %v4923
        %v4925 = vpop.f32.mrb[0].mxu0
        %4926 = vmatprep.mubr.f32.mxu0 0.0
        %4927 = vmatmul.mubr.f32.gmra.mrb[0].mxu0 %v4834
        %v4928 = vpop.f32.mrb[0].mxu0
        %v4929 = vadd.f32 0.0, %v4928
        %v4930 = vpop.f32.mrb[0].mxu0
        %4931 = vmatprep.mubr.f32.mxu0 0.0
        %4932 = vmatmul.mubr.f32.gmra.mrb[0].mxu0 %v4837
        %v4933 = vpop.f32.mrb[0].mxu0
        %v4934 = vadd.f32 0.0, %v4933
        %v4935 = vpop.f32.mrb[0].mxu0
        %4936 = vmatprep.mubr.f32.mxu0 0.0
        %4937 = vmatmul.mubr.f32.gmra.mrb[0].mxu0 %v4840
        %v4938 = vpop.f32.mrb[0].mxu0
        %v4939 = vadd.f32 0.0, %v4938
        %v4940 = vpop.f32.mrb[0].mxu0
        %4941 = vmatprep.mubr.f32.mxu0 0.0
        %4942 = vmatmul.mubr.f32.gmra.mrb[0].mxu0 %v4843
        %v4943 = vpop.f32.mrb[0].mxu0
        %v4944 = vadd.f32 0.0, %v4943
        %v4945 = vpop.f32.mrb[0].mxu0
        %4946 = vmatprep.mubr.f32.mxu0 0.0
        %4947 = vmatmul.mubr.f32.gmra.mrb[0].mxu0 %v4846
        %v4948 = vpop.f32.mrb[0].mxu0
        %v4949 = vadd.f32 0.0, %v4948
        %v4950 = vpop.f32.mrb[0].mxu0
        %4951 = vmatprep.mubr.f32.mxu0 0.0
        %4952 = vmatmul.mubr.f32.gmra.mrb[0].mxu0 %v4849
        %v4953 = vpop.f32.mrb[0].mxu0
        %v4954 = vadd.f32 0.0, %v4953
        %v4955 = vpop.f32.mrb[0].mxu0
        %4956 = vmatprep.mubr.f32.mxu0 0.0
        %4957 = vmatmul.mubr.f32.gmra.mrb[0].mxu0 %v4852
        %v4958 = vpop.f32.mrb[0].mxu0
        %v4959 = vadd.f32 0.0, %v4958
        %v4960 = vpop.f32.mrb[0].mxu0
        %4961 = vdwg.mxu0
        %v4963 = vsel %vm3593, %v3947, 0
        %v4966 = vsel %vm3593, %v3949, 0
        %v4969 = vsel %vm3593, %v3951, 0
        %v4972 = vsel %vm3593, %v3953, 0
        %v4975 = vsel %vm3593, %v3955, 0
        %v4978 = vsel %vm3593, %v3957, 0
        %v4981 = vsel %vm3593, %v3959, 0
        %v4984 = vsel %vm3593, %v3961, 0
        %v4987 = vsel %vm3593, %v2203, 0
        %4989 = vmatprep.subr.mxu0 0.0
        %4990 = vmatpush1.xpose.msra.mxu0 %v4987
        %4991 = vmatprep.subr.mxu0 0.0
        %4992 = vmatpush1.xpose.msra.mxu0 0.0
        %4993 = vmatprep.subr.mxu0 0.0
        %4994 = vmatpush1.xpose.msra.mxu0 0.0
        %4995 = vmatprep.subr.mxu0 0.0
        %4996 = vmatpush1.xpose.msra.mxu0 0.0
        %4997 = vmatprep.subr.mxu0 0.0
        %4998 = vmatpush1.xpose.msra.mxu0 0.0
        %4999 = vmatprep.subr.mxu0 0.0
        %5000 = vmatpush1.xpose.msra.mxu0 0.0
        %5001 = vmatprep.subr.mxu0 0.0
        %5002 = vmatpush1.xpose.msra.mxu0 0.0
        %5003 = vmatprep.subr.mxu0 0.0
        %5004 = vmatpush1.xpose.msra.mxu0 0.0
        %5005 = vmatprep.subr.mxu0 0.0
        %5006 = vmatpush1.xpose.msra.mxu0 0.0
        %5007 = vmatprep.subr.mxu0 0.0
        %5008 = vmatpush1.xpose.msra.mxu0 0.0
        %5009 = vmatprep.subr.mxu0 0.0
        %5010 = vmatpush1.xpose.msra.mxu0 0.0
        %5011 = vmatprep.subr.mxu0 0.0
        %5012 = vmatpush1.xpose.msra.mxu0 0.0
        %5013 = vmatprep.subr.mxu0 0.0
        %5014 = vmatpush1.xpose.msra.mxu0 0.0
        %5015 = vmatprep.subr.mxu0 0.0
        %5016 = vmatpush1.xpose.msra.mxu0 0.0
        %5017 = vmatprep.subr.mxu0 0.0
        %5018 = vmatpush1.xpose.msra.mxu0 0.0
        %5019 = vmatprep.subr.mxu0 0.0
        %5020 = vmatpush1.xpose.msra.mxu0 0.0
        %5021 = vmatprep.subr.mxu0 0.0
        %5022 = vmatpush1.xpose.msra.mxu0 0.0
        %5023 = vmatprep.subr.mxu0 0.0
        %5024 = vmatpush1.xpose.msra.mxu0 0.0
        %5025 = vmatprep.subr.mxu0 0.0
        %5026 = vmatpush1.xpose.msra.mxu0 0.0
        %5027 = vmatprep.subr.mxu0 0.0
        %5028 = vmatpush1.xpose.msra.mxu0 0.0
        %5029 = vmatprep.subr.mxu0 0.0
        %5030 = vmatpush1.xpose.msra.mxu0 0.0
        %5031 = vmatprep.subr.mxu0 0.0
        %5032 = vmatpush1.xpose.msra.mxu0 0.0
        %5033 = vmatprep.subr.mxu0 0.0
        %5034 = vmatpush1.xpose.msra.mxu0 0.0
        %5035 = vmatprep.subr.mxu0 0.0
        %5036 = vmatpush1.xpose.msra.mxu0 0.0
        %5037 = vmatprep.subr.mxu0 0.0
        %5038 = vmatpush1.xpose.msra.mxu0 0.0
        %5039 = vmatprep.subr.mxu0 0.0
        %5040 = vmatpush1.xpose.msra.mxu0 0.0
        %5041 = vmatprep.subr.mxu0 0.0
        %5042 = vmatpush1.xpose.msra.mxu0 0.0
        %5043 = vmatprep.subr.mxu0 0.0
        %5044 = vmatpush1.xpose.msra.mxu0 0.0
        %5045 = vmatprep.subr.mxu0 0.0
        %5046 = vmatpush1.xpose.msra.mxu0 0.0
        %5047 = vmatprep.subr.mxu0 0.0
        %5048 = vmatpush1.xpose.msra.mxu0 0.0
        %5049 = vmatprep.subr.mxu0 0.0
        %5050 = vmatpush1.xpose.msra.mxu0 0.0
        %5051 = vmatprep.subr.mxu0 0.0
        %5052 = vmatpush1.xpose.msra.mxu0 0.0
        %5053 = vmatprep.mubr.f32.mxu0 0.0
        %5054 = vmatmul.mubr.f32.gmra.mrb[0].mxu0 %v4963
        %v5055 = vpop.f32.mrb[0].mxu0
        %v5056 = vadd.f32 0.0, %v5055
        %v5057 = vpop.f32.mrb[0].mxu0
        %5058 = vmatprep.mubr.f32.mxu0 0.0
        %5059 = vmatmul.mubr.f32.gmra.mrb[0].mxu0 %v4966
        %v5060 = vpop.f32.mrb[0].mxu0
        %v5061 = vadd.f32 0.0, %v5060
        %v5062 = vpop.f32.mrb[0].mxu0
        %5063 = vmatprep.mubr.f32.mxu0 0.0
        %5064 = vmatmul.mubr.f32.gmra.mrb[0].mxu0 %v4969
        %v5065 = vpop.f32.mrb[0].mxu0
        %v5066 = vadd.f32 0.0, %v5065
        %v5067 = vpop.f32.mrb[0].mxu0
        %5068 = vmatprep.mubr.f32.mxu0 0.0
        %5069 = vmatmul.mubr.f32.gmra.mrb[0].mxu0 %v4972
        %v5070 = vpop.f32.mrb[0].mxu0
        %v5071 = vadd.f32 0.0, %v5070
        %v5072 = vpop.f32.mrb[0].mxu0
        %5073 = vmatprep.mubr.f32.mxu0 0.0
        %5074 = vmatmul.mubr.f32.gmra.mrb[0].mxu0 %v4975
        %v5075 = vpop.f32.mrb[0].mxu0
        %v5076 = vadd.f32 0.0, %v5075
        %v5077 = vpop.f32.mrb[0].mxu0
        %5078 = vmatprep.mubr.f32.mxu0 0.0
        %5079 = vmatmul.mubr.f32.gmra.mrb[0].mxu0 %v4978
        %v5080 = vpop.f32.mrb[0].mxu0
        %v5081 = vadd.f32 0.0, %v5080
        %v5082 = vpop.f32.mrb[0].mxu0
        %5083 = vmatprep.mubr.f32.mxu0 0.0
        %5084 = vmatmul.mubr.f32.gmra.mrb[0].mxu0 %v4981
        %v5085 = vpop.f32.mrb[0].mxu0
        %v5086 = vadd.f32 0.0, %v5085
        %v5087 = vpop.f32.mrb[0].mxu0
        %5088 = vmatprep.mubr.f32.mxu0 0.0
        %5089 = vmatmul.mubr.f32.gmra.mrb[0].mxu0 %v4984
        %v5090 = vpop.f32.mrb[0].mxu0
        %v5091 = vadd.f32 0.0, %v5090
        %v5092 = vpop.f32.mrb[0].mxu0
        %5093 = vdwg.mxu0
        %v5095 = vsel %vm3593, %v3963, 0
        %v5098 = vsel %vm3593, %v3965, 0
        %v5101 = vsel %vm3593, %v3967, 0
        %v5104 = vsel %vm3593, %v3969, 0
        %v5107 = vsel %vm3593, %v3971, 0
        %v5110 = vsel %vm3593, %v3973, 0
        %v5113 = vsel %vm3593, %v3975, 0
        %v5116 = vsel %vm3593, %v3977, 0
        %v5119 = vsel %vm3593, %v2276, 0
        %5121 = vmatprep.subr.mxu0 0.0
        %5122 = vmatpush1.xpose.msra.mxu0 %v5119
        %5123 = vmatprep.subr.mxu0 0.0
        %5124 = vmatpush1.xpose.msra.mxu0 0.0
        %5125 = vmatprep.subr.mxu0 0.0
        %5126 = vmatpush1.xpose.msra.mxu0 0.0
        %5127 = vmatprep.subr.mxu0 0.0
        %5128 = vmatpush1.xpose.msra.mxu0 0.0
        %5129 = vmatprep.subr.mxu0 0.0
        %5130 = vmatpush1.xpose.msra.mxu0 0.0
        %5131 = vmatprep.subr.mxu0 0.0
        %5132 = vmatpush1.xpose.msra.mxu0 0.0
        %5133 = vmatprep.subr.mxu0 0.0
        %5134 = vmatpush1.xpose.msra.mxu0 0.0
        %5135 = vmatprep.subr.mxu0 0.0
        %5136 = vmatpush1.xpose.msra.mxu0 0.0
        %5137 = vmatprep.subr.mxu0 0.0
        %5138 = vmatpush1.xpose.msra.mxu0 0.0
        %5139 = vmatprep.subr.mxu0 0.0
        %5140 = vmatpush1.xpose.msra.mxu0 0.0
        %5141 = vmatprep.subr.mxu0 0.0
        %5142 = vmatpush1.xpose.msra.mxu0 0.0
        %5143 = vmatprep.subr.mxu0 0.0
        %5144 = vmatpush1.xpose.msra.mxu0 0.0
        %5145 = vmatprep.subr.mxu0 0.0
        %5146 = vmatpush1.xpose.msra.mxu0 0.0
        %5147 = vmatprep.subr.mxu0 0.0
        %5148 = vmatpush1.xpose.msra.mxu0 0.0
        %5149 = vmatprep.subr.mxu0 0.0
        %5150 = vmatpush1.xpose.msra.mxu0 0.0
        %5151 = vmatprep.subr.mxu0 0.0
        %5152 = vmatpush1.xpose.msra.mxu0 0.0
        %5153 = vmatprep.subr.mxu0 0.0
        %5154 = vmatpush1.xpose.msra.mxu0 0.0
        %5155 = vmatprep.subr.mxu0 0.0
        %5156 = vmatpush1.xpose.msra.mxu0 0.0
        %5157 = vmatprep.subr.mxu0 0.0
        %5158 = vmatpush1.xpose.msra.mxu0 0.0
        %5159 = vmatprep.subr.mxu0 0.0
        %5160 = vmatpush1.xpose.msra.mxu0 0.0
        %5161 = vmatprep.subr.mxu0 0.0
        %5162 = vmatpush1.xpose.msra.mxu0 0.0
        %5163 = vmatprep.subr.mxu0 0.0
        %5164 = vmatpush1.xpose.msra.mxu0 0.0
        %5165 = vmatprep.subr.mxu0 0.0
        %5166 = vmatpush1.xpose.msra.mxu0 0.0
        %5167 = vmatprep.subr.mxu0 0.0
        %5168 = vmatpush1.xpose.msra.mxu0 0.0
        %5169 = vmatprep.subr.mxu0 0.0
        %5170 = vmatpush1.xpose.msra.mxu0 0.0
        %5171 = vmatprep.subr.mxu0 0.0
        %5172 = vmatpush1.xpose.msra.mxu0 0.0
        %5173 = vmatprep.subr.mxu0 0.0
        %5174 = vmatpush1.xpose.msra.mxu0 0.0
        %5175 = vmatprep.subr.mxu0 0.0
        %5176 = vmatpush1.xpose.msra.mxu0 0.0
        %5177 = vmatprep.subr.mxu0 0.0
        %5178 = vmatpush1.xpose.msra.mxu0 0.0
        %5179 = vmatprep.subr.mxu0 0.0
        %5180 = vmatpush1.xpose.msra.mxu0 0.0
        %5181 = vmatprep.subr.mxu0 0.0
        %5182 = vmatpush1.xpose.msra.mxu0 0.0
        %5183 = vmatprep.subr.mxu0 0.0
        %5184 = vmatpush1.xpose.msra.mxu0 0.0
        %5185 = vmatprep.mubr.f32.mxu0 0.0
        %5186 = vmatmul.mubr.f32.gmra.mrb[0].mxu0 %v5095
        %v5187 = vpop.f32.mrb[0].mxu0
        %v5188 = vadd.f32 0.0, %v5187
        %v5189 = vpop.f32.mrb[0].mxu0
        %5190 = vmatprep.mubr.f32.mxu0 0.0
        %5191 = vmatmul.mubr.f32.gmra.mrb[0].mxu0 %v5098
        %v5192 = vpop.f32.mrb[0].mxu0
        %v5193 = vadd.f32 0.0, %v5192
        %v5194 = vpop.f32.mrb[0].mxu0
        %5195 = vmatprep.mubr.f32.mxu0 0.0
        %5196 = vmatmul.mubr.f32.gmra.mrb[0].mxu0 %v5101
        %v5197 = vpop.f32.mrb[0].mxu0
        %v5198 = vadd.f32 0.0, %v5197
        %v5199 = vpop.f32.mrb[0].mxu0
        %5200 = vmatprep.mubr.f32.mxu0 0.0
        %5201 = vmatmul.mubr.f32.gmra.mrb[0].mxu0 %v5104
        %v5202 = vpop.f32.mrb[0].mxu0
        %v5203 = vadd.f32 0.0, %v5202
        %v5204 = vpop.f32.mrb[0].mxu0
        %5205 = vmatprep.mubr.f32.mxu0 0.0
        %5206 = vmatmul.mubr.f32.gmra.mrb[0].mxu0 %v5107
        %v5207 = vpop.f32.mrb[0].mxu0
        %v5208 = vadd.f32 0.0, %v5207
        %v5209 = vpop.f32.mrb[0].mxu0
        %5210 = vmatprep.mubr.f32.mxu0 0.0
        %5211 = vmatmul.mubr.f32.gmra.mrb[0].mxu0 %v5110
        %v5212 = vpop.f32.mrb[0].mxu0
        %v5213 = vadd.f32 0.0, %v5212
        %v5214 = vpop.f32.mrb[0].mxu0
        %5215 = vmatprep.mubr.f32.mxu0 0.0
        %5216 = vmatmul.mubr.f32.gmra.mrb[0].mxu0 %v5113
        %v5217 = vpop.f32.mrb[0].mxu0
        %v5218 = vadd.f32 0.0, %v5217
        %v5219 = vpop.f32.mrb[0].mxu0
        %5220 = vmatprep.mubr.f32.mxu0 0.0
        %5221 = vmatmul.mubr.f32.gmra.mrb[0].mxu0 %v5116
        %v5222 = vpop.f32.mrb[0].mxu0
        %v5223 = vadd.f32 0.0, %v5222
        %v5224 = vpop.f32.mrb[0].mxu0
        %5225 = vdwg.mxu0
        %v5226 = vrcp.pop %v3980
        %v5227 = vrcp.pop %v3983
        %v5228 = vrcp.pop %v3986
        %v5229 = vrcp.pop %v3989
        %v5230 = vrcp.pop %v3992
        %v5231 = vrcp.pop %v3995
        %v5232 = vrcp.pop %v3998
        %v5233 = vrcp.pop %v4001
        %v5234 = vrcp.pop %v4004
        %v5235 = vrcp.pop %v4007
        %v5236 = vrcp.pop %v4010
        %v5237 = vrcp.pop %v4013
        %v5238 = vrcp.pop %v4016
        %v5239 = vrcp.pop %v4019
        %v5240 = vrcp.pop %v4022
        %v5241 = vrcp.pop %v4025
        %v5242 = vrcp.pop %v4028
        %v5243 = vrcp.pop %v4031
        %v5244 = vrcp.pop %v4034
        %v5245 = vrcp.pop %v4037
        %v5246 = vrcp.pop %v4040
        %v5247 = vrcp.pop %v4043
        %v5248 = vrcp.pop %v4046
        %v5249 = vrcp.pop %v4049
        %v5250 = vrcp.pop %v4052
        %v5251 = vrcp.pop %v4055
        %v5252 = vrcp.pop %v4058
        %v5253 = vrcp.pop %v4061
        %v5254 = vrcp.pop %v4064
        %v5255 = vrcp.pop %v4067
        %v5256 = vrcp.pop %v4070
        %v5257 = vrcp.pop %v4073
        %v5258 = vrcp.pop %v4076
        %v5259 = vrcp.pop %v4079
        %v5260 = vrcp.pop %v4082
        %v5261 = vrcp.pop %v4085
        %v5262 = vrcp.pop %v4088
        %v5263 = vrcp.pop %v4091
        %v5264 = vrcp.pop %v4094
        %v5265 = vrcp.pop %v4097
        %v5266 = vrcp.pop %v4100
        %v5267 = vrcp.pop %v4103
        %v5268 = vrcp.pop %v4106
        %v5269 = vrcp.pop %v4109
        %v5270 = vrcp.pop %v4112
        %v5271 = vrcp.pop %v4115
        %v5272 = vrcp.pop %v4118
        %v5273 = vrcp.pop %v4121
        %v5274 = vrcp.pop %v4124
        %v5275 = vrcp.pop %v4127
        %v5276 = vrcp.pop %v4130
        %v5277 = vrcp.pop %v4133
        %v5278 = vrcp.pop %v4136
        %v5279 = vrcp.pop %v4139
        %v5280 = vrcp.pop %v4142
        %v5281 = vrcp.pop %v4145
        %v5282 = vrcp.pop %v4148
        %v5283 = vrcp.pop %v4151
        %v5284 = vrcp.pop %v4154
        %v5285 = vrcp.pop %v4157
        %v5286 = vrcp.pop %v4160
        %v5287 = vrcp.pop %v4163
        %v5288 = vrcp.pop %v4166
        %v5289 = vrcp.pop %v4169
        %v5290 = vmul.f32 %v4264, %v5226
        %v5291 = vmul.f32 %v4269, %v5227
        %v5292 = vmul.f32 %v4274, %v5228
        %v5293 = vmul.f32 %v4279, %v5229
        %v5294 = vmul.f32 %v4284, %v5230
        %v5295 = vmul.f32 %v4289, %v5231
        %v5296 = vmul.f32 %v4294, %v5232
        %v5297 = vmul.f32 %v4299, %v5233
        %v5298 = vmul.f32 %v4396, %v5234
        %v5299 = vmul.f32 %v4401, %v5235
        %v5300 = vmul.f32 %v4406, %v5236
        %v5301 = vmul.f32 %v4411, %v5237
        %v5302 = vmul.f32 %v4416, %v5238
        %v5303 = vmul.f32 %v4421, %v5239
        %v5304 = vmul.f32 %v4426, %v5240
        %v5305 = vmul.f32 %v4431, %v5241
        %v5306 = vmul.f32 %v4528, %v5242
        %v5307 = vmul.f32 %v4533, %v5243
        %v5308 = vmul.f32 %v4538, %v5244
        %v5309 = vmul.f32 %v4543, %v5245
        %v5310 = vmul.f32 %v4548, %v5246
        %v5311 = vmul.f32 %v4553, %v5247
        %v5312 = vmul.f32 %v4558, %v5248
        %v5313 = vmul.f32 %v4563, %v5249
        %v5314 = vmul.f32 %v4660, %v5250
        %v5315 = vmul.f32 %v4665, %v5251
        %v5316 = vmul.f32 %v4670, %v5252
        %v5317 = vmul.f32 %v4675, %v5253
        %v5318 = vmul.f32 %v4680, %v5254
        %v5319 = vmul.f32 %v4685, %v5255
        %v5320 = vmul.f32 %v4690, %v5256
        %v5321 = vmul.f32 %v4695, %v5257
        %v5322 = vmul.f32 %v4792, %v5258
        %v5323 = vmul.f32 %v4797, %v5259
        %v5324 = vmul.f32 %v4802, %v5260
        %v5325 = vmul.f32 %v4807, %v5261
        %v5326 = vmul.f32 %v4812, %v5262
        %v5327 = vmul.f32 %v4817, %v5263
        %v5328 = vmul.f32 %v4822, %v5264
        %v5329 = vmul.f32 %v4827, %v5265
        %v5330 = vmul.f32 %v4924, %v5266
        %v5331 = vmul.f32 %v4929, %v5267
        %v5332 = vmul.f32 %v4934, %v5268
        %v5333 = vmul.f32 %v4939, %v5269
        %v5334 = vmul.f32 %v4944, %v5270
        %v5335 = vmul.f32 %v4949, %v5271
        %v5336 = vmul.f32 %v4954, %v5272
        %v5337 = vmul.f32 %v4959, %v5273
        %v5338 = vmul.f32 %v5056, %v5274
        %v5339 = vmul.f32 %v5061, %v5275
        %v5340 = vmul.f32 %v5066, %v5276
        %v5341 = vmul.f32 %v5071, %v5277
        %v5342 = vmul.f32 %v5076, %v5278
        %v5343 = vmul.f32 %v5081, %v5279
        %v5344 = vmul.f32 %v5086, %v5280
        %v5345 = vmul.f32 %v5091, %v5281
        %v5346 = vmul.f32 %v5188, %v5282
        %v5347 = vmul.f32 %v5193, %v5283
        %v5348 = vmul.f32 %v5198, %v5284
        %v5349 = vmul.f32 %v5203, %v5285
        %v5350 = vmul.f32 %v5208, %v5286
        %v5351 = vmul.f32 %v5213, %v5287
        %v5352 = vmul.f32 %v5218, %v5288
        %v5353 = vmul.f32 %v5223, %v5289
        %v5354 = vld [vmem:[%s7] sm:$0xf]
        %v5355 = vld [vmem:[%s7 + $0x4] sm:$0xf]
        %v5356 = vld [vmem:[%s7 + $0x8] sm:$0xf]
        %v5357 = vld [vmem:[%s7 + $0xc] sm:$0xf]
        %v5358 = vld [vmem:[%s7 + $0x10] sm:$0xf]
        %v5359 = vld [vmem:[%s7 + $0x14] sm:$0xf]
        %v5360 = vld [vmem:[%s7 + $0x18] sm:$0xf]
        %v5361 = vld [vmem:[%s7 + $0x1c] sm:$0xf]
        %5362 = vxpose.xlu0.b32.start [1/16] %v5354, 128
        %5363 = vxpose.xlu0.b32.cont [2/16] 0.0, 128
        %5364 = vxpose.xlu0.b32.cont [3/16] 0.0, 128
        %5365 = vxpose.xlu0.b32.cont [4/16] 0.0, 128
        %5366 = vxpose.xlu0.b32.cont [5/16] 0.0, 128
        %5367 = vxpose.xlu0.b32.cont [6/16] 0.0, 128
        %5368 = vxpose.xlu0.b32.cont [7/16] 0.0, 128
        %5369 = vxpose.xlu0.b32.cont [8/16] 0.0, 128
        %5370 = vxpose.xlu0.b32.cont [9/16] 0.0, 128
        %5371 = vxpose.xlu0.b32.cont [10/16] 0.0, 128
        %5372 = vxpose.xlu0.b32.cont [11/16] 0.0, 128
        %5373 = vxpose.xlu0.b32.cont [12/16] 0.0, 128
        %5374 = vxpose.xlu0.b32.cont [13/16] 0.0, 128
        %5375 = vxpose.xlu0.b32.cont [14/16] 0.0, 128
        %5376 = vxpose.xlu0.b32.cont [15/16] 0.0, 128
        %5377 = vxpose.xlu0.b32.end [16/16] 0.0, 128
        %v5378 = vpop.trf.xlu0
        %v5379 = vpop.trf.xlu0
        %v5380 = vpop.trf.xlu0
        %v5381 = vpop.trf.xlu0
        %v5382 = vpop.trf.xlu0
        %v5383 = vpop.trf.xlu0
        %v5384 = vpop.trf.xlu0
        %v5385 = vpop.trf.xlu0
        %v5386 = vpop.trf.xlu0
        %v5387 = vpop.trf.xlu0
        %v5388 = vpop.trf.xlu0
        %v5389 = vpop.trf.xlu0
        %v5390 = vpop.trf.xlu0
        %v5391 = vpop.trf.xlu0
        %v5392 = vpop.trf.xlu0
        %v5393 = vpop.trf.xlu0
        %v5395 = vsel %vm2311, %v5378, 0
        %v5398 = vsel %vm2311, %v5379, 0
        %v5401 = vsel %vm2311, %v5380, 0
        %v5404 = vsel %vm2311, %v5381, 0
        %v5407 = vsel %vm2311, %v5290, 0
        %v5410 = vsel %vm2311, %v5291, 0
        %v5413 = vsel %vm2311, %v5292, 0
        %v5416 = vsel %vm2311, %v5293, 0
        %v5419 = vsel %vm2311, %v5294, 0
        %v5422 = vsel %vm2311, %v5295, 0
        %v5425 = vsel %vm2311, %v5296, 0
        %v5428 = vsel %vm2311, %v5297, 0
        %5430 = vmatprep.subr.mxu0 0.0
        %5431 = vmatpush1.xpose.msra.mxu0 %v5407
        %5432 = vmatprep.subr.mxu0 0.0
        %5433 = vmatpush1.xpose.msra.mxu0 %v5410
        %5434 = vmatprep.subr.mxu0 0.0
        %5435 = vmatpush1.xpose.msra.mxu0 %v5413
        %5436 = vmatprep.subr.mxu0 0.0
        %5437 = vmatpush1.xpose.msra.mxu0 %v5416
        %5438 = vmatprep.subr.mxu0 0.0
        %5439 = vmatpush1.xpose.msra.mxu0 %v5419
        %5440 = vmatprep.subr.mxu0 0.0
        %5441 = vmatpush1.xpose.msra.mxu0 %v5422
        %5442 = vmatprep.subr.mxu0 0.0
        %5443 = vmatpush1.xpose.msra.mxu0 %v5425
        %5444 = vmatprep.subr.mxu0 0.0
        %5445 = vmatpush1.xpose.msra.mxu0 %v5428
        %5446 = vmatprep.subr.mxu0 0.0
        %5447 = vmatpush1.xpose.msra.mxu0 0.0
        %5448 = vmatprep.subr.mxu0 0.0
        %5449 = vmatpush1.xpose.msra.mxu0 0.0
        %5450 = vmatprep.subr.mxu0 0.0
        %5451 = vmatpush1.xpose.msra.mxu0 0.0
        %5452 = vmatprep.subr.mxu0 0.0
        %5453 = vmatpush1.xpose.msra.mxu0 0.0
        %5454 = vmatprep.subr.mxu0 0.0
        %5455 = vmatpush1.xpose.msra.mxu0 0.0
        %5456 = vmatprep.subr.mxu0 0.0
        %5457 = vmatpush1.xpose.msra.mxu0 0.0
        %5458 = vmatprep.subr.mxu0 0.0
        %5459 = vmatpush1.xpose.msra.mxu0 0.0
        %5460 = vmatprep.subr.mxu0 0.0
        %5461 = vmatpush1.xpose.msra.mxu0 0.0
        %5462 = vmatprep.subr.mxu0 0.0
        %5463 = vmatpush1.xpose.msra.mxu0 0.0
        %5464 = vmatprep.subr.mxu0 0.0
        %5465 = vmatpush1.xpose.msra.mxu0 0.0
        %5466 = vmatprep.subr.mxu0 0.0
        %5467 = vmatpush1.xpose.msra.mxu0 0.0
        %5468 = vmatprep.subr.mxu0 0.0
        %5469 = vmatpush1.xpose.msra.mxu0 0.0
        %5470 = vmatprep.subr.mxu0 0.0
        %5471 = vmatpush1.xpose.msra.mxu0 0.0
        %5472 = vmatprep.subr.mxu0 0.0
        %5473 = vmatpush1.xpose.msra.mxu0 0.0
        %5474 = vmatprep.subr.mxu0 0.0
        %5475 = vmatpush1.xpose.msra.mxu0 0.0
        %5476 = vmatprep.subr.mxu0 0.0
        %5477 = vmatpush1.xpose.msra.mxu0 0.0
        %5478 = vmatprep.subr.mxu0 0.0
        %5479 = vmatpush1.xpose.msra.mxu0 0.0
        %5480 = vmatprep.subr.mxu0 0.0
        %5481 = vmatpush1.xpose.msra.mxu0 0.0
        %5482 = vmatprep.subr.mxu0 0.0
        %5483 = vmatpush1.xpose.msra.mxu0 0.0
        %5484 = vmatprep.subr.mxu0 0.0
        %5485 = vmatpush1.xpose.msra.mxu0 0.0
        %5486 = vmatprep.subr.mxu0 0.0
        %5487 = vmatpush1.xpose.msra.mxu0 0.0
        %5488 = vmatprep.subr.mxu0 0.0
        %5489 = vmatpush1.xpose.msra.mxu0 0.0
        %5490 = vmatprep.subr.mxu0 0.0
        %5491 = vmatpush1.xpose.msra.mxu0 0.0
        %5492 = vmatprep.subr.mxu0 0.0
        %5493 = vmatpush1.xpose.msra.mxu0 0.0
        %5494 = vmatprep.mubr.f32.mxu0 0.0
        %5495 = vmatmul.mubr.f32.gmra.mrb[0].mxu0 %v5395
        %v5496 = vpop.f32.mrb[0].mxu0
        %v5497 = vadd.f32 0.0, %v5496
        %v5498 = vpop.f32.mrb[0].mxu0
        %5499 = vmatprep.mubr.f32.mxu0 0.0
        %5500 = vmatmul.mubr.f32.gmra.mrb[0].mxu0 %v5398
        %v5501 = vpop.f32.mrb[0].mxu0
        %v5502 = vadd.f32 0.0, %v5501
        %v5503 = vpop.f32.mrb[0].mxu0
        %5504 = vmatprep.mubr.f32.mxu0 0.0
        %5505 = vmatmul.mubr.f32.gmra.mrb[0].mxu0 %v5401
        %v5506 = vpop.f32.mrb[0].mxu0
        %v5507 = vadd.f32 0.0, %v5506
        %v5508 = vpop.f32.mrb[0].mxu0
        %5509 = vmatprep.mubr.f32.mxu0 0.0
        %5510 = vmatmul.mubr.f32.gmra.mrb[0].mxu0 %v5404
        %v5511 = vpop.f32.mrb[0].mxu0
        %v5512 = vadd.f32 0.0, %v5511
        %v5513 = vpop.f32.mrb[0].mxu0
        %5514 = vdwg.mxu0
        %5515 = vxpose.xlu0.b32.start [1/16] %v5355, 128
        %5516 = vxpose.xlu0.b32.cont [2/16] 0.0, 128
        %5517 = vxpose.xlu0.b32.cont [3/16] 0.0, 128
        %5518 = vxpose.xlu0.b32.cont [4/16] 0.0, 128
        %5519 = vxpose.xlu0.b32.cont [5/16] 0.0, 128
        %5520 = vxpose.xlu0.b32.cont [6/16] 0.0, 128
        %5521 = vxpose.xlu0.b32.cont [7/16] 0.0, 128
        %5522 = vxpose.xlu0.b32.cont [8/16] 0.0, 128
        %5523 = vxpose.xlu0.b32.cont [9/16] 0.0, 128
        %5524 = vxpose.xlu0.b32.cont [10/16] 0.0, 128
        %5525 = vxpose.xlu0.b32.cont [11/16] 0.0, 128
        %5526 = vxpose.xlu0.b32.cont [12/16] 0.0, 128
        %5527 = vxpose.xlu0.b32.cont [13/16] 0.0, 128
        %5528 = vxpose.xlu0.b32.cont [14/16] 0.0, 128
        %5529 = vxpose.xlu0.b32.cont [15/16] 0.0, 128
        %5530 = vxpose.xlu0.b32.end [16/16] 0.0, 128
        %v5531 = vpop.trf.xlu0
        %v5532 = vpop.trf.xlu0
        %v5533 = vpop.trf.xlu0
        %v5534 = vpop.trf.xlu0
        %v5535 = vpop.trf.xlu0
        %v5536 = vpop.trf.xlu0
        %v5537 = vpop.trf.xlu0
        %v5538 = vpop.trf.xlu0
        %v5539 = vpop.trf.xlu0
        %v5540 = vpop.trf.xlu0
        %v5541 = vpop.trf.xlu0
        %v5542 = vpop.trf.xlu0
        %v5543 = vpop.trf.xlu0
        %v5544 = vpop.trf.xlu0
        %v5545 = vpop.trf.xlu0
        %v5546 = vpop.trf.xlu0
        %v5548 = vsel %vm2311, %v5531, 0
        %v5551 = vsel %vm2311, %v5532, 0
        %v5554 = vsel %vm2311, %v5533, 0
        %v5557 = vsel %vm2311, %v5534, 0
        %v5560 = vsel %vm2311, %v5298, 0
        %v5563 = vsel %vm2311, %v5299, 0
        %v5566 = vsel %vm2311, %v5300, 0
        %v5569 = vsel %vm2311, %v5301, 0
        %v5572 = vsel %vm2311, %v5302, 0
        %v5575 = vsel %vm2311, %v5303, 0
        %v5578 = vsel %vm2311, %v5304, 0
        %v5581 = vsel %vm2311, %v5305, 0
        %5583 = vmatprep.subr.mxu0 0.0
        %5584 = vmatpush1.xpose.msra.mxu0 %v5560
        %5585 = vmatprep.subr.mxu0 0.0
        %5586 = vmatpush1.xpose.msra.mxu0 %v5563
        %5587 = vmatprep.subr.mxu0 0.0
        %5588 = vmatpush1.xpose.msra.mxu0 %v5566
        %5589 = vmatprep.subr.mxu0 0.0
        %5590 = vmatpush1.xpose.msra.mxu0 %v5569
        %5591 = vmatprep.subr.mxu0 0.0
        %5592 = vmatpush1.xpose.msra.mxu0 %v5572
        %5593 = vmatprep.subr.mxu0 0.0
        %5594 = vmatpush1.xpose.msra.mxu0 %v5575
        %5595 = vmatprep.subr.mxu0 0.0
        %5596 = vmatpush1.xpose.msra.mxu0 %v5578
        %5597 = vmatprep.subr.mxu0 0.0
        %5598 = vmatpush1.xpose.msra.mxu0 %v5581
        %5599 = vmatprep.subr.mxu0 0.0
        %5600 = vmatpush1.xpose.msra.mxu0 0.0
        %5601 = vmatprep.subr.mxu0 0.0
        %5602 = vmatpush1.xpose.msra.mxu0 0.0
        %5603 = vmatprep.subr.mxu0 0.0
        %5604 = vmatpush1.xpose.msra.mxu0 0.0
        %5605 = vmatprep.subr.mxu0 0.0
        %5606 = vmatpush1.xpose.msra.mxu0 0.0
        %5607 = vmatprep.subr.mxu0 0.0
        %5608 = vmatpush1.xpose.msra.mxu0 0.0
        %5609 = vmatprep.subr.mxu0 0.0
        %5610 = vmatpush1.xpose.msra.mxu0 0.0
        %5611 = vmatprep.subr.mxu0 0.0
        %5612 = vmatpush1.xpose.msra.mxu0 0.0
        %5613 = vmatprep.subr.mxu0 0.0
        %5614 = vmatpush1.xpose.msra.mxu0 0.0
        %5615 = vmatprep.subr.mxu0 0.0
        %5616 = vmatpush1.xpose.msra.mxu0 0.0
        %5617 = vmatprep.subr.mxu0 0.0
        %5618 = vmatpush1.xpose.msra.mxu0 0.0
        %5619 = vmatprep.subr.mxu0 0.0
        %5620 = vmatpush1.xpose.msra.mxu0 0.0
        %5621 = vmatprep.subr.mxu0 0.0
        %5622 = vmatpush1.xpose.msra.mxu0 0.0
        %5623 = vmatprep.subr.mxu0 0.0
        %5624 = vmatpush1.xpose.msra.mxu0 0.0
        %5625 = vmatprep.subr.mxu0 0.0
        %5626 = vmatpush1.xpose.msra.mxu0 0.0
        %5627 = vmatprep.subr.mxu0 0.0
        %5628 = vmatpush1.xpose.msra.mxu0 0.0
        %5629 = vmatprep.subr.mxu0 0.0
        %5630 = vmatpush1.xpose.msra.mxu0 0.0
        %5631 = vmatprep.subr.mxu0 0.0
        %5632 = vmatpush1.xpose.msra.mxu0 0.0
        %5633 = vmatprep.subr.mxu0 0.0
        %5634 = vmatpush1.xpose.msra.mxu0 0.0
        %5635 = vmatprep.subr.mxu0 0.0
        %5636 = vmatpush1.xpose.msra.mxu0 0.0
        %5637 = vmatprep.subr.mxu0 0.0
        %5638 = vmatpush1.xpose.msra.mxu0 0.0
        %5639 = vmatprep.subr.mxu0 0.0
        %5640 = vmatpush1.xpose.msra.mxu0 0.0
        %5641 = vmatprep.subr.mxu0 0.0
        %5642 = vmatpush1.xpose.msra.mxu0 0.0
        %5643 = vmatprep.subr.mxu0 0.0
        %5644 = vmatpush1.xpose.msra.mxu0 0.0
        %5645 = vmatprep.subr.mxu0 0.0
        %5646 = vmatpush1.xpose.msra.mxu0 0.0
        %5647 = vmatprep.mubr.f32.mxu0 0.0
        %5648 = vmatmul.mubr.f32.gmra.mrb[0].mxu0 %v5548
        %v5649 = vpop.f32.mrb[0].mxu0
        %v5650 = vadd.f32 0.0, %v5649
        %v5651 = vpop.f32.mrb[0].mxu0
        %5652 = vmatprep.mubr.f32.mxu0 0.0
        %5653 = vmatmul.mubr.f32.gmra.mrb[0].mxu0 %v5551
        %v5654 = vpop.f32.mrb[0].mxu0
        %v5655 = vadd.f32 0.0, %v5654
        %v5656 = vpop.f32.mrb[0].mxu0
        %5657 = vmatprep.mubr.f32.mxu0 0.0
        %5658 = vmatmul.mubr.f32.gmra.mrb[0].mxu0 %v5554
        %v5659 = vpop.f32.mrb[0].mxu0
        %v5660 = vadd.f32 0.0, %v5659
        %v5661 = vpop.f32.mrb[0].mxu0
        %5662 = vmatprep.mubr.f32.mxu0 0.0
        %5663 = vmatmul.mubr.f32.gmra.mrb[0].mxu0 %v5557
        %v5664 = vpop.f32.mrb[0].mxu0
        %v5665 = vadd.f32 0.0, %v5664
        %v5666 = vpop.f32.mrb[0].mxu0
        %5667 = vdwg.mxu0
        %5668 = vxpose.xlu0.b32.start [1/16] %v5356, 128
        %5669 = vxpose.xlu0.b32.cont [2/16] 0.0, 128
        %5670 = vxpose.xlu0.b32.cont [3/16] 0.0, 128
        %5671 = vxpose.xlu0.b32.cont [4/16] 0.0, 128
        %5672 = vxpose.xlu0.b32.cont [5/16] 0.0, 128
        %5673 = vxpose.xlu0.b32.cont [6/16] 0.0, 128
        %5674 = vxpose.xlu0.b32.cont [7/16] 0.0, 128
        %5675 = vxpose.xlu0.b32.cont [8/16] 0.0, 128
        %5676 = vxpose.xlu0.b32.cont [9/16] 0.0, 128
        %5677 = vxpose.xlu0.b32.cont [10/16] 0.0, 128
        %5678 = vxpose.xlu0.b32.cont [11/16] 0.0, 128
        %5679 = vxpose.xlu0.b32.cont [12/16] 0.0, 128
        %5680 = vxpose.xlu0.b32.cont [13/16] 0.0, 128
        %5681 = vxpose.xlu0.b32.cont [14/16] 0.0, 128
        %5682 = vxpose.xlu0.b32.cont [15/16] 0.0, 128
        %5683 = vxpose.xlu0.b32.end [16/16] 0.0, 128
        %v5684 = vpop.trf.xlu0
        %v5685 = vpop.trf.xlu0
        %v5686 = vpop.trf.xlu0
        %v5687 = vpop.trf.xlu0
        %v5688 = vpop.trf.xlu0
        %v5689 = vpop.trf.xlu0
        %v5690 = vpop.trf.xlu0
        %v5691 = vpop.trf.xlu0
        %v5692 = vpop.trf.xlu0
        %v5693 = vpop.trf.xlu0
        %v5694 = vpop.trf.xlu0
        %v5695 = vpop.trf.xlu0
        %v5696 = vpop.trf.xlu0
        %v5697 = vpop.trf.xlu0
        %v5698 = vpop.trf.xlu0
        %v5699 = vpop.trf.xlu0
        %v5701 = vsel %vm2311, %v5684, 0
        %v5704 = vsel %vm2311, %v5685, 0
        %v5707 = vsel %vm2311, %v5686, 0
        %v5710 = vsel %vm2311, %v5687, 0
        %v5713 = vsel %vm2311, %v5306, 0
        %v5716 = vsel %vm2311, %v5307, 0
        %v5719 = vsel %vm2311, %v5308, 0
        %v5722 = vsel %vm2311, %v5309, 0
        %v5725 = vsel %vm2311, %v5310, 0
        %v5728 = vsel %vm2311, %v5311, 0
        %v5731 = vsel %vm2311, %v5312, 0
        %v5734 = vsel %vm2311, %v5313, 0
        %5736 = vmatprep.subr.mxu0 0.0
        %5737 = vmatpush1.xpose.msra.mxu0 %v5713
        %5738 = vmatprep.subr.mxu0 0.0
        %5739 = vmatpush1.xpose.msra.mxu0 %v5716
        %5740 = vmatprep.subr.mxu0 0.0
        %5741 = vmatpush1.xpose.msra.mxu0 %v5719
        %5742 = vmatprep.subr.mxu0 0.0
        %5743 = vmatpush1.xpose.msra.mxu0 %v5722
        %5744 = vmatprep.subr.mxu0 0.0
        %5745 = vmatpush1.xpose.msra.mxu0 %v5725
        %5746 = vmatprep.subr.mxu0 0.0
        %5747 = vmatpush1.xpose.msra.mxu0 %v5728
        %5748 = vmatprep.subr.mxu0 0.0
        %5749 = vmatpush1.xpose.msra.mxu0 %v5731
        %5750 = vmatprep.subr.mxu0 0.0
        %5751 = vmatpush1.xpose.msra.mxu0 %v5734
        %5752 = vmatprep.subr.mxu0 0.0
        %5753 = vmatpush1.xpose.msra.mxu0 0.0
        %5754 = vmatprep.subr.mxu0 0.0
        %5755 = vmatpush1.xpose.msra.mxu0 0.0
        %5756 = vmatprep.subr.mxu0 0.0
        %5757 = vmatpush1.xpose.msra.mxu0 0.0
        %5758 = vmatprep.subr.mxu0 0.0
        %5759 = vmatpush1.xpose.msra.mxu0 0.0
        %5760 = vmatprep.subr.mxu0 0.0
        %5761 = vmatpush1.xpose.msra.mxu0 0.0
        %5762 = vmatprep.subr.mxu0 0.0
        %5763 = vmatpush1.xpose.msra.mxu0 0.0
        %5764 = vmatprep.subr.mxu0 0.0
        %5765 = vmatpush1.xpose.msra.mxu0 0.0
        %5766 = vmatprep.subr.mxu0 0.0
        %5767 = vmatpush1.xpose.msra.mxu0 0.0
        %5768 = vmatprep.subr.mxu0 0.0
        %5769 = vmatpush1.xpose.msra.mxu0 0.0
        %5770 = vmatprep.subr.mxu0 0.0
        %5771 = vmatpush1.xpose.msra.mxu0 0.0
        %5772 = vmatprep.subr.mxu0 0.0
        %5773 = vmatpush1.xpose.msra.mxu0 0.0
        %5774 = vmatprep.subr.mxu0 0.0
        %5775 = vmatpush1.xpose.msra.mxu0 0.0
        %5776 = vmatprep.subr.mxu0 0.0
        %5777 = vmatpush1.xpose.msra.mxu0 0.0
        %5778 = vmatprep.subr.mxu0 0.0
        %5779 = vmatpush1.xpose.msra.mxu0 0.0
        %5780 = vmatprep.subr.mxu0 0.0
        %5781 = vmatpush1.xpose.msra.mxu0 0.0
        %5782 = vmatprep.subr.mxu0 0.0
        %5783 = vmatpush1.xpose.msra.mxu0 0.0
        %5784 = vmatprep.subr.mxu0 0.0
        %5785 = vmatpush1.xpose.msra.mxu0 0.0
        %5786 = vmatprep.subr.mxu0 0.0
        %5787 = vmatpush1.xpose.msra.mxu0 0.0
        %5788 = vmatprep.subr.mxu0 0.0
        %5789 = vmatpush1.xpose.msra.mxu0 0.0
        %5790 = vmatprep.subr.mxu0 0.0
        %5791 = vmatpush1.xpose.msra.mxu0 0.0
        %5792 = vmatprep.subr.mxu0 0.0
        %5793 = vmatpush1.xpose.msra.mxu0 0.0
        %5794 = vmatprep.subr.mxu0 0.0
        %5795 = vmatpush1.xpose.msra.mxu0 0.0
        %5796 = vmatprep.subr.mxu0 0.0
        %5797 = vmatpush1.xpose.msra.mxu0 0.0
        %5798 = vmatprep.subr.mxu0 0.0
        %5799 = vmatpush1.xpose.msra.mxu0 0.0
        %5800 = vmatprep.mubr.f32.mxu0 0.0
        %5801 = vmatmul.mubr.f32.gmra.mrb[0].mxu0 %v5701
        %v5802 = vpop.f32.mrb[0].mxu0
        %v5803 = vadd.f32 0.0, %v5802
        %v5804 = vpop.f32.mrb[0].mxu0
        %5805 = vmatprep.mubr.f32.mxu0 0.0
        %5806 = vmatmul.mubr.f32.gmra.mrb[0].mxu0 %v5704
        %v5807 = vpop.f32.mrb[0].mxu0
        %v5808 = vadd.f32 0.0, %v5807
        %v5809 = vpop.f32.mrb[0].mxu0
        %5810 = vmatprep.mubr.f32.mxu0 0.0
        %5811 = vmatmul.mubr.f32.gmra.mrb[0].mxu0 %v5707
        %v5812 = vpop.f32.mrb[0].mxu0
        %v5813 = vadd.f32 0.0, %v5812
        %v5814 = vpop.f32.mrb[0].mxu0
        %5815 = vmatprep.mubr.f32.mxu0 0.0
        %5816 = vmatmul.mubr.f32.gmra.mrb[0].mxu0 %v5710
        %v5817 = vpop.f32.mrb[0].mxu0
        %v5818 = vadd.f32 0.0, %v5817
        %v5819 = vpop.f32.mrb[0].mxu0
        %5820 = vdwg.mxu0
        %5821 = vxpose.xlu0.b32.start [1/16] %v5357, 128
        %5822 = vxpose.xlu0.b32.cont [2/16] 0.0, 128
        %5823 = vxpose.xlu0.b32.cont [3/16] 0.0, 128
        %5824 = vxpose.xlu0.b32.cont [4/16] 0.0, 128
        %5825 = vxpose.xlu0.b32.cont [5/16] 0.0, 128
        %5826 = vxpose.xlu0.b32.cont [6/16] 0.0, 128
        %5827 = vxpose.xlu0.b32.cont [7/16] 0.0, 128
        %5828 = vxpose.xlu0.b32.cont [8/16] 0.0, 128
        %5829 = vxpose.xlu0.b32.cont [9/16] 0.0, 128
        %5830 = vxpose.xlu0.b32.cont [10/16] 0.0, 128
        %5831 = vxpose.xlu0.b32.cont [11/16] 0.0, 128
        %5832 = vxpose.xlu0.b32.cont [12/16] 0.0, 128
        %5833 = vxpose.xlu0.b32.cont [13/16] 0.0, 128
        %5834 = vxpose.xlu0.b32.cont [14/16] 0.0, 128
        %5835 = vxpose.xlu0.b32.cont [15/16] 0.0, 128
        %5836 = vxpose.xlu0.b32.end [16/16] 0.0, 128
        %v5837 = vpop.trf.xlu0
        %v5838 = vpop.trf.xlu0
        %v5839 = vpop.trf.xlu0
        %v5840 = vpop.trf.xlu0
        %v5841 = vpop.trf.xlu0
        %v5842 = vpop.trf.xlu0
        %v5843 = vpop.trf.xlu0
        %v5844 = vpop.trf.xlu0
        %v5845 = vpop.trf.xlu0
        %v5846 = vpop.trf.xlu0
        %v5847 = vpop.trf.xlu0
        %v5848 = vpop.trf.xlu0
        %v5849 = vpop.trf.xlu0
        %v5850 = vpop.trf.xlu0
        %v5851 = vpop.trf.xlu0
        %v5852 = vpop.trf.xlu0
        %v5854 = vsel %vm2311, %v5837, 0
        %v5857 = vsel %vm2311, %v5838, 0
        %v5860 = vsel %vm2311, %v5839, 0
        %v5863 = vsel %vm2311, %v5840, 0
        %v5866 = vsel %vm2311, %v5314, 0
        %v5869 = vsel %vm2311, %v5315, 0
        %v5872 = vsel %vm2311, %v5316, 0
        %v5875 = vsel %vm2311, %v5317, 0
        %v5878 = vsel %vm2311, %v5318, 0
        %v5881 = vsel %vm2311, %v5319, 0
        %v5884 = vsel %vm2311, %v5320, 0
        %v5887 = vsel %vm2311, %v5321, 0
        %5889 = vmatprep.subr.mxu0 0.0
        %5890 = vmatpush1.xpose.msra.mxu0 %v5866
        %5891 = vmatprep.subr.mxu0 0.0
        %5892 = vmatpush1.xpose.msra.mxu0 %v5869
        %5893 = vmatprep.subr.mxu0 0.0
        %5894 = vmatpush1.xpose.msra.mxu0 %v5872
        %5895 = vmatprep.subr.mxu0 0.0
        %5896 = vmatpush1.xpose.msra.mxu0 %v5875
        %5897 = vmatprep.subr.mxu0 0.0
        %5898 = vmatpush1.xpose.msra.mxu0 %v5878
        %5899 = vmatprep.subr.mxu0 0.0
        %5900 = vmatpush1.xpose.msra.mxu0 %v5881
        %5901 = vmatprep.subr.mxu0 0.0
        %5902 = vmatpush1.xpose.msra.mxu0 %v5884
        %5903 = vmatprep.subr.mxu0 0.0
        %5904 = vmatpush1.xpose.msra.mxu0 %v5887
        %5905 = vmatprep.subr.mxu0 0.0
        %5906 = vmatpush1.xpose.msra.mxu0 0.0
        %5907 = vmatprep.subr.mxu0 0.0
        %5908 = vmatpush1.xpose.msra.mxu0 0.0
        %5909 = vmatprep.subr.mxu0 0.0
        %5910 = vmatpush1.xpose.msra.mxu0 0.0
        %5911 = vmatprep.subr.mxu0 0.0
        %5912 = vmatpush1.xpose.msra.mxu0 0.0
        %5913 = vmatprep.subr.mxu0 0.0
        %5914 = vmatpush1.xpose.msra.mxu0 0.0
        %5915 = vmatprep.subr.mxu0 0.0
        %5916 = vmatpush1.xpose.msra.mxu0 0.0
        %5917 = vmatprep.subr.mxu0 0.0
        %5918 = vmatpush1.xpose.msra.mxu0 0.0
        %5919 = vmatprep.subr.mxu0 0.0
        %5920 = vmatpush1.xpose.msra.mxu0 0.0
        %5921 = vmatprep.subr.mxu0 0.0
        %5922 = vmatpush1.xpose.msra.mxu0 0.0
        %5923 = vmatprep.subr.mxu0 0.0
        %5924 = vmatpush1.xpose.msra.mxu0 0.0
        %5925 = vmatprep.subr.mxu0 0.0
        %5926 = vmatpush1.xpose.msra.mxu0 0.0
        %5927 = vmatprep.subr.mxu0 0.0
        %5928 = vmatpush1.xpose.msra.mxu0 0.0
        %5929 = vmatprep.subr.mxu0 0.0
        %5930 = vmatpush1.xpose.msra.mxu0 0.0
        %5931 = vmatprep.subr.mxu0 0.0
        %5932 = vmatpush1.xpose.msra.mxu0 0.0
        %5933 = vmatprep.subr.mxu0 0.0
        %5934 = vmatpush1.xpose.msra.mxu0 0.0
        %5935 = vmatprep.subr.mxu0 0.0
        %5936 = vmatpush1.xpose.msra.mxu0 0.0
        %5937 = vmatprep.subr.mxu0 0.0
        %5938 = vmatpush1.xpose.msra.mxu0 0.0
        %5939 = vmatprep.subr.mxu0 0.0
        %5940 = vmatpush1.xpose.msra.mxu0 0.0
        %5941 = vmatprep.subr.mxu0 0.0
        %5942 = vmatpush1.xpose.msra.mxu0 0.0
        %5943 = vmatprep.subr.mxu0 0.0
        %5944 = vmatpush1.xpose.msra.mxu0 0.0
        %5945 = vmatprep.subr.mxu0 0.0
        %5946 = vmatpush1.xpose.msra.mxu0 0.0
        %5947 = vmatprep.subr.mxu0 0.0
        %5948 = vmatpush1.xpose.msra.mxu0 0.0
        %5949 = vmatprep.subr.mxu0 0.0
        %5950 = vmatpush1.xpose.msra.mxu0 0.0
        %5951 = vmatprep.subr.mxu0 0.0
        %5952 = vmatpush1.xpose.msra.mxu0 0.0
        %5953 = vmatprep.mubr.f32.mxu0 0.0
        %5954 = vmatmul.mubr.f32.gmra.mrb[0].mxu0 %v5854
        %v5955 = vpop.f32.mrb[0].mxu0
        %v5956 = vadd.f32 0.0, %v5955
        %v5957 = vpop.f32.mrb[0].mxu0
        %5958 = vmatprep.mubr.f32.mxu0 0.0
        %5959 = vmatmul.mubr.f32.gmra.mrb[0].mxu0 %v5857
        %v5960 = vpop.f32.mrb[0].mxu0
        %v5961 = vadd.f32 0.0, %v5960
        %v5962 = vpop.f32.mrb[0].mxu0
        %5963 = vmatprep.mubr.f32.mxu0 0.0
        %5964 = vmatmul.mubr.f32.gmra.mrb[0].mxu0 %v5860
        %v5965 = vpop.f32.mrb[0].mxu0
        %v5966 = vadd.f32 0.0, %v5965
        %v5967 = vpop.f32.mrb[0].mxu0
        %5968 = vmatprep.mubr.f32.mxu0 0.0
        %5969 = vmatmul.mubr.f32.gmra.mrb[0].mxu0 %v5863
        %v5970 = vpop.f32.mrb[0].mxu0
        %v5971 = vadd.f32 0.0, %v5970
        %v5972 = vpop.f32.mrb[0].mxu0
        %5973 = vdwg.mxu0
        %5974 = vxpose.xlu0.b32.start [1/16] %v5358, 128
        %5975 = vxpose.xlu0.b32.cont [2/16] 0.0, 128
        %5976 = vxpose.xlu0.b32.cont [3/16] 0.0, 128
        %5977 = vxpose.xlu0.b32.cont [4/16] 0.0, 128
        %5978 = vxpose.xlu0.b32.cont [5/16] 0.0, 128
        %5979 = vxpose.xlu0.b32.cont [6/16] 0.0, 128
        %5980 = vxpose.xlu0.b32.cont [7/16] 0.0, 128
        %5981 = vxpose.xlu0.b32.cont [8/16] 0.0, 128
        %5982 = vxpose.xlu0.b32.cont [9/16] 0.0, 128
        %5983 = vxpose.xlu0.b32.cont [10/16] 0.0, 128
        %5984 = vxpose.xlu0.b32.cont [11/16] 0.0, 128
        %5985 = vxpose.xlu0.b32.cont [12/16] 0.0, 128
        %5986 = vxpose.xlu0.b32.cont [13/16] 0.0, 128
        %5987 = vxpose.xlu0.b32.cont [14/16] 0.0, 128
        %5988 = vxpose.xlu0.b32.cont [15/16] 0.0, 128
        %5989 = vxpose.xlu0.b32.end [16/16] 0.0, 128
        %v5990 = vpop.trf.xlu0
        %v5991 = vpop.trf.xlu0
        %v5992 = vpop.trf.xlu0
        %v5993 = vpop.trf.xlu0
        %v5994 = vpop.trf.xlu0
        %v5995 = vpop.trf.xlu0
        %v5996 = vpop.trf.xlu0
        %v5997 = vpop.trf.xlu0
        %v5998 = vpop.trf.xlu0
        %v5999 = vpop.trf.xlu0
        %v6000 = vpop.trf.xlu0
        %v6001 = vpop.trf.xlu0
        %v6002 = vpop.trf.xlu0
        %v6003 = vpop.trf.xlu0
        %v6004 = vpop.trf.xlu0
        %v6005 = vpop.trf.xlu0
        %v6007 = vsel %vm2311, %v5990, 0
        %v6010 = vsel %vm2311, %v5991, 0
        %v6013 = vsel %vm2311, %v5992, 0
        %v6016 = vsel %vm2311, %v5993, 0
        %v6019 = vsel %vm2311, %v5322, 0
        %v6022 = vsel %vm2311, %v5323, 0
        %v6025 = vsel %vm2311, %v5324, 0
        %v6028 = vsel %vm2311, %v5325, 0
        %v6031 = vsel %vm2311, %v5326, 0
        %v6034 = vsel %vm2311, %v5327, 0
        %v6037 = vsel %vm2311, %v5328, 0
        %v6040 = vsel %vm2311, %v5329, 0
        %6042 = vmatprep.subr.mxu0 0.0
        %6043 = vmatpush1.xpose.msra.mxu0 %v6019
        %6044 = vmatprep.subr.mxu0 0.0
        %6045 = vmatpush1.xpose.msra.mxu0 %v6022
        %6046 = vmatprep.subr.mxu0 0.0
        %6047 = vmatpush1.xpose.msra.mxu0 %v6025
        %6048 = vmatprep.subr.mxu0 0.0
        %6049 = vmatpush1.xpose.msra.mxu0 %v6028
        %6050 = vmatprep.subr.mxu0 0.0
        %6051 = vmatpush1.xpose.msra.mxu0 %v6031
        %6052 = vmatprep.subr.mxu0 0.0
        %6053 = vmatpush1.xpose.msra.mxu0 %v6034
        %6054 = vmatprep.subr.mxu0 0.0
        %6055 = vmatpush1.xpose.msra.mxu0 %v6037
        %6056 = vmatprep.subr.mxu0 0.0
        %6057 = vmatpush1.xpose.msra.mxu0 %v6040
        %6058 = vmatprep.subr.mxu0 0.0
        %6059 = vmatpush1.xpose.msra.mxu0 0.0
        %6060 = vmatprep.subr.mxu0 0.0
        %6061 = vmatpush1.xpose.msra.mxu0 0.0
        %6062 = vmatprep.subr.mxu0 0.0
        %6063 = vmatpush1.xpose.msra.mxu0 0.0
        %6064 = vmatprep.subr.mxu0 0.0
        %6065 = vmatpush1.xpose.msra.mxu0 0.0
        %6066 = vmatprep.subr.mxu0 0.0
        %6067 = vmatpush1.xpose.msra.mxu0 0.0
        %6068 = vmatprep.subr.mxu0 0.0
        %6069 = vmatpush1.xpose.msra.mxu0 0.0
        %6070 = vmatprep.subr.mxu0 0.0
        %6071 = vmatpush1.xpose.msra.mxu0 0.0
        %6072 = vmatprep.subr.mxu0 0.0
        %6073 = vmatpush1.xpose.msra.mxu0 0.0
        %6074 = vmatprep.subr.mxu0 0.0
        %6075 = vmatpush1.xpose.msra.mxu0 0.0
        %6076 = vmatprep.subr.mxu0 0.0
        %6077 = vmatpush1.xpose.msra.mxu0 0.0
        %6078 = vmatprep.subr.mxu0 0.0
        %6079 = vmatpush1.xpose.msra.mxu0 0.0
        %6080 = vmatprep.subr.mxu0 0.0
        %6081 = vmatpush1.xpose.msra.mxu0 0.0
        %6082 = vmatprep.subr.mxu0 0.0
        %6083 = vmatpush1.xpose.msra.mxu0 0.0
        %6084 = vmatprep.subr.mxu0 0.0
        %6085 = vmatpush1.xpose.msra.mxu0 0.0
        %6086 = vmatprep.subr.mxu0 0.0
        %6087 = vmatpush1.xpose.msra.mxu0 0.0
        %6088 = vmatprep.subr.mxu0 0.0
        %6089 = vmatpush1.xpose.msra.mxu0 0.0
        %6090 = vmatprep.subr.mxu0 0.0
        %6091 = vmatpush1.xpose.msra.mxu0 0.0
        %6092 = vmatprep.subr.mxu0 0.0
        %6093 = vmatpush1.xpose.msra.mxu0 0.0
        %6094 = vmatprep.subr.mxu0 0.0
        %6095 = vmatpush1.xpose.msra.mxu0 0.0
        %6096 = vmatprep.subr.mxu0 0.0
        %6097 = vmatpush1.xpose.msra.mxu0 0.0
        %6098 = vmatprep.subr.mxu0 0.0
        %6099 = vmatpush1.xpose.msra.mxu0 0.0
        %6100 = vmatprep.subr.mxu0 0.0
        %6101 = vmatpush1.xpose.msra.mxu0 0.0
        %6102 = vmatprep.subr.mxu0 0.0
        %6103 = vmatpush1.xpose.msra.mxu0 0.0
        %6104 = vmatprep.subr.mxu0 0.0
        %6105 = vmatpush1.xpose.msra.mxu0 0.0
        %6106 = vmatprep.mubr.f32.mxu0 0.0
        %6107 = vmatmul.mubr.f32.gmra.mrb[0].mxu0 %v6007
        %v6108 = vpop.f32.mrb[0].mxu0
        %v6109 = vadd.f32 0.0, %v6108
        %v6110 = vpop.f32.mrb[0].mxu0
        %6111 = vmatprep.mubr.f32.mxu0 0.0
        %6112 = vmatmul.mubr.f32.gmra.mrb[0].mxu0 %v6010
        %v6113 = vpop.f32.mrb[0].mxu0
        %v6114 = vadd.f32 0.0, %v6113
        %v6115 = vpop.f32.mrb[0].mxu0
        %6116 = vmatprep.mubr.f32.mxu0 0.0
        %6117 = vmatmul.mubr.f32.gmra.mrb[0].mxu0 %v6013
        %v6118 = vpop.f32.mrb[0].mxu0
        %v6119 = vadd.f32 0.0, %v6118
        %v6120 = vpop.f32.mrb[0].mxu0
        %6121 = vmatprep.mubr.f32.mxu0 0.0
        %6122 = vmatmul.mubr.f32.gmra.mrb[0].mxu0 %v6016
        %v6123 = vpop.f32.mrb[0].mxu0
        %v6124 = vadd.f32 0.0, %v6123
        %v6125 = vpop.f32.mrb[0].mxu0
        %6126 = vdwg.mxu0
        %6127 = vxpose.xlu0.b32.start [1/16] %v5359, 128
        %6128 = vxpose.xlu0.b32.cont [2/16] 0.0, 128
        %6129 = vxpose.xlu0.b32.cont [3/16] 0.0, 128
        %6130 = vxpose.xlu0.b32.cont [4/16] 0.0, 128
        %6131 = vxpose.xlu0.b32.cont [5/16] 0.0, 128
        %6132 = vxpose.xlu0.b32.cont [6/16] 0.0, 128
        %6133 = vxpose.xlu0.b32.cont [7/16] 0.0, 128
        %6134 = vxpose.xlu0.b32.cont [8/16] 0.0, 128
        %6135 = vxpose.xlu0.b32.cont [9/16] 0.0, 128
        %6136 = vxpose.xlu0.b32.cont [10/16] 0.0, 128
        %6137 = vxpose.xlu0.b32.cont [11/16] 0.0, 128
        %6138 = vxpose.xlu0.b32.cont [12/16] 0.0, 128
        %6139 = vxpose.xlu0.b32.cont [13/16] 0.0, 128
        %6140 = vxpose.xlu0.b32.cont [14/16] 0.0, 128
        %6141 = vxpose.xlu0.b32.cont [15/16] 0.0, 128
        %6142 = vxpose.xlu0.b32.end [16/16] 0.0, 128
        %v6143 = vpop.trf.xlu0
        %v6144 = vpop.trf.xlu0
        %v6145 = vpop.trf.xlu0
        %v6146 = vpop.trf.xlu0
        %v6147 = vpop.trf.xlu0
        %v6148 = vpop.trf.xlu0
        %v6149 = vpop.trf.xlu0
        %v6150 = vpop.trf.xlu0
        %v6151 = vpop.trf.xlu0
        %v6152 = vpop.trf.xlu0
        %v6153 = vpop.trf.xlu0
        %v6154 = vpop.trf.xlu0
        %v6155 = vpop.trf.xlu0
        %v6156 = vpop.trf.xlu0
        %v6157 = vpop.trf.xlu0
        %v6158 = vpop.trf.xlu0
        %v6160 = vsel %vm2311, %v6143, 0
        %v6163 = vsel %vm2311, %v6144, 0
        %v6166 = vsel %vm2311, %v6145, 0
        %v6169 = vsel %vm2311, %v6146, 0
        %v6172 = vsel %vm2311, %v5330, 0
        %v6175 = vsel %vm2311, %v5331, 0
        %v6178 = vsel %vm2311, %v5332, 0
        %v6181 = vsel %vm2311, %v5333, 0
        %v6184 = vsel %vm2311, %v5334, 0
        %v6187 = vsel %vm2311, %v5335, 0
        %v6190 = vsel %vm2311, %v5336, 0
        %v6193 = vsel %vm2311, %v5337, 0
        %6195 = vmatprep.subr.mxu0 0.0
        %6196 = vmatpush1.xpose.msra.mxu0 %v6172
        %6197 = vmatprep.subr.mxu0 0.0
        %6198 = vmatpush1.xpose.msra.mxu0 %v6175
        %6199 = vmatprep.subr.mxu0 0.0
        %6200 = vmatpush1.xpose.msra.mxu0 %v6178
        %6201 = vmatprep.subr.mxu0 0.0
        %6202 = vmatpush1.xpose.msra.mxu0 %v6181
        %6203 = vmatprep.subr.mxu0 0.0
        %6204 = vmatpush1.xpose.msra.mxu0 %v6184
        %6205 = vmatprep.subr.mxu0 0.0
        %6206 = vmatpush1.xpose.msra.mxu0 %v6187
        %6207 = vmatprep.subr.mxu0 0.0
        %6208 = vmatpush1.xpose.msra.mxu0 %v6190
        %6209 = vmatprep.subr.mxu0 0.0
        %6210 = vmatpush1.xpose.msra.mxu0 %v6193
        %6211 = vmatprep.subr.mxu0 0.0
        %6212 = vmatpush1.xpose.msra.mxu0 0.0
        %6213 = vmatprep.subr.mxu0 0.0
        %6214 = vmatpush1.xpose.msra.mxu0 0.0
        %6215 = vmatprep.subr.mxu0 0.0
        %6216 = vmatpush1.xpose.msra.mxu0 0.0
        %6217 = vmatprep.subr.mxu0 0.0
        %6218 = vmatpush1.xpose.msra.mxu0 0.0
        %6219 = vmatprep.subr.mxu0 0.0
        %6220 = vmatpush1.xpose.msra.mxu0 0.0
        %6221 = vmatprep.subr.mxu0 0.0
        %6222 = vmatpush1.xpose.msra.mxu0 0.0
        %6223 = vmatprep.subr.mxu0 0.0
        %6224 = vmatpush1.xpose.msra.mxu0 0.0
        %6225 = vmatprep.subr.mxu0 0.0
        %6226 = vmatpush1.xpose.msra.mxu0 0.0
        %6227 = vmatprep.subr.mxu0 0.0
        %6228 = vmatpush1.xpose.msra.mxu0 0.0
        %6229 = vmatprep.subr.mxu0 0.0
        %6230 = vmatpush1.xpose.msra.mxu0 0.0
        %6231 = vmatprep.subr.mxu0 0.0
        %6232 = vmatpush1.xpose.msra.mxu0 0.0
        %6233 = vmatprep.subr.mxu0 0.0
        %6234 = vmatpush1.xpose.msra.mxu0 0.0
        %6235 = vmatprep.subr.mxu0 0.0
        %6236 = vmatpush1.xpose.msra.mxu0 0.0
        %6237 = vmatprep.subr.mxu0 0.0
        %6238 = vmatpush1.xpose.msra.mxu0 0.0
        %6239 = vmatprep.subr.mxu0 0.0
        %6240 = vmatpush1.xpose.msra.mxu0 0.0
        %6241 = vmatprep.subr.mxu0 0.0
        %6242 = vmatpush1.xpose.msra.mxu0 0.0
        %6243 = vmatprep.subr.mxu0 0.0
        %6244 = vmatpush1.xpose.msra.mxu0 0.0
        %6245 = vmatprep.subr.mxu0 0.0
        %6246 = vmatpush1.xpose.msra.mxu0 0.0
        %6247 = vmatprep.subr.mxu0 0.0
        %6248 = vmatpush1.xpose.msra.mxu0 0.0
        %6249 = vmatprep.subr.mxu0 0.0
        %6250 = vmatpush1.xpose.msra.mxu0 0.0
        %6251 = vmatprep.subr.mxu0 0.0
        %6252 = vmatpush1.xpose.msra.mxu0 0.0
        %6253 = vmatprep.subr.mxu0 0.0
        %6254 = vmatpush1.xpose.msra.mxu0 0.0
        %6255 = vmatprep.subr.mxu0 0.0
        %6256 = vmatpush1.xpose.msra.mxu0 0.0
        %6257 = vmatprep.subr.mxu0 0.0
        %6258 = vmatpush1.xpose.msra.mxu0 0.0
        %6259 = vmatprep.mubr.f32.mxu0 0.0
        %6260 = vmatmul.mubr.f32.gmra.mrb[0].mxu0 %v6160
        %v6261 = vpop.f32.mrb[0].mxu0
        %v6262 = vadd.f32 0.0, %v6261
        %v6263 = vpop.f32.mrb[0].mxu0
        %6264 = vmatprep.mubr.f32.mxu0 0.0
        %6265 = vmatmul.mubr.f32.gmra.mrb[0].mxu0 %v6163
        %v6266 = vpop.f32.mrb[0].mxu0
        %v6267 = vadd.f32 0.0, %v6266
        %v6268 = vpop.f32.mrb[0].mxu0
        %6269 = vmatprep.mubr.f32.mxu0 0.0
        %6270 = vmatmul.mubr.f32.gmra.mrb[0].mxu0 %v6166
        %v6271 = vpop.f32.mrb[0].mxu0
        %v6272 = vadd.f32 0.0, %v6271
        %v6273 = vpop.f32.mrb[0].mxu0
        %6274 = vmatprep.mubr.f32.mxu0 0.0
        %6275 = vmatmul.mubr.f32.gmra.mrb[0].mxu0 %v6169
        %v6276 = vpop.f32.mrb[0].mxu0
        %v6277 = vadd.f32 0.0, %v6276
        %v6278 = vpop.f32.mrb[0].mxu0
        %6279 = vdwg.mxu0
        %6280 = vxpose.xlu0.b32.start [1/16] %v5360, 128
        %6281 = vxpose.xlu0.b32.cont [2/16] 0.0, 128
        %6282 = vxpose.xlu0.b32.cont [3/16] 0.0, 128
        %6283 = vxpose.xlu0.b32.cont [4/16] 0.0, 128
        %6284 = vxpose.xlu0.b32.cont [5/16] 0.0, 128
        %6285 = vxpose.xlu0.b32.cont [6/16] 0.0, 128
        %6286 = vxpose.xlu0.b32.cont [7/16] 0.0, 128
        %6287 = vxpose.xlu0.b32.cont [8/16] 0.0, 128
        %6288 = vxpose.xlu0.b32.cont [9/16] 0.0, 128
        %6289 = vxpose.xlu0.b32.cont [10/16] 0.0, 128
        %6290 = vxpose.xlu0.b32.cont [11/16] 0.0, 128
        %6291 = vxpose.xlu0.b32.cont [12/16] 0.0, 128
        %6292 = vxpose.xlu0.b32.cont [13/16] 0.0, 128
        %6293 = vxpose.xlu0.b32.cont [14/16] 0.0, 128
        %6294 = vxpose.xlu0.b32.cont [15/16] 0.0, 128
        %6295 = vxpose.xlu0.b32.end [16/16] 0.0, 128
        %v6296 = vpop.trf.xlu0
        %v6297 = vpop.trf.xlu0
        %v6298 = vpop.trf.xlu0
        %v6299 = vpop.trf.xlu0
        %v6300 = vpop.trf.xlu0
        %v6301 = vpop.trf.xlu0
        %v6302 = vpop.trf.xlu0
        %v6303 = vpop.trf.xlu0
        %v6304 = vpop.trf.xlu0
        %v6305 = vpop.trf.xlu0
        %v6306 = vpop.trf.xlu0
        %v6307 = vpop.trf.xlu0
        %v6308 = vpop.trf.xlu0
        %v6309 = vpop.trf.xlu0
        %v6310 = vpop.trf.xlu0
        %v6311 = vpop.trf.xlu0
        %v6313 = vsel %vm2311, %v6296, 0
        %v6316 = vsel %vm2311, %v6297, 0
        %v6319 = vsel %vm2311, %v6298, 0
        %v6322 = vsel %vm2311, %v6299, 0
        %v6325 = vsel %vm2311, %v5338, 0
        %v6328 = vsel %vm2311, %v5339, 0
        %v6331 = vsel %vm2311, %v5340, 0
        %v6334 = vsel %vm2311, %v5341, 0
        %v6337 = vsel %vm2311, %v5342, 0
        %v6340 = vsel %vm2311, %v5343, 0
        %v6343 = vsel %vm2311, %v5344, 0
        %v6346 = vsel %vm2311, %v5345, 0
        %6348 = vmatprep.subr.mxu0 0.0
        %6349 = vmatpush1.xpose.msra.mxu0 %v6325
        %6350 = vmatprep.subr.mxu0 0.0
        %6351 = vmatpush1.xpose.msra.mxu0 %v6328
        %6352 = vmatprep.subr.mxu0 0.0
        %6353 = vmatpush1.xpose.msra.mxu0 %v6331
        %6354 = vmatprep.subr.mxu0 0.0
        %6355 = vmatpush1.xpose.msra.mxu0 %v6334
        %6356 = vmatprep.subr.mxu0 0.0
        %6357 = vmatpush1.xpose.msra.mxu0 %v6337
        %6358 = vmatprep.subr.mxu0 0.0
        %6359 = vmatpush1.xpose.msra.mxu0 %v6340
        %6360 = vmatprep.subr.mxu0 0.0
        %6361 = vmatpush1.xpose.msra.mxu0 %v6343
        %6362 = vmatprep.subr.mxu0 0.0
        %6363 = vmatpush1.xpose.msra.mxu0 %v6346
        %6364 = vmatprep.subr.mxu0 0.0
        %6365 = vmatpush1.xpose.msra.mxu0 0.0
        %6366 = vmatprep.subr.mxu0 0.0
        %6367 = vmatpush1.xpose.msra.mxu0 0.0
        %6368 = vmatprep.subr.mxu0 0.0
        %6369 = vmatpush1.xpose.msra.mxu0 0.0
        %6370 = vmatprep.subr.mxu0 0.0
        %6371 = vmatpush1.xpose.msra.mxu0 0.0
        %6372 = vmatprep.subr.mxu0 0.0
        %6373 = vmatpush1.xpose.msra.mxu0 0.0
        %6374 = vmatprep.subr.mxu0 0.0
        %6375 = vmatpush1.xpose.msra.mxu0 0.0
        %6376 = vmatprep.subr.mxu0 0.0
        %6377 = vmatpush1.xpose.msra.mxu0 0.0
        %6378 = vmatprep.subr.mxu0 0.0
        %6379 = vmatpush1.xpose.msra.mxu0 0.0
        %6380 = vmatprep.subr.mxu0 0.0
        %6381 = vmatpush1.xpose.msra.mxu0 0.0
        %6382 = vmatprep.subr.mxu0 0.0
        %6383 = vmatpush1.xpose.msra.mxu0 0.0
        %6384 = vmatprep.subr.mxu0 0.0
        %6385 = vmatpush1.xpose.msra.mxu0 0.0
        %6386 = vmatprep.subr.mxu0 0.0
        %6387 = vmatpush1.xpose.msra.mxu0 0.0
        %6388 = vmatprep.subr.mxu0 0.0
        %6389 = vmatpush1.xpose.msra.mxu0 0.0
        %6390 = vmatprep.subr.mxu0 0.0
        %6391 = vmatpush1.xpose.msra.mxu0 0.0
        %6392 = vmatprep.subr.mxu0 0.0
        %6393 = vmatpush1.xpose.msra.mxu0 0.0
        %6394 = vmatprep.subr.mxu0 0.0
        %6395 = vmatpush1.xpose.msra.mxu0 0.0
        %6396 = vmatprep.subr.mxu0 0.0
        %6397 = vmatpush1.xpose.msra.mxu0 0.0
        %6398 = vmatprep.subr.mxu0 0.0
        %6399 = vmatpush1.xpose.msra.mxu0 0.0
        %6400 = vmatprep.subr.mxu0 0.0
        %6401 = vmatpush1.xpose.msra.mxu0 0.0
        %6402 = vmatprep.subr.mxu0 0.0
        %6403 = vmatpush1.xpose.msra.mxu0 0.0
        %6404 = vmatprep.subr.mxu0 0.0
        %6405 = vmatpush1.xpose.msra.mxu0 0.0
        %6406 = vmatprep.subr.mxu0 0.0
        %6407 = vmatpush1.xpose.msra.mxu0 0.0
        %6408 = vmatprep.subr.mxu0 0.0
        %6409 = vmatpush1.xpose.msra.mxu0 0.0
        %6410 = vmatprep.subr.mxu0 0.0
        %6411 = vmatpush1.xpose.msra.mxu0 0.0
        %6412 = vmatprep.mubr.f32.mxu0 0.0
        %6413 = vmatmul.mubr.f32.gmra.mrb[0].mxu0 %v6313
        %v6414 = vpop.f32.mrb[0].mxu0
        %v6415 = vadd.f32 0.0, %v6414
        %v6416 = vpop.f32.mrb[0].mxu0
        %6417 = vmatprep.mubr.f32.mxu0 0.0
        %6418 = vmatmul.mubr.f32.gmra.mrb[0].mxu0 %v6316
        %v6419 = vpop.f32.mrb[0].mxu0
        %v6420 = vadd.f32 0.0, %v6419
        %v6421 = vpop.f32.mrb[0].mxu0
        %6422 = vmatprep.mubr.f32.mxu0 0.0
        %6423 = vmatmul.mubr.f32.gmra.mrb[0].mxu0 %v6319
        %v6424 = vpop.f32.mrb[0].mxu0
        %v6425 = vadd.f32 0.0, %v6424
        %v6426 = vpop.f32.mrb[0].mxu0
        %6427 = vmatprep.mubr.f32.mxu0 0.0
        %6428 = vmatmul.mubr.f32.gmra.mrb[0].mxu0 %v6322
        %v6429 = vpop.f32.mrb[0].mxu0
        %v6430 = vadd.f32 0.0, %v6429
        %v6431 = vpop.f32.mrb[0].mxu0
        %6432 = vdwg.mxu0
        %6433 = vxpose.xlu0.b32.start [1/16] %v5361, 128
        %6434 = vxpose.xlu0.b32.cont [2/16] 0.0, 128
        %6435 = vxpose.xlu0.b32.cont [3/16] 0.0, 128
        %6436 = vxpose.xlu0.b32.cont [4/16] 0.0, 128
        %6437 = vxpose.xlu0.b32.cont [5/16] 0.0, 128
        %6438 = vxpose.xlu0.b32.cont [6/16] 0.0, 128
        %6439 = vxpose.xlu0.b32.cont [7/16] 0.0, 128
        %6440 = vxpose.xlu0.b32.cont [8/16] 0.0, 128
        %6441 = vxpose.xlu0.b32.cont [9/16] 0.0, 128
        %6442 = vxpose.xlu0.b32.cont [10/16] 0.0, 128
        %6443 = vxpose.xlu0.b32.cont [11/16] 0.0, 128
        %6444 = vxpose.xlu0.b32.cont [12/16] 0.0, 128
        %6445 = vxpose.xlu0.b32.cont [13/16] 0.0, 128
        %6446 = vxpose.xlu0.b32.cont [14/16] 0.0, 128
        %6447 = vxpose.xlu0.b32.cont [15/16] 0.0, 128
        %6448 = vxpose.xlu0.b32.end [16/16] 0.0, 128
        %v6449 = vpop.trf.xlu0
        %v6450 = vpop.trf.xlu0
        %v6451 = vpop.trf.xlu0
        %v6452 = vpop.trf.xlu0
        %v6453 = vpop.trf.xlu0
        %v6454 = vpop.trf.xlu0
        %v6455 = vpop.trf.xlu0
        %v6456 = vpop.trf.xlu0
        %v6457 = vpop.trf.xlu0
        %v6458 = vpop.trf.xlu0
        %v6459 = vpop.trf.xlu0
        %v6460 = vpop.trf.xlu0
        %v6461 = vpop.trf.xlu0
        %v6462 = vpop.trf.xlu0
        %v6463 = vpop.trf.xlu0
        %v6464 = vpop.trf.xlu0
        %v6466 = vsel %vm2311, %v6449, 0
        %v6469 = vsel %vm2311, %v6450, 0
        %v6472 = vsel %vm2311, %v6451, 0
        %v6475 = vsel %vm2311, %v6452, 0
        %v6478 = vsel %vm2311, %v5346, 0
        %v6481 = vsel %vm2311, %v5347, 0
        %v6484 = vsel %vm2311, %v5348, 0
        %v6487 = vsel %vm2311, %v5349, 0
        %v6490 = vsel %vm2311, %v5350, 0
        %v6493 = vsel %vm2311, %v5351, 0
        %v6496 = vsel %vm2311, %v5352, 0
        %v6499 = vsel %vm2311, %v5353, 0
        %6501 = vmatprep.subr.mxu0 0.0
        %6502 = vmatpush1.xpose.msra.mxu0 %v6478
        %6503 = vmatprep.subr.mxu0 0.0
        %6504 = vmatpush1.xpose.msra.mxu0 %v6481
        %6505 = vmatprep.subr.mxu0 0.0
        %6506 = vmatpush1.xpose.msra.mxu0 %v6484
        %6507 = vmatprep.subr.mxu0 0.0
        %6508 = vmatpush1.xpose.msra.mxu0 %v6487
        %6509 = vmatprep.subr.mxu0 0.0
        %6510 = vmatpush1.xpose.msra.mxu0 %v6490
        %6511 = vmatprep.subr.mxu0 0.0
        %6512 = vmatpush1.xpose.msra.mxu0 %v6493
        %6513 = vmatprep.subr.mxu0 0.0
        %6514 = vmatpush1.xpose.msra.mxu0 %v6496
        %6515 = vmatprep.subr.mxu0 0.0
        %6516 = vmatpush1.xpose.msra.mxu0 %v6499
        %6517 = vmatprep.subr.mxu0 0.0
        %6518 = vmatpush1.xpose.msra.mxu0 0.0
        %6519 = vmatprep.subr.mxu0 0.0
        %6520 = vmatpush1.xpose.msra.mxu0 0.0
        %6521 = vmatprep.subr.mxu0 0.0
        %6522 = vmatpush1.xpose.msra.mxu0 0.0
        %6523 = vmatprep.subr.mxu0 0.0
        %6524 = vmatpush1.xpose.msra.mxu0 0.0
        %6525 = vmatprep.subr.mxu0 0.0
        %6526 = vmatpush1.xpose.msra.mxu0 0.0
        %6527 = vmatprep.subr.mxu0 0.0
        %6528 = vmatpush1.xpose.msra.mxu0 0.0
        %6529 = vmatprep.subr.mxu0 0.0
        %6530 = vmatpush1.xpose.msra.mxu0 0.0
        %6531 = vmatprep.subr.mxu0 0.0
        %6532 = vmatpush1.xpose.msra.mxu0 0.0
        %6533 = vmatprep.subr.mxu0 0.0
        %6534 = vmatpush1.xpose.msra.mxu0 0.0
        %6535 = vmatprep.subr.mxu0 0.0
        %6536 = vmatpush1.xpose.msra.mxu0 0.0
        %6537 = vmatprep.subr.mxu0 0.0
        %6538 = vmatpush1.xpose.msra.mxu0 0.0
        %6539 = vmatprep.subr.mxu0 0.0
        %6540 = vmatpush1.xpose.msra.mxu0 0.0
        %6541 = vmatprep.subr.mxu0 0.0
        %6542 = vmatpush1.xpose.msra.mxu0 0.0
        %6543 = vmatprep.subr.mxu0 0.0
        %6544 = vmatpush1.xpose.msra.mxu0 0.0
        %6545 = vmatprep.subr.mxu0 0.0
        %6546 = vmatpush1.xpose.msra.mxu0 0.0
        %6547 = vmatprep.subr.mxu0 0.0
        %6548 = vmatpush1.xpose.msra.mxu0 0.0
        %6549 = vmatprep.subr.mxu0 0.0
        %6550 = vmatpush1.xpose.msra.mxu0 0.0
        %6551 = vmatprep.subr.mxu0 0.0
        %6552 = vmatpush1.xpose.msra.mxu0 0.0
        %6553 = vmatprep.subr.mxu0 0.0
        %6554 = vmatpush1.xpose.msra.mxu0 0.0
        %6555 = vmatprep.subr.mxu0 0.0
        %6556 = vmatpush1.xpose.msra.mxu0 0.0
        %6557 = vmatprep.subr.mxu0 0.0
        %6558 = vmatpush1.xpose.msra.mxu0 0.0
        %6559 = vmatprep.subr.mxu0 0.0
        %6560 = vmatpush1.xpose.msra.mxu0 0.0
        %6561 = vmatprep.subr.mxu0 0.0
        %6562 = vmatpush1.xpose.msra.mxu0 0.0
        %6563 = vmatprep.subr.mxu0 0.0
        %6564 = vmatpush1.xpose.msra.mxu0 0.0
        %6565 = vmatprep.mubr.f32.mxu0 0.0
        %6566 = vmatmul.mubr.f32.gmra.mrb[0].mxu0 %v6466
        %v6567 = vpop.f32.mrb[0].mxu0
        %v6568 = vadd.f32 0.0, %v6567
        %v6569 = vpop.f32.mrb[0].mxu0
        %6570 = vmatprep.mubr.f32.mxu0 0.0
        %6571 = vmatmul.mubr.f32.gmra.mrb[0].mxu0 %v6469
        %v6572 = vpop.f32.mrb[0].mxu0
        %v6573 = vadd.f32 0.0, %v6572
        %v6574 = vpop.f32.mrb[0].mxu0
        %6575 = vmatprep.mubr.f32.mxu0 0.0
        %6576 = vmatmul.mubr.f32.gmra.mrb[0].mxu0 %v6472
        %v6577 = vpop.f32.mrb[0].mxu0
        %v6578 = vadd.f32 0.0, %v6577
        %v6579 = vpop.f32.mrb[0].mxu0
        %6580 = vmatprep.mubr.f32.mxu0 0.0
        %6581 = vmatmul.mubr.f32.gmra.mrb[0].mxu0 %v6475
        %v6582 = vpop.f32.mrb[0].mxu0
        %v6583 = vadd.f32 0.0, %v6582
        %v6584 = vpop.f32.mrb[0].mxu0
        %6585 = vdwg.mxu0
        %v6586 = vsel %vm3593, %v5497, 0.0
        %v6587 = vsel %vm3593, %v5650, 0.0
        %v6588 = vadd.f32 %v6586, %v6587
        %v6589 = vsel %vm3593, %v5803, 0.0
        %v6590 = vadd.f32 %v6588, %v6589
        %v6591 = vsel %vm3593, %v5956, 0.0
        %v6592 = vadd.f32 %v6590, %v6591
        %v6593 = vsel %vm3593, %v6109, 0.0
        %v6594 = vadd.f32 %v6592, %v6593
        %v6595 = vsel %vm3593, %v6262, 0.0
        %v6596 = vadd.f32 %v6594, %v6595
        %v6597 = vsel %vm3593, %v6415, 0.0
        %v6598 = vadd.f32 %v6596, %v6597
        %v6599 = vsel %vm3593, %v6568, 0.0
        %v6600 = vadd.f32 %v6598, %v6599
        %v6601 = vsel %vm3593, %v5502, 0.0
        %v6602 = vsel %vm3593, %v5655, 0.0
        %v6603 = vadd.f32 %v6601, %v6602
        %v6604 = vsel %vm3593, %v5808, 0.0
        %v6605 = vadd.f32 %v6603, %v6604
        %v6606 = vsel %vm3593, %v5961, 0.0
        %v6607 = vadd.f32 %v6605, %v6606
        %v6608 = vsel %vm3593, %v6114, 0.0
        %v6609 = vadd.f32 %v6607, %v6608
        %v6610 = vsel %vm3593, %v6267, 0.0
        %v6611 = vadd.f32 %v6609, %v6610
        %v6612 = vsel %vm3593, %v6420, 0.0
        %v6613 = vadd.f32 %v6611, %v6612
        %v6614 = vsel %vm3593, %v6573, 0.0
        %v6615 = vadd.f32 %v6613, %v6614
        %v6616 = vsel %vm3593, %v5507, 0.0
        %v6617 = vsel %vm3593, %v5660, 0.0
        %v6618 = vadd.f32 %v6616, %v6617
        %v6619 = vsel %vm3593, %v5813, 0.0
        %v6620 = vadd.f32 %v6618, %v6619
        %v6621 = vsel %vm3593, %v5966, 0.0
        %v6622 = vadd.f32 %v6620, %v6621
        %v6623 = vsel %vm3593, %v6119, 0.0
        %v6624 = vadd.f32 %v6622, %v6623
        %v6625 = vsel %vm3593, %v6272, 0.0
        %v6626 = vadd.f32 %v6624, %v6625
        %v6627 = vsel %vm3593, %v6425, 0.0
        %v6628 = vadd.f32 %v6626, %v6627
        %v6629 = vsel %vm3593, %v6578, 0.0
        %v6630 = vadd.f32 %v6628, %v6629
        %v6631 = vsel %vm3593, %v5512, 0.0
        %v6632 = vsel %vm3593, %v5665, 0.0
        %v6633 = vadd.f32 %v6631, %v6632
        %v6634 = vsel %vm3593, %v5818, 0.0
        %v6635 = vadd.f32 %v6633, %v6634
        %v6636 = vsel %vm3593, %v5971, 0.0
        %v6637 = vadd.f32 %v6635, %v6636
        %v6638 = vsel %vm3593, %v6124, 0.0
        %v6639 = vadd.f32 %v6637, %v6638
        %v6640 = vsel %vm3593, %v6277, 0.0
        %v6641 = vadd.f32 %v6639, %v6640
        %v6642 = vsel %vm3593, %v6430, 0.0
        %v6643 = vadd.f32 %v6641, %v6642
        %v6644 = vsel %vm3593, %v6583, 0.0
        %v6645 = vadd.f32 %v6643, %v6644
        %v6646 = vld [vmem:[%s8] sm:$0xff]
        %v6647 = vld [vmem:[%s8 + $0x8] sm:$0xff]
        %v6648 = vld [vmem:[%s8 + $0x10] sm:$0xff]
        %v6649 = vld [vmem:[%s8 + $0x18] sm:$0xff]
        %6651 = vset.pattern.permute.xlu0 0
        %6652 = vperm.xlu0 %6651, %v6646
        %v6653 = vpop.permute.xlu0 %6652
        %6656 = vset.pattern.permute.xlu0 0
        %6657 = vperm.xlu0 %6656, %v6647
        %v6658 = vpop.permute.xlu0 %6657
        %6661 = vset.pattern.permute.xlu0 0
        %6662 = vperm.xlu0 %6661, %v6648
        %v6663 = vpop.permute.xlu0 %6662
        %6666 = vset.pattern.permute.xlu0 0
        %6667 = vperm.xlu0 %6666, %v6649
        %v6668 = vpop.permute.xlu0 %6667
        %v6670 = vadd.f32 %v6600, %v6653
        %v6671 = vadd.f32 %v6615, %v6658
        %v6672 = vadd.f32 %v6630, %v6663
        %v6673 = vadd.f32 %v6645, %v6668
        %6674 = vst.msk [vmem:[%s340] sm:$0xff] %vm3593, %v6670
        %6675 = vst.msk [vmem:[%s340 + $0x8] sm:$0xff] %vm3593, %v6671
        %6676 = vst.msk [vmem:[%s340 + $0x10] sm:$0xff] %vm3593, %v6672
        %6677 = vst.msk [vmem:[%s340 + $0x18] sm:$0xff] %vm3593, %v6673
        %s6678 = sand.u32 %s226, 1
        %s6679 = scalar_lea.sflag [#allocation4], %s6678
        %s6680 = sand.u32 %s226, 1
        %s6681 = smul.addr %s6680, 32
        %s6682 = scalar_lea.vmem [#allocation5], %s6681
        // Predicated region
        $region61: #{tpu_custom_call.1} parent=55 // pred_check
          %p6683 = pneg %p236
        $region62: #{tpu_custom_call.1} parent=55 // pred_check_branch
          %6685 = sbr.rel (%p6683) target = $region64
        $region63: #{tpu_custom_call.1} parent=55 // pred_region
          %s6687 = ssub.s32 512, 512
          %6688 = vsyncadd %s6679, %s6687
          %s6689 = smul.addr %s24, 4
          %s6690 = smul.addr %s6689, 128
          %s6691 = scalar_lea.hbm %s9, %s6690
          %s6692 = sshll.u32 %s6682, 4
          %s6693 = int_to_ptr.vmem [resolvable:$true] %s6692
          %6698 = dma.vmem_to_hbm [thread:$0]  %s6693, 512, %s6691, %s6679, 128, 128, 8
        $region64: #{tpu_custom_call.1} parent=55 // pred_fallthru
          _
      $region56: #{tpu_custom_call.1} parent=5 // pred_fallthru
        _
      %p6699 = scmp.le.s32.totalorder 2, %s19
      // Predicated region
      $region65: #{tpu_custom_call.1} parent=5 // pred_check
        %p6700 = pneg %p6699
      $region66: #{tpu_custom_call.1} parent=5 // pred_check_branch
        %6702 = sbr.rel (%p6700) target = $region68
      $region67: #{tpu_custom_call.1} parent=5 // pred_region
        %s6703 = ssub.s32 %s19, 2
        // Predicated region
        $region69: #{tpu_custom_call.1} parent=67 // pred_check
          %p6704 = pneg %p242
        $region70: #{tpu_custom_call.1} parent=67 // pred_check_branch
          %6706 = sbr.rel (%p6704) target = $region72
        $region71: #{tpu_custom_call.1} parent=67 // pred_region
          %s6707 = sand.u32 %s227, 1
          %s6708 = scalar_lea.sflag [#allocation4], %s6707
          %s6709 = sand.u32 %s227, 1
          %s6710 = smul.addr %s6709, 32
          %s6711 = scalar_lea.vmem [#allocation5], %s6710
          %6712 = dma.done %s6708, 512
        $region72: #{tpu_custom_call.1} parent=67 // pred_fallthru
          _
      $region68: #{tpu_custom_call.1} parent=5 // pred_fallthru
        _
    $region6: #{tpu_custom_call.1} parent=1 // loop_footer
      %s23 = sadd.s32 1, %s19
    $region7: #{tpu_custom_call.1} parent=1 // loop_footer_branch
      %18 = sbr.rel target = $region3
    $region8: #{tpu_custom_call.1} parent=1 // loop_exit
      _
    %6713 = vsyncpa [#allocation3], 1
    %s6714 = scalar_lea.sflag [#allocation3], 1
    %6715 = vsyncpa %s6714, 1
    %6716 = vsyncpa [#allocation4], 1
    %s6717 = scalar_lea.sflag [#allocation4], 1
    %6718 = vsyncpa %s6717, 1

</llo_original>
